<compile_context>
chip_gen: v6e
topology: v6e:2x2x1
jax: 0.10.0
libtpu: 0.0.40
codegen_flags: <defaults>
</compile_context>

<pallas_src>
import jax
import jax.numpy as jnp
from jax.experimental import pallas as pl
from jax.experimental.pallas import tpu as pltpu


def _generator_kernel(prob_ref, z_ref,
                      pw1_ref, pb1_ref, pw2_ref, pb2_ref,
                      w1_ref, b1_ref,
                      w2_ref, b2_ref,
                      w3_ref, b3_ref,
                      w4_ref, b4_ref,
                      w5_ref, b5_ref,
                      out_ref,
                      x1_ref):
    f32 = jnp.float32
    bf16 = jnp.bfloat16

    # ---- proj: Linear(len_prob, 256) -> ReLU -> Linear(256, 64) ----
    # bf16 operands into the MXU, f32 accumulation, f32 elementwise.
    h = jnp.dot(prob_ref[...].astype(bf16), pw1_ref[...],
                preferred_element_type=f32) + pb1_ref[...]
    h = jnp.maximum(h, 0.0)
    p = jnp.dot(h.astype(bf16), pw2_ref[...],
                preferred_element_type=f32) + pb2_ref[...]

    # ---- cat([z, proj(prob)], -1): build the K=128 operand in VMEM scratch ----
    x1_ref[:, :64] = z_ref[...]
    x1_ref[:, 64:] = p

    # ---- mlp: 128 -> 512 -> 1024 -> 512 -> 512 -> 256 with ReLU between ----
    x = jnp.dot(x1_ref[...].astype(bf16), w1_ref[...],
                preferred_element_type=f32) + b1_ref[...]
    x = jnp.maximum(x, 0.0)
    x = jnp.maximum(jnp.dot(x.astype(bf16), w2_ref[...],
                            preferred_element_type=f32) + b2_ref[...], 0.0)
    x = jnp.maximum(jnp.dot(x.astype(bf16), w3_ref[...],
                            preferred_element_type=f32) + b3_ref[...], 0.0)
    x = jnp.maximum(jnp.dot(x.astype(bf16), w4_ref[...],
                            preferred_element_type=f32) + b4_ref[...], 0.0)
    out_ref[...] = (jnp.dot(x.astype(bf16), w5_ref[...],
                            preferred_element_type=f32)
                    + b5_ref[...]).astype(out_ref.dtype)


def generator_forward(prob, z, params, *, tb=None):
    """prob: (B, len_prob) f32, z: (B, 64) f32 -> (B, 256) f32."""
    B = prob.shape[0]

    # Batch tile: multiple of 8 sublanes; cap at 128 rows per grid step.
    if tb is None:
        tb = 128 if B >= 128 else ((B + 7) // 8) * 8
    b_pad = ((B + tb - 1) // tb) * tb
    if b_pad != B:
        pad = b_pad - B
        prob = jnp.pad(prob, ((0, pad), (0, 0)))
        z = jnp.pad(z, ((0, pad), (0, 0)))
    nb = b_pad // tb

    weights = (params["pw1"], params["pb1"], params["pw2"], params["pb2"],
               params["w1"], params["b1"],
               params["w2"], params["b2"],
               params["w3"], params["b3"],
               params["w4"], params["b4"],
               params["w5"], params["b5"])

    def resident_spec(a):
        # Weight / bias: full tensor as one block, same block for every batch
        # tile -> stays VMEM-resident across the grid.
        return pl.BlockSpec(a.shape, lambda i, _nd=a.ndim: (0,) * _nd)

    in_specs = ([pl.BlockSpec((tb, prob.shape[1]), lambda i: (i, 0)),
                 pl.BlockSpec((tb, 64), lambda i: (i, 0))]
                + [resident_spec(a) for a in weights])
    out_spec = pl.BlockSpec((tb, 256), lambda i: (i, 0))

    out = pl.pallas_call(
        _generator_kernel,
        out_shape=jax.ShapeDtypeStruct((b_pad, 256), jnp.float32),
        grid_spec=pltpu.PrefetchScalarGridSpec(
            num_scalar_prefetch=0,
            grid=(nb,),
            in_specs=in_specs,
            out_specs=out_spec,
            scratch_shapes=[pltpu.VMEM((tb, 128), jnp.float32)],
        ),
        compiler_params=pltpu.CompilerParams(
            dimension_semantics=("parallel",),   # batch tiles split over TCs (v7x)
            vmem_limit_bytes=24 << 20,
        ),
    )(prob, z, *weights)

    return out[:B]


def init_params(key, len_prob):
    """Deterministic synthetic init (shapes match the PyTorch module).

    Weights are stored in bf16 (what the kernel streams into the MXU);
    biases stay f32.
    """
    def lin(k, fan_in, fan_out):
        kw, kb = jax.random.split(k)
        s = 1.0 / jnp.sqrt(fan_in)
        w = jax.random.uniform(kw, (fan_in, fan_out), jnp.float32, -s, s)
        b = jax.random.uniform(kb, (1, fan_out), jnp.float32, -s, s)
        return w.astype(jnp.bfloat16), b

    keys = jax.random.split(key, 7)
    params = {}
    # proj
    params["pw1"], params["pb1"] = lin(keys[0], len_prob, 256)
    params["pw2"], params["pb2"] = lin(keys[1], 256, 64)
    # mlp
    params["w1"], params["b1"] = lin(keys[2], 128, 512)
    params["w2"], params["b2"] = lin(keys[3], 512, 1024)
    params["w3"], params["b3"] = lin(keys[4], 1024, 512)
    params["w4"], params["b4"] = lin(keys[5], 512, 512)
    params["w5"], params["b5"] = lin(keys[6], 512, 256)
    return params


def reference_forward(prob, z, params):
    """Pure-JAX reference mirroring the kernel's bf16-in / f32-acc numerics."""
    f32, bf16 = jnp.float32, jnp.bfloat16
    relu = lambda a: jnp.maximum(a, 0.0)

    def dot(x, w):
        return jnp.dot(x.astype(bf16), w, preferred_element_type=f32)

    h = relu(dot(prob, params["pw1"]) + params["pb1"])
    p = dot(h, params["pw2"]) + params["pb2"]
    x = jnp.concatenate([z, p], axis=-1)
    x = relu(dot(x, params["w1"]) + params["b1"])
    x = relu(dot(x, params["w2"]) + params["b2"])
    x = relu(dot(x, params["w3"]) + params["b3"])
    x = relu(dot(x, params["w4"]) + params["b4"])
    return dot(x, params["w5"]) + params["b5"]


if __name__ == "__main__":
    LEN_PROB = 32

    key = jax.random.PRNGKey(0)
    k_param, k_prob, k_z, k_prob2, k_z2 = jax.random.split(key, 5)
    params = init_params(k_param, LEN_PROB)

    # --- small batch (grid collapses to a single step) ---
    B = 8
    prob = jax.random.uniform(k_prob, (B, LEN_PROB), jnp.float32)
    z = jax.random.normal(k_z, (B, 64), jnp.float32)   # torch.randn(len(prob), 64)

    out = jax.block_until_ready(generator_forward(prob, z, params))
    ref = reference_forward(prob, z, params)
    assert out.shape == (B, 256), out.shape
    assert jnp.allclose(out, ref, atol=1e-2, rtol=1e-2), "mismatch vs JAX reference (B=8)"

    # --- larger batch: exercises batch padding + multi-step parallel grid ---
    B2 = 200  # pads to 256 -> grid=(2,) with tb=128
    prob2 = jax.random.uniform(k_prob2, (B2, LEN_PROB), jnp.float32)
    z2 = jax.random.normal(k_z2, (B2, 64), jnp.float32)

    out2 = jax.block_until_ready(generator_forward(prob2, z2, params))
    ref2 = reference_forward(prob2, z2, params)
    assert out2.shape == (B2, 256), out2.shape
    assert jnp.allclose(out2, ref2, atol=1e-2, rtol=1e-2), "mismatch vs JAX reference (B=200)"

    print("KERNEL_OK")
</pallas_src>

<mosaic_0001>
module attributes {stable_mosaic.version = 11 : i64} {
  func.func @_generator_kernel(%arg0: i32, %arg1: memref<8x32xf32, #tpu.memory_space<vmem>>, %arg2: memref<8x64xf32, #tpu.memory_space<vmem>>, %arg3: memref<32x256xbf16, #tpu.memory_space<vmem>>, %arg4: memref<1x256xf32, #tpu.memory_space<vmem>>, %arg5: memref<256x64xbf16, #tpu.memory_space<vmem>>, %arg6: memref<1x64xf32, #tpu.memory_space<vmem>>, %arg7: memref<128x512xbf16, #tpu.memory_space<vmem>>, %arg8: memref<1x512xf32, #tpu.memory_space<vmem>>, %arg9: memref<512x1024xbf16, #tpu.memory_space<vmem>>, %arg10: memref<1x1024xf32, #tpu.memory_space<vmem>>, %arg11: memref<1024x512xbf16, #tpu.memory_space<vmem>>, %arg12: memref<1x512xf32, #tpu.memory_space<vmem>>, %arg13: memref<512x512xbf16, #tpu.memory_space<vmem>>, %arg14: memref<1x512xf32, #tpu.memory_space<vmem>>, %arg15: memref<512x256xbf16, #tpu.memory_space<vmem>>, %arg16: memref<1x256xf32, #tpu.memory_space<vmem>>, %arg17: memref<8x256xf32, #tpu.memory_space<vmem>>, %arg18: memref<8x128xf32, #tpu.memory_space<vmem>>) attributes {dimension_semantics = [#tpu.dimension_semantics<parallel>], iteration_bounds = array<i64: 1>, scalar_prefetch = 0 : i64, scratch_operands = 1 : i64, tpu.core_type = #tpu.core_type<tc>, window_params = [{transform_indices = @transform_0, window_bounds = array<i64: 8, 32>}, {transform_indices = @transform_1, window_bounds = array<i64: 8, 64>}, {pipeline_mode = #tpu.pipeline_mode<synchronous>, transform_indices = @transform_2, window_bounds = array<i64: 32, 256>}, {pipeline_mode = #tpu.pipeline_mode<synchronous>, transform_indices = @transform_3, window_bounds = array<i64: 1, 256>}, {pipeline_mode = #tpu.pipeline_mode<synchronous>, transform_indices = @transform_4, window_bounds = array<i64: 256, 64>}, {pipeline_mode = #tpu.pipeline_mode<synchronous>, transform_indices = @transform_5, window_bounds = array<i64: 1, 64>}, {pipeline_mode = #tpu.pipeline_mode<synchronous>, transform_indices = @transform_6, window_bounds = array<i64: 128, 512>}, {pipeline_mode = #tpu.pipeline_mode<synchronous>, transform_indices = @transform_7, window_bounds = array<i64: 1, 512>}, {pipeline_mode = #tpu.pipeline_mode<synchronous>, transform_indices = @transform_8, window_bounds = array<i64: 512, 1024>}, {pipeline_mode = #tpu.pipeline_mode<synchronous>, transform_indices = @transform_9, window_bounds = array<i64: 1, 1024>}, {pipeline_mode = #tpu.pipeline_mode<synchronous>, transform_indices = @transform_10, window_bounds = array<i64: 1024, 512>}, {pipeline_mode = #tpu.pipeline_mode<synchronous>, transform_indices = @transform_11, window_bounds = array<i64: 1, 512>}, {pipeline_mode = #tpu.pipeline_mode<synchronous>, transform_indices = @transform_12, window_bounds = array<i64: 512, 512>}, {pipeline_mode = #tpu.pipeline_mode<synchronous>, transform_indices = @transform_13, window_bounds = array<i64: 1, 512>}, {pipeline_mode = #tpu.pipeline_mode<synchronous>, transform_indices = @transform_14, window_bounds = array<i64: 512, 256>}, {pipeline_mode = #tpu.pipeline_mode<synchronous>, transform_indices = @transform_15, window_bounds = array<i64: 1, 256>}, {transform_indices = @transform_16, window_bounds = array<i64: 8, 256>}]} {
    %c0 = arith.constant 0 : index
    %c0_0 = arith.constant 0 : index
    %0 = vector.load %arg1[%c0, %c0_0] : memref<8x32xf32, #tpu.memory_space<vmem>>, vector<8x32xf32>
    %1 = arith.truncf %0 : vector<8x32xf32> to vector<8x32xbf16>
    %c0_1 = arith.constant 0 : index
    %c0_2 = arith.constant 0 : index
    %2 = vector.load %arg3[%c0_1, %c0_2] : memref<32x256xbf16, #tpu.memory_space<vmem>>, vector<32x256xbf16>
    %cst = arith.constant dense<0.000000e+00> : vector<8x256xf32>
    %3 = tpu.matmul %1, %2, %cst {dimension_numbers = #tpu.dot_dimension_numbers<[1], [0], [0], [1], [0, 0, 1, 1], [], []>} : vector<8x32xbf16>, vector<32x256xbf16>, vector<8x256xf32> -> vector<8x256xf32>
    %c0_3 = arith.constant 0 : index
    %c0_4 = arith.constant 0 : index
    %4 = vector.load %arg4[%c0_3, %c0_4] : memref<1x256xf32, #tpu.memory_space<vmem>>, vector<1x256xf32>
    %5 = vector.broadcast %4 : vector<1x256xf32> to vector<8x256xf32>
    %6 = arith.addf %3, %5 : vector<8x256xf32>
    %cst_5 = arith.constant 0.000000e+00 : f32
    %7 = vector.broadcast %cst_5 : f32 to vector<8x256xf32>
    %8 = arith.maximumf %6, %7 : vector<8x256xf32>
    %9 = arith.truncf %8 : vector<8x256xf32> to vector<8x256xbf16>
    %c0_6 = arith.constant 0 : index
    %c0_7 = arith.constant 0 : index
    %10 = vector.load %arg5[%c0_6, %c0_7] : memref<256x64xbf16, #tpu.memory_space<vmem>>, vector<256x64xbf16>
    %cst_8 = arith.constant dense<0.000000e+00> : vector<8x64xf32>
    %11 = tpu.matmul %9, %10, %cst_8 {dimension_numbers = #tpu.dot_dimension_numbers<[1], [0], [0], [1], [0, 0, 1, 1], [], []>} : vector<8x256xbf16>, vector<256x64xbf16>, vector<8x64xf32> -> vector<8x64xf32>
    %c0_9 = arith.constant 0 : index
    %c0_10 = arith.constant 0 : index
    %12 = vector.load %arg6[%c0_9, %c0_10] : memref<1x64xf32, #tpu.memory_space<vmem>>, vector<1x64xf32>
    %13 = vector.broadcast %12 : vector<1x64xf32> to vector<8x64xf32>
    %14 = arith.addf %11, %13 : vector<8x64xf32>
    %c0_11 = arith.constant 0 : index
    %c0_12 = arith.constant 0 : index
    %15 = vector.load %arg2[%c0_11, %c0_12] : memref<8x64xf32, #tpu.memory_space<vmem>>, vector<8x64xf32>
    %c0_13 = arith.constant 0 : index
    %c0_14 = arith.constant 0 : index
    %16 = vector.load %arg18[%c0_13, %c0_14] : memref<8x128xf32, #tpu.memory_space<vmem>>, vector<8x64xf32>
    tpu.vector_store %arg18[%c0_13, %c0_14], %15 {strides = array<i32>} : memref<8x128xf32, #tpu.memory_space<vmem>>, vector<8x64xf32>,
    %c0_15 = arith.constant 0 : index
    %c64 = arith.constant 64 : index
    %17 = vector.load %arg18[%c0_15, %c64] : memref<8x128xf32, #tpu.memory_space<vmem>>, vector<8x64xf32>
    tpu.vector_store %arg18[%c0_15, %c64], %14 {strides = array<i32>} : memref<8x128xf32, #tpu.memory_space<vmem>>, vector<8x64xf32>,
    %c0_16 = arith.constant 0 : index
    %c0_17 = arith.constant 0 : index
    %18 = vector.load %arg18[%c0_16, %c0_17] : memref<8x128xf32, #tpu.memory_space<vmem>>, vector<8x128xf32>
    %19 = arith.truncf %18 : vector<8x128xf32> to vector<8x128xbf16>
    %c0_18 = arith.constant 0 : index
    %c0_19 = arith.constant 0 : index
    %20 = vector.load %arg7[%c0_18, %c0_19] : memref<128x512xbf16, #tpu.memory_space<vmem>>, vector<128x512xbf16>
    %cst_20 = arith.constant dense<0.000000e+00> : vector<8x512xf32>
    %21 = tpu.matmul %19, %20, %cst_20 {dimension_numbers = #tpu.dot_dimension_numbers<[1], [0], [0], [1], [0, 0, 1, 1], [], []>} : vector<8x128xbf16>, vector<128x512xbf16>, vector<8x512xf32> -> vector<8x512xf32>
    %c0_21 = arith.constant 0 : index
    %c0_22 = arith.constant 0 : index
    %22 = vector.load %arg8[%c0_21, %c0_22] : memref<1x512xf32, #tpu.memory_space<vmem>>, vector<1x512xf32>
    %23 = vector.broadcast %22 : vector<1x512xf32> to vector<8x512xf32>
    %24 = arith.addf %21, %23 : vector<8x512xf32>
    %cst_23 = arith.constant 0.000000e+00 : f32
    %25 = vector.broadcast %cst_23 : f32 to vector<8x512xf32>
    %26 = arith.maximumf %24, %25 : vector<8x512xf32>
    %27 = arith.truncf %26 : vector<8x512xf32> to vector<8x512xbf16>
    %c0_24 = arith.constant 0 : index
    %c0_25 = arith.constant 0 : index
    %28 = vector.load %arg9[%c0_24, %c0_25] : memref<512x1024xbf16, #tpu.memory_space<vmem>>, vector<512x1024xbf16>
    %cst_26 = arith.constant dense<0.000000e+00> : vector<8x1024xf32>
    %29 = tpu.matmul %27, %28, %cst_26 {dimension_numbers = #tpu.dot_dimension_numbers<[1], [0], [0], [1], [0, 0, 1, 1], [], []>} : vector<8x512xbf16>, vector<512x1024xbf16>, vector<8x1024xf32> -> vector<8x1024xf32>
    %c0_27 = arith.constant 0 : index
    %c0_28 = arith.constant 0 : index
    %30 = vector.load %arg10[%c0_27, %c0_28] : memref<1x1024xf32, #tpu.memory_space<vmem>>, vector<1x1024xf32>
    %31 = vector.broadcast %30 : vector<1x1024xf32> to vector<8x1024xf32>
    %32 = arith.addf %29, %31 : vector<8x1024xf32>
    %cst_29 = arith.constant 0.000000e+00 : f32
    %33 = vector.broadcast %cst_29 : f32 to vector<8x1024xf32>
    %34 = arith.maximumf %32, %33 : vector<8x1024xf32>
    %35 = arith.truncf %34 : vector<8x1024xf32> to vector<8x1024xbf16>
    %c0_30 = arith.constant 0 : index
    %c0_31 = arith.constant 0 : index
    %36 = vector.load %arg11[%c0_30, %c0_31] : memref<1024x512xbf16, #tpu.memory_space<vmem>>, vector<1024x512xbf16>
    %cst_32 = arith.constant dense<0.000000e+00> : vector<8x512xf32>
    %37 = tpu.matmul %35, %36, %cst_32 {dimension_numbers = #tpu.dot_dimension_numbers<[1], [0], [0], [1], [0, 0, 1, 1], [], []>} : vector<8x1024xbf16>, vector<1024x512xbf16>, vector<8x512xf32> -> vector<8x512xf32>
    %c0_33 = arith.constant 0 : index
    %c0_34 = arith.constant 0 : index
    %38 = vector.load %arg12[%c0_33, %c0_34] : memref<1x512xf32, #tpu.memory_space<vmem>>, vector<1x512xf32>
    %39 = vector.broadcast %38 : vector<1x512xf32> to vector<8x512xf32>
    %40 = arith.addf %37, %39 : vector<8x512xf32>
    %cst_35 = arith.constant 0.000000e+00 : f32
    %41 = vector.broadcast %cst_35 : f32 to vector<8x512xf32>
    %42 = arith.maximumf %40, %41 : vector<8x512xf32>
    %43 = arith.truncf %42 : vector<8x512xf32> to vector<8x512xbf16>
    %c0_36 = arith.constant 0 : index
    %c0_37 = arith.constant 0 : index
    %44 = vector.load %arg13[%c0_36, %c0_37] : memref<512x512xbf16, #tpu.memory_space<vmem>>, vector<512x512xbf16>
    %cst_38 = arith.constant dense<0.000000e+00> : vector<8x512xf32>
    %45 = tpu.matmul %43, %44, %cst_38 {dimension_numbers = #tpu.dot_dimension_numbers<[1], [0], [0], [1], [0, 0, 1, 1], [], []>} : vector<8x512xbf16>, vector<512x512xbf16>, vector<8x512xf32> -> vector<8x512xf32>
    %c0_39 = arith.constant 0 : index
    %c0_40 = arith.constant 0 : index
    %46 = vector.load %arg14[%c0_39, %c0_40] : memref<1x512xf32, #tpu.memory_space<vmem>>, vector<1x512xf32>
    %47 = vector.broadcast %46 : vector<1x512xf32> to vector<8x512xf32>
    %48 = arith.addf %45, %47 : vector<8x512xf32>
    %cst_41 = arith.constant 0.000000e+00 : f32
    %49 = vector.broadcast %cst_41 : f32 to vector<8x512xf32>
    %50 = arith.maximumf %48, %49 : vector<8x512xf32>
    %51 = arith.truncf %50 : vector<8x512xf32> to vector<8x512xbf16>
    %c0_42 = arith.constant 0 : index
    %c0_43 = arith.constant 0 : index
    %52 = vector.load %arg15[%c0_42, %c0_43] : memref<512x256xbf16, #tpu.memory_space<vmem>>, vector<512x256xbf16>
    %cst_44 = arith.constant dense<0.000000e+00> : vector<8x256xf32>
    %53 = tpu.matmul %51, %52, %cst_44 {dimension_numbers = #tpu.dot_dimension_numbers<[1], [0], [0], [1], [0, 0, 1, 1], [], []>} : vector<8x512xbf16>, vector<512x256xbf16>, vector<8x256xf32> -> vector<8x256xf32>
    %c0_45 = arith.constant 0 : index
    %c0_46 = arith.constant 0 : index
    %54 = vector.load %arg16[%c0_45, %c0_46] : memref<1x256xf32, #tpu.memory_space<vmem>>, vector<1x256xf32>
    %55 = vector.broadcast %54 : vector<1x256xf32> to vector<8x256xf32>
    %56 = arith.addf %53, %55 : vector<8x256xf32>
    %c0_47 = arith.constant 0 : index
    %c0_48 = arith.constant 0 : index
    %57 = vector.load %arg17[%c0_47, %c0_48] : memref<8x256xf32, #tpu.memory_space<vmem>>, vector<8x256xf32>
    tpu.vector_store %arg17[%c0_47, %c0_48], %56 {strides = array<i32>} : memref<8x256xf32, #tpu.memory_space<vmem>>, vector<8x256xf32>,
    return
  }
  func.func @transform_0(%arg0: i32) -> (i32, i32) {
    %c0_i32 = arith.constant 0 : i32
    %c0_i32_0 = arith.constant 0 : i32
    return %arg0, %c0_i32 : i32, i32
  }
  func.func @transform_1(%arg0: i32) -> (i32, i32) {
    %c0_i32 = arith.constant 0 : i32
    %c0_i32_0 = arith.constant 0 : i32
    return %arg0, %c0_i32 : i32, i32
  }
  func.func @transform_2(%arg0: i32) -> (i32, i32) {
    %c0_i32 = arith.constant 0 : i32
    %c0_i32_0 = arith.constant 0 : i32
    %c0_i32_1 = arith.constant 0 : i32
    return %c0_i32, %c0_i32_0 : i32, i32
  }
  func.func @transform_3(%arg0: i32) -> (i32, i32) {
    %c0_i32 = arith.constant 0 : i32
    %c0_i32_0 = arith.constant 0 : i32
    %c0_i32_1 = arith.constant 0 : i32
    return %c0_i32, %c0_i32_0 : i32, i32
  }
  func.func @transform_4(%arg0: i32) -> (i32, i32) {
    %c0_i32 = arith.constant 0 : i32
    %c0_i32_0 = arith.constant 0 : i32
    %c0_i32_1 = arith.constant 0 : i32
    return %c0_i32, %c0_i32_0 : i32, i32
  }
  func.func @transform_5(%arg0: i32) -> (i32, i32) {
    %c0_i32 = arith.constant 0 : i32
    %c0_i32_0 = arith.constant 0 : i32
    %c0_i32_1 = arith.constant 0 : i32
    return %c0_i32, %c0_i32_0 : i32, i32
  }
  func.func @transform_6(%arg0: i32) -> (i32, i32) {
    %c0_i32 = arith.constant 0 : i32
    %c0_i32_0 = arith.constant 0 : i32
    %c0_i32_1 = arith.constant 0 : i32
    return %c0_i32, %c0_i32_0 : i32, i32
  }
  func.func @transform_7(%arg0: i32) -> (i32, i32) {
    %c0_i32 = arith.constant 0 : i32
    %c0_i32_0 = arith.constant 0 : i32
    %c0_i32_1 = arith.constant 0 : i32
    return %c0_i32, %c0_i32_0 : i32, i32
  }
  func.func @transform_8(%arg0: i32) -> (i32, i32) {
    %c0_i32 = arith.constant 0 : i32
    %c0_i32_0 = arith.constant 0 : i32
    %c0_i32_1 = arith.constant 0 : i32
    return %c0_i32, %c0_i32_0 : i32, i32
  }
  func.func @transform_9(%arg0: i32) -> (i32, i32) {
    %c0_i32 = arith.constant 0 : i32
    %c0_i32_0 = arith.constant 0 : i32
    %c0_i32_1 = arith.constant 0 : i32
    return %c0_i32, %c0_i32_0 : i32, i32
  }
  func.func @transform_10(%arg0: i32) -> (i32, i32) {
    %c0_i32 = arith.constant 0 : i32
    %c0_i32_0 = arith.constant 0 : i32
    %c0_i32_1 = arith.constant 0 : i32
    return %c0_i32, %c0_i32_0 : i32, i32
  }
  func.func @transform_11(%arg0: i32) -> (i32, i32) {
    %c0_i32 = arith.constant 0 : i32
    %c0_i32_0 = arith.constant 0 : i32
    %c0_i32_1 = arith.constant 0 : i32
    return %c0_i32, %c0_i32_0 : i32, i32
  }
  func.func @transform_12(%arg0: i32) -> (i32, i32) {
    %c0_i32 = arith.constant 0 : i32
    %c0_i32_0 = arith.constant 0 : i32
    %c0_i32_1 = arith.constant 0 : i32
    return %c0_i32, %c0_i32_0 : i32, i32
  }
  func.func @transform_13(%arg0: i32) -> (i32, i32) {
    %c0_i32 = arith.constant 0 : i32
    %c0_i32_0 = arith.constant 0 : i32
    %c0_i32_1 = arith.constant 0 : i32
    return %c0_i32, %c0_i32_0 : i32, i32
  }
  func.func @transform_14(%arg0: i32) -> (i32, i32) {
    %c0_i32 = arith.constant 0 : i32
    %c0_i32_0 = arith.constant 0 : i32
    %c0_i32_1 = arith.constant 0 : i32
    return %c0_i32, %c0_i32_0 : i32, i32
  }
  func.func @transform_15(%arg0: i32) -> (i32, i32) {
    %c0_i32 = arith.constant 0 : i32
    %c0_i32_0 = arith.constant 0 : i32
    %c0_i32_1 = arith.constant 0 : i32
    return %c0_i32, %c0_i32_0 : i32, i32
  }
  func.func @transform_16(%arg0: i32) -> (i32, i32) {
    %c0_i32 = arith.constant 0 : i32
    %c0_i32_0 = arith.constant 0 : i32
    return %arg0, %c0_i32 : i32, i32
  }
}

</mosaic_0001>

<llo_original>
// kernel: tpu_custom_call.1
$region0: #{tpu_custom_call.1}
  #allocation0 [shape = 'u32[]', space=smem, size = 0x4, offset = 0x4, fixed_abs, tag = 'smem constant byte address 0x4 - core index']
  #allocation1 [shape = 'u32[144,128]{1,0:T(1,128)}', space=vmem, size = 0x12000, scoped, tag = 'internal scratch']
  #allocation2 [shape = 'f32[8,128]{1,0:T(8,128)}', space=vmem, size = 0x1000, scoped, tag = 'scratch operand']
  %s0 = inlined_call_operand.vmem [shape: f32[8,32], index: 0, kind: input, shape index: {}]
  %s1 = inlined_call_operand.vmem [shape: f32[8,64], index: 1, kind: input, shape index: {}]
  %s2 = inlined_call_operand.vmem [shape: bf16[32,256], index: 2, kind: input, shape index: {}]
  %s3 = inlined_call_operand.vmem [shape: f32[1,256], index: 3, kind: input, shape index: {}]
  %s4 = inlined_call_operand.vmem [shape: bf16[256,64], index: 4, kind: input, shape index: {}]
  %s5 = inlined_call_operand.vmem [shape: f32[1,64], index: 5, kind: input, shape index: {}]
  %s6 = inlined_call_operand.hbm [shape: bf16[128,512], index: 6, kind: input, shape index: {}]
  %s7 = inlined_call_operand.vmem [shape: f32[1,512], index: 7, kind: input, shape index: {}]
  %s8 = inlined_call_operand.hbm [shape: bf16[512,1024], index: 8, kind: input, shape index: {}]
  %s9 = inlined_call_operand.vmem [shape: f32[1,1024], index: 9, kind: input, shape index: {}]
  %s10 = inlined_call_operand.hbm [shape: bf16[1024,512], index: 10, kind: input, shape index: {}]
  %s11 = inlined_call_operand.vmem [shape: f32[1,512], index: 11, kind: input, shape index: {}]
  %s12 = inlined_call_operand.hbm [shape: bf16[512,512], index: 12, kind: input, shape index: {}]
  %s13 = inlined_call_operand.vmem [shape: f32[1,512], index: 13, kind: input, shape index: {}]
  %s14 = inlined_call_operand.hbm [shape: bf16[512,256], index: 14, kind: input, shape index: {}]
  %s15 = inlined_call_operand.vmem [shape: f32[1,256], index: 15, kind: input, shape index: {}]
  %s16 = inlined_call_operand.hbm [shape: f32[8,256], index: 16, kind: output, shape index: {}]
  %s17 = sld [smem:[#allocation0]]
  $region94: #{tpu_custom_call.1} parent=0
    _
  %s19 = ssub.s32 1, %s17
  %s20 = scalar_select 0, %s19, %s17
  $region1: #{tpu_custom_call.1} parent=0
    #allocation3 [shape = 'u8[131072]{0}', space=vmem, size = 0x20000, scoped, tag = 'input window, operand 6, single buffered']
    #allocation4 [shape = 's32[1]{0}', space=sflag, size = 0x4, scoped, tag = 'scoped memory for tpu_custom_call.1']
    #allocation5 [shape = 's32[1]{0}', space=sflag, size = 0x4, scoped, tag = 'scoped memory for tpu_custom_call.1']
    #allocation6 [shape = 'u8[1048576]{0}', space=vmem, size = 0x100000, scoped, tag = 'input window, operand 8, single buffered']
    #allocation7 [shape = 's32[1]{0}', space=sflag, size = 0x4, scoped, tag = 'scoped memory for tpu_custom_call.1']
    #allocation8 [shape = 'u8[1048576]{0}', space=vmem, size = 0x100000, scoped, tag = 'input window, operand 10, single buffered']
    #allocation9 [shape = 'u8[524288]{0}', space=vmem, size = 0x80000, scoped, tag = 'input window, operand 12, single buffered']
    #allocation10 [shape = 's32[1]{0}', space=sflag, size = 0x4, scoped, tag = 'scoped memory for tpu_custom_call.1']
    #allocation11 [shape = 'u8[262144]{0}', space=vmem, size = 0x40000, scoped, tag = 'input window, operand 14, single buffered']
    #allocation12 [shape = 'u8[8192]{0}', space=vmem, size = 0x2000, scoped, tag = 'output window, operand 0, single buffered']
    %21 = vsyncpa [#allocation4], 0
    %22 = vsyncpa [#allocation7], 0
    %23 = vsyncpa [#allocation10], 0
    %24 = vsyncpa [#allocation5], 0
    // Predicated region
    $region2: #{tpu_custom_call.1} parent=1 // pred_check
      _
    $region3: #{tpu_custom_call.1} parent=1 // pred_check_branch
      %26 = sbr.rel (0) target = $region5
    $region4: #{tpu_custom_call.1} parent=1 // pred_region
      _
    $region5: #{tpu_custom_call.1} parent=1 // pred_fallthru
      _
    // Predicated region
    $region6: #{tpu_custom_call.1} parent=1 // pred_check
      _
    $region7: #{tpu_custom_call.1} parent=1 // pred_check_branch
      %28 = sbr.rel (0) target = $region9
    $region8: #{tpu_custom_call.1} parent=1 // pred_region
      _
    $region9: #{tpu_custom_call.1} parent=1 // pred_fallthru
      _
    // Predicated region
    $region10: #{tpu_custom_call.1} parent=1 // pred_check
      _
    $region11: #{tpu_custom_call.1} parent=1 // pred_check_branch
      %30 = sbr.rel (0) target = $region13
    $region12: #{tpu_custom_call.1} parent=1 // pred_region
      _
    $region13: #{tpu_custom_call.1} parent=1 // pred_fallthru
      _
    // Predicated region
    $region14: #{tpu_custom_call.1} parent=1 // pred_check
      _
    $region15: #{tpu_custom_call.1} parent=1 // pred_check_branch
      %32 = sbr.rel (0) target = $region17
    $region16: #{tpu_custom_call.1} parent=1 // pred_region
      _
    $region17: #{tpu_custom_call.1} parent=1 // pred_fallthru
      _
    // Predicated region
    $region18: #{tpu_custom_call.1} parent=1 // pred_check
      _
    $region19: #{tpu_custom_call.1} parent=1 // pred_check_branch
      %34 = sbr.rel (0) target = $region21
    $region20: #{tpu_custom_call.1} parent=1 // pred_region
      _
    $region21: #{tpu_custom_call.1} parent=1 // pred_fallthru
      _
    // Predicated region
    $region22: #{tpu_custom_call.1} parent=1 // pred_check
      _
    $region23: #{tpu_custom_call.1} parent=1 // pred_check_branch
      %36 = sbr.rel (0) target = $region25
    $region24: #{tpu_custom_call.1} parent=1 // pred_region
      _
    $region25: #{tpu_custom_call.1} parent=1 // pred_fallthru
      _
    // Predicated region
    $region26: #{tpu_custom_call.1} parent=1 // pred_check
      _
    $region27: #{tpu_custom_call.1} parent=1 // pred_check_branch
      %38 = sbr.rel (0) target = $region29
    $region28: #{tpu_custom_call.1} parent=1 // pred_region
      %s40 = ssub.s32 4096, 4096
      %41 = vsyncadd [#allocation4], %s40
      %s42 = sshll.u32 [#allocation3], 4
      %s43 = int_to_ptr.vmem [resolvable:$true] %s42
      %48 = dma.hbm_to_vmem [thread:$0]  %s6, 4096, %s43, [#allocation4], 256, 256, 16
    $region29: #{tpu_custom_call.1} parent=1 // pred_fallthru
      _
    // Predicated region
    $region30: #{tpu_custom_call.1} parent=1 // pred_check
      _
    $region31: #{tpu_custom_call.1} parent=1 // pred_check_branch
      %50 = sbr.rel (0) target = $region33
    $region32: #{tpu_custom_call.1} parent=1 // pred_region
      _
    $region33: #{tpu_custom_call.1} parent=1 // pred_fallthru
      _
    // Predicated region
    $region34: #{tpu_custom_call.1} parent=1 // pred_check
      _
    $region35: #{tpu_custom_call.1} parent=1 // pred_check_branch
      %52 = sbr.rel (0) target = $region37
    $region36: #{tpu_custom_call.1} parent=1 // pred_region
      %s54 = ssub.s32 32768, 32768
      %55 = vsyncadd [#allocation7], %s54
      %s56 = sshll.u32 [#allocation6], 4
      %s57 = int_to_ptr.vmem [resolvable:$true] %s56
      %62 = dma.hbm_to_vmem [thread:$0]  %s8, 32768, %s57, [#allocation7], 512, 512, 32
    $region37: #{tpu_custom_call.1} parent=1 // pred_fallthru
      _
    // Predicated region
    $region38: #{tpu_custom_call.1} parent=1 // pred_check
      _
    $region39: #{tpu_custom_call.1} parent=1 // pred_check_branch
      %64 = sbr.rel (0) target = $region41
    $region40: #{tpu_custom_call.1} parent=1 // pred_region
      _
    $region41: #{tpu_custom_call.1} parent=1 // pred_fallthru
      _
    // Predicated region
    $region42: #{tpu_custom_call.1} parent=1 // pred_check
      _
    $region43: #{tpu_custom_call.1} parent=1 // pred_check_branch
      %66 = sbr.rel (0) target = $region45
    $region44: #{tpu_custom_call.1} parent=1 // pred_region
      %s68 = ssub.s32 32768, 32768
      %69 = vsyncadd [#allocation7], %s68
      %s70 = sshll.u32 [#allocation8], 4
      %s71 = int_to_ptr.vmem [resolvable:$true] %s70
      %76 = dma.hbm_to_vmem [thread:$0]  %s10, 32768, %s71, [#allocation7], 256, 256, 16
    $region45: #{tpu_custom_call.1} parent=1 // pred_fallthru
      _
    // Predicated region
    $region46: #{tpu_custom_call.1} parent=1 // pred_check
      _
    $region47: #{tpu_custom_call.1} parent=1 // pred_check_branch
      %78 = sbr.rel (0) target = $region49
    $region48: #{tpu_custom_call.1} parent=1 // pred_region
      _
    $region49: #{tpu_custom_call.1} parent=1 // pred_fallthru
      _
    // Predicated region
    $region50: #{tpu_custom_call.1} parent=1 // pred_check
      _
    $region51: #{tpu_custom_call.1} parent=1 // pred_check_branch
      %80 = sbr.rel (0) target = $region53
    $region52: #{tpu_custom_call.1} parent=1 // pred_region
      %s82 = ssub.s32 16384, 16384
      %83 = vsyncadd [#allocation10], %s82
      %s84 = sshll.u32 [#allocation9], 4
      %s85 = int_to_ptr.vmem [resolvable:$true] %s84
      %90 = dma.hbm_to_vmem [thread:$0]  %s12, 16384, %s85, [#allocation10], 256, 256, 16
    $region53: #{tpu_custom_call.1} parent=1 // pred_fallthru
      _
    // Predicated region
    $region54: #{tpu_custom_call.1} parent=1 // pred_check
      _
    $region55: #{tpu_custom_call.1} parent=1 // pred_check_branch
      %92 = sbr.rel (0) target = $region57
    $region56: #{tpu_custom_call.1} parent=1 // pred_region
      _
    $region57: #{tpu_custom_call.1} parent=1 // pred_fallthru
      _
    // Predicated region
    $region58: #{tpu_custom_call.1} parent=1 // pred_check
      _
    $region59: #{tpu_custom_call.1} parent=1 // pred_check_branch
      %94 = sbr.rel (0) target = $region61
    $region60: #{tpu_custom_call.1} parent=1 // pred_region
      %s96 = ssub.s32 8192, 8192
      %97 = vsyncadd [#allocation10], %s96
      %s98 = sshll.u32 [#allocation11], 4
      %s99 = int_to_ptr.vmem [resolvable:$true] %s98
      %104 = dma.hbm_to_vmem [thread:$0]  %s14, 8192, %s99, [#allocation10], 128, 128, 8
    $region61: #{tpu_custom_call.1} parent=1 // pred_fallthru
      _
    // Predicated region
    $region62: #{tpu_custom_call.1} parent=1 // pred_check
      _
    $region63: #{tpu_custom_call.1} parent=1 // pred_check_branch
      %106 = sbr.rel (0) target = $region65
    $region64: #{tpu_custom_call.1} parent=1 // pred_region
      _
    $region65: #{tpu_custom_call.1} parent=1 // pred_fallthru
      _
    // Predicated region
    $region66: #{tpu_custom_call.1} parent=1 // pred_check
      _
    $region67: #{tpu_custom_call.1} parent=1 // pred_check_branch
      %108 = sbr.rel (0) target = $region69
    $region68: #{tpu_custom_call.1} parent=1 // pred_region
      %109 = dma.done [#allocation4], 4096
    $region69: #{tpu_custom_call.1} parent=1 // pred_fallthru
      _
    // Predicated region
    $region70: #{tpu_custom_call.1} parent=1 // pred_check
      _
    $region71: #{tpu_custom_call.1} parent=1 // pred_check_branch
      %111 = sbr.rel (0) target = $region73
    $region72: #{tpu_custom_call.1} parent=1 // pred_region
      %112 = dma.done [#allocation7], 32768
    $region73: #{tpu_custom_call.1} parent=1 // pred_fallthru
      _
    // Predicated region
    $region74: #{tpu_custom_call.1} parent=1 // pred_check
      _
    $region75: #{tpu_custom_call.1} parent=1 // pred_check_branch
      %114 = sbr.rel (0) target = $region77
    $region76: #{tpu_custom_call.1} parent=1 // pred_region
      %115 = dma.done [#allocation7], 32768
    $region77: #{tpu_custom_call.1} parent=1 // pred_fallthru
      _
    // Predicated region
    $region78: #{tpu_custom_call.1} parent=1 // pred_check
      _
    $region79: #{tpu_custom_call.1} parent=1 // pred_check_branch
      %117 = sbr.rel (0) target = $region81
    $region80: #{tpu_custom_call.1} parent=1 // pred_region
      %118 = dma.done [#allocation10], 16384
    $region81: #{tpu_custom_call.1} parent=1 // pred_fallthru
      _
    // Predicated region
    $region82: #{tpu_custom_call.1} parent=1 // pred_check
      _
    $region83: #{tpu_custom_call.1} parent=1 // pred_check_branch
      %120 = sbr.rel (0) target = $region85
    $region84: #{tpu_custom_call.1} parent=1 // pred_region
      %121 = dma.done [#allocation10], 8192
    $region85: #{tpu_custom_call.1} parent=1 // pred_fallthru
      _
    %v123 = vld [vmem:[%s0] sm:$0xff]
    %v124 = vpack.c.bf16 %v123, %v123
    %v125 = vld [vmem:[%s2] sm:$0xff]
    %v126 = vld [vmem:[%s2 + $0x8] sm:$0xff]
    %v127 = vld [vmem:[%s2 + $0x10] sm:$0xff]
    %v128 = vld [vmem:[%s2 + $0x18] sm:$0xff]
    %v129 = vld [vmem:[%s3] sm:$0x3]
    %v131 = vlaneseq
    %v132 = vshrl.u32 %v131, 7
    %v133 = vsub.s32 0, %v132
    %v134 = vrot.slane %v129, %v133
    %v135 = vlaneseq
    %v136 = vshrl.u32 %v135, 7
    %v137 = vsub.s32 1, %v136
    %v138 = vrot.slane %v129, %v137
    %v145 = vunpack.c.l.b16 %v125
    %v146 = vunpack.c.h.b16 %v125
    %v147 = vunpack.c.l.b16 %v126
    %v148 = vunpack.c.h.b16 %v126
    %v149 = vunpack.c.l.b16 %v127
    %v150 = vunpack.c.h.b16 %v127
    %v151 = vunpack.c.l.b16 %v128
    %v152 = vunpack.c.h.b16 %v128
    %v153 = vpack.c.b16 %v147, %v145
    %v154 = vpack.c.b16 %v148, %v146
    %v155 = vpack.c.b16 %v151, %v149
    %v156 = vpack.c.b16 %v152, %v150
    %vm161 = vcmask 261120
    %v163 = vsel %vm161, %v124, 0
    %165 = vmatprep.subr.bf16.mxu0 0
    %166 = vmatpush1.bf16.msra.mxu0 0
    %167 = vmatprep.subr.bf16.mxu0 0
    %168 = vmatpush1.bf16.msra.mxu0 0
    %169 = vmatprep.subr.bf16.mxu0 0
    %170 = vmatpush1.bf16.msra.mxu0 0
    %171 = vmatprep.subr.bf16.mxu0 0
    %172 = vmatpush1.bf16.msra.mxu0 0
    %173 = vmatprep.subr.bf16.mxu0 0
    %174 = vmatpush1.bf16.msra.mxu0 0
    %175 = vmatprep.subr.bf16.mxu0 0
    %176 = vmatpush1.bf16.msra.mxu0 0
    %177 = vmatprep.subr.bf16.mxu0 %v156
    %178 = vmatpush1.bf16.msra.mxu0 %v155
    %179 = vmatprep.subr.bf16.mxu0 %v154
    %180 = vmatpush1.bf16.msra.mxu0 %v153
    %181 = vmatprep.subr.bf16.mxu0 0
    %182 = vmatpush2.bf16.msra.mxu0 0
    %183 = vmatprep.subr.bf16.mxu0 0
    %184 = vmatpush2.bf16.msra.mxu0 0
    %185 = vmatprep.subr.bf16.mxu0 0
    %186 = vmatpush2.bf16.msra.mxu0 0
    %187 = vmatprep.subr.bf16.mxu0 0
    %188 = vmatpush2.bf16.msra.mxu0 0
    %189 = vmatprep.subr.bf16.mxu0 0
    %190 = vmatpush2.bf16.msra.mxu0 0
    %191 = vmatprep.subr.bf16.mxu0 0
    %192 = vmatpush2.bf16.msra.mxu0 0
    %193 = vmatprep.subr.bf16.mxu0 0
    %194 = vmatpush2.bf16.msra.mxu0 0
    %195 = vmatprep.subr.bf16.mxu0 0
    %196 = vmatpush2.bf16.msra.mxu0 0
    %197 = vmatprep.mubr.bf16.mxu0 0
    %198 = vmatmul.mubr.bf16.gmra.mxu0 %v163
    %v199 = vpop.f32.mrf.mxu0
    %v200 = vadd.f32 %v134, %v199
    %v201 = vpop.f32.mrf.mxu0
    %v202 = vadd.f32 %v138, %v201
    %v203 = vpop.f32.mrf.mxu0
    %v204 = vpop.f32.mrf.mxu0
    %205 = vdwg.mxu0
    %v206 = vmax.f32 %v200, 0.0
    %v207 = vmax.f32 %v202, 0.0
    %v208 = vpack.c.bf16 %v206, %v206
    %v209 = vpack.c.bf16 %v207, %v207
    %v210 = vld [vmem:[%s4] sm:$0xf]
    %v211 = vld [vmem:[%s4 + $0x4] sm:$0xf]
    %v212 = vld [vmem:[%s4 + $0x8] sm:$0xf]
    %v213 = vld [vmem:[%s4 + $0xc] sm:$0xf]
    %v214 = vld [vmem:[%s4 + $0x10] sm:$0xf]
    %v215 = vld [vmem:[%s4 + $0x14] sm:$0xf]
    %v216 = vld [vmem:[%s4 + $0x18] sm:$0xf]
    %v217 = vld [vmem:[%s4 + $0x1c] sm:$0xf]
    %v218 = vld [vmem:[%s4 + $0x20] sm:$0xf]
    %v219 = vld [vmem:[%s4 + $0x24] sm:$0xf]
    %v220 = vld [vmem:[%s4 + $0x28] sm:$0xf]
    %v221 = vld [vmem:[%s4 + $0x2c] sm:$0xf]
    %v222 = vld [vmem:[%s4 + $0x30] sm:$0xf]
    %v223 = vld [vmem:[%s4 + $0x34] sm:$0xf]
    %v224 = vld [vmem:[%s4 + $0x38] sm:$0xf]
    %v225 = vld [vmem:[%s4 + $0x3c] sm:$0xf]
    %v226 = vld [vmem:[%s4 + $0x40] sm:$0xf]
    %v227 = vld [vmem:[%s4 + $0x44] sm:$0xf]
    %v228 = vld [vmem:[%s4 + $0x48] sm:$0xf]
    %v229 = vld [vmem:[%s4 + $0x4c] sm:$0xf]
    %v230 = vld [vmem:[%s4 + $0x50] sm:$0xf]
    %v231 = vld [vmem:[%s4 + $0x54] sm:$0xf]
    %v232 = vld [vmem:[%s4 + $0x58] sm:$0xf]
    %v233 = vld [vmem:[%s4 + $0x5c] sm:$0xf]
    %v234 = vld [vmem:[%s4 + $0x60] sm:$0xf]
    %v235 = vld [vmem:[%s4 + $0x64] sm:$0xf]
    %v236 = vld [vmem:[%s4 + $0x68] sm:$0xf]
    %v237 = vld [vmem:[%s4 + $0x6c] sm:$0xf]
    %v238 = vld [vmem:[%s4 + $0x70] sm:$0xf]
    %v239 = vld [vmem:[%s4 + $0x74] sm:$0xf]
    %v240 = vld [vmem:[%s4 + $0x78] sm:$0xf]
    %v241 = vld [vmem:[%s4 + $0x7c] sm:$0xf]
    %v242 = vld [vmem:[%s5] sm:$0x1]
    %v244 = vlaneseq
    %v245 = vshrl.u32 %v244, 7
    %v246 = vsub.s32 0, %v245
    %v247 = vrot.slane %v242, %v246
    %v281 = vunpack.c.l.b16 %v210
    %v282 = vunpack.c.l.b16 %v211
    %v283 = vunpack.c.l.b16 %v212
    %v284 = vunpack.c.l.b16 %v213
    %v285 = vunpack.c.l.b16 %v214
    %v286 = vunpack.c.l.b16 %v215
    %v287 = vunpack.c.l.b16 %v216
    %v288 = vunpack.c.l.b16 %v217
    %v289 = vunpack.c.l.b16 %v218
    %v290 = vunpack.c.l.b16 %v219
    %v291 = vunpack.c.l.b16 %v220
    %v292 = vunpack.c.l.b16 %v221
    %v293 = vunpack.c.l.b16 %v222
    %v294 = vunpack.c.l.b16 %v223
    %v295 = vunpack.c.l.b16 %v224
    %v296 = vunpack.c.l.b16 %v225
    %v297 = vunpack.c.l.b16 %v226
    %v298 = vunpack.c.l.b16 %v227
    %v299 = vunpack.c.l.b16 %v228
    %v300 = vunpack.c.l.b16 %v229
    %v301 = vunpack.c.l.b16 %v230
    %v302 = vunpack.c.l.b16 %v231
    %v303 = vunpack.c.l.b16 %v232
    %v304 = vunpack.c.l.b16 %v233
    %v305 = vunpack.c.l.b16 %v234
    %v306 = vunpack.c.l.b16 %v235
    %v307 = vunpack.c.l.b16 %v236
    %v308 = vunpack.c.l.b16 %v237
    %v309 = vunpack.c.l.b16 %v238
    %v310 = vunpack.c.l.b16 %v239
    %v311 = vunpack.c.l.b16 %v240
    %v312 = vunpack.c.l.b16 %v241
    %v313 = vpack.c.b16 %v282, %v281
    %v314 = vpack.c.b16 %v284, %v283
    %v315 = vpack.c.b16 %v286, %v285
    %v316 = vpack.c.b16 %v288, %v287
    %v317 = vpack.c.b16 %v290, %v289
    %v318 = vpack.c.b16 %v292, %v291
    %v319 = vpack.c.b16 %v294, %v293
    %v320 = vpack.c.b16 %v296, %v295
    %v321 = vpack.c.b16 %v298, %v297
    %v322 = vpack.c.b16 %v300, %v299
    %v323 = vpack.c.b16 %v302, %v301
    %v324 = vpack.c.b16 %v304, %v303
    %v325 = vpack.c.b16 %v306, %v305
    %v326 = vpack.c.b16 %v308, %v307
    %v327 = vpack.c.b16 %v310, %v309
    %v328 = vpack.c.b16 %v312, %v311
    %345 = vmatprep.subr.bf16.mxu0 0
    %346 = vmatpush1.bf16.msra.mxu0 %v320
    %347 = vmatprep.subr.bf16.mxu0 0
    %348 = vmatpush1.bf16.msra.mxu0 %v319
    %349 = vmatprep.subr.bf16.mxu0 0
    %350 = vmatpush1.bf16.msra.mxu0 %v318
    %351 = vmatprep.subr.bf16.mxu0 0
    %352 = vmatpush1.bf16.msra.mxu0 %v317
    %353 = vmatprep.subr.bf16.mxu0 0
    %354 = vmatpush1.bf16.msra.mxu0 %v316
    %355 = vmatprep.subr.bf16.mxu0 0
    %356 = vmatpush1.bf16.msra.mxu0 %v315
    %357 = vmatprep.subr.bf16.mxu0 0
    %358 = vmatpush1.bf16.msra.mxu0 %v314
    %359 = vmatprep.subr.bf16.mxu0 0
    %360 = vmatpush1.bf16.msra.mxu0 %v313
    %361 = vmatprep.subr.bf16.mxu0 0
    %362 = vmatpush2.bf16.msra.mxu0 %v328
    %363 = vmatprep.subr.bf16.mxu0 0
    %364 = vmatpush2.bf16.msra.mxu0 %v327
    %365 = vmatprep.subr.bf16.mxu0 0
    %366 = vmatpush2.bf16.msra.mxu0 %v326
    %367 = vmatprep.subr.bf16.mxu0 0
    %368 = vmatpush2.bf16.msra.mxu0 %v325
    %369 = vmatprep.subr.bf16.mxu0 0
    %370 = vmatpush2.bf16.msra.mxu0 %v324
    %371 = vmatprep.subr.bf16.mxu0 0
    %372 = vmatpush2.bf16.msra.mxu0 %v323
    %373 = vmatprep.subr.bf16.mxu0 0
    %374 = vmatpush2.bf16.msra.mxu0 %v322
    %375 = vmatprep.subr.bf16.mxu0 0
    %376 = vmatpush2.bf16.msra.mxu0 %v321
    %377 = vmatprep.mubr.bf16.mxu0 %v209
    %378 = vmatmul.mubr.bf16.gmra.mxu0 %v208
    %v379 = vpop.f32.mrf.mxu0
    %v380 = vadd.f32 %v247, %v379
    %v381 = vpop.f32.mrf.mxu0
    %v382 = vpop.f32.mrf.mxu0
    %v383 = vpop.f32.mrf.mxu0
    %384 = vdwg.mxu0
    %v385 = vld [vmem:[%s1] sm:$0xff]
    %vm386 = vcmask 523264
    %387 = vst.msk [vmem:[#allocation2] sm:$0xff] %vm386, %v385
    %389 = vrot.lane.b32.xlu0 %v380, 64
    %v390 = vpop.permute.xlu0 %389
    %vm392 = vcmask 1048064
    %393 = vst.msk [vmem:[#allocation2] sm:$0xff] %vm392, %v390
    %v394 = vld [vmem:[#allocation2] sm:$0xff]
    %v395 = vpack.c.bf16 %v394, %v394
    %v396 = vld [vmem:[#allocation3] sm:$0xff]
    %v397 = vld [vmem:[#allocation3 + $0x8] sm:$0xff]
    %v398 = vld [vmem:[#allocation3 + $0x10] sm:$0xff]
    %v399 = vld [vmem:[#allocation3 + $0x18] sm:$0xff]
    %v400 = vld [vmem:[#allocation3 + $0x20] sm:$0xff]
    %v401 = vld [vmem:[#allocation3 + $0x28] sm:$0xff]
    %v402 = vld [vmem:[#allocation3 + $0x30] sm:$0xff]
    %v403 = vld [vmem:[#allocation3 + $0x38] sm:$0xff]
    %v404 = vld [vmem:[#allocation3 + $0x40] sm:$0xff]
    %v405 = vld [vmem:[#allocation3 + $0x48] sm:$0xff]
    %v406 = vld [vmem:[#allocation3 + $0x50] sm:$0xff]
    %v407 = vld [vmem:[#allocation3 + $0x58] sm:$0xff]
    %v408 = vld [vmem:[#allocation3 + $0x60] sm:$0xff]
    %v409 = vld [vmem:[#allocation3 + $0x68] sm:$0xff]
    %v410 = vld [vmem:[#allocation3 + $0x70] sm:$0xff]
    %v411 = vld [vmem:[#allocation3 + $0x78] sm:$0xff]
    %v412 = vld [vmem:[#allocation3 + $0x80] sm:$0xff]
    %v413 = vld [vmem:[#allocation3 + $0x88] sm:$0xff]
    %v414 = vld [vmem:[#allocation3 + $0x90] sm:$0xff]
    %v415 = vld [vmem:[#allocation3 + $0x98] sm:$0xff]
    %v416 = vld [vmem:[#allocation3 + $0xa0] sm:$0xff]
    %v417 = vld [vmem:[#allocation3 + $0xa8] sm:$0xff]
    %v418 = vld [vmem:[#allocation3 + $0xb0] sm:$0xff]
    %v419 = vld [vmem:[#allocation3 + $0xb8] sm:$0xff]
    %v420 = vld [vmem:[#allocation3 + $0xc0] sm:$0xff]
    %v421 = vld [vmem:[#allocation3 + $0xc8] sm:$0xff]
    %v422 = vld [vmem:[#allocation3 + $0xd0] sm:$0xff]
    %v423 = vld [vmem:[#allocation3 + $0xd8] sm:$0xff]
    %v424 = vld [vmem:[#allocation3 + $0xe0] sm:$0xff]
    %v425 = vld [vmem:[#allocation3 + $0xe8] sm:$0xff]
    %v426 = vld [vmem:[#allocation3 + $0xf0] sm:$0xff]
    %v427 = vld [vmem:[#allocation3 + $0xf8] sm:$0xff]
    %v428 = vld [vmem:[%s7] sm:$0xf]
    %v430 = vlaneseq
    %v431 = vshrl.u32 %v430, 7
    %v432 = vsub.s32 0, %v431
    %v433 = vrot.slane %v428, %v432
    %v434 = vlaneseq
    %v435 = vshrl.u32 %v434, 7
    %v436 = vsub.s32 1, %v435
    %v437 = vrot.slane %v428, %v436
    %v438 = vlaneseq
    %v439 = vshrl.u32 %v438, 7
    %v440 = vsub.s32 2, %v439
    %v441 = vrot.slane %v428, %v440
    %v442 = vlaneseq
    %v443 = vshrl.u32 %v442, 7
    %v444 = vsub.s32 3, %v443
    %v445 = vrot.slane %v428, %v444
    %v482 = vunpack.c.l.b16 %v396
    %v483 = vunpack.c.h.b16 %v396
    %v484 = vunpack.c.l.b16 %v397
    %v485 = vunpack.c.h.b16 %v397
    %v486 = vunpack.c.l.b16 %v398
    %v487 = vunpack.c.h.b16 %v398
    %v488 = vunpack.c.l.b16 %v399
    %v489 = vunpack.c.h.b16 %v399
    %v490 = vunpack.c.l.b16 %v400
    %v491 = vunpack.c.h.b16 %v400
    %v492 = vunpack.c.l.b16 %v401
    %v493 = vunpack.c.h.b16 %v401
    %v494 = vunpack.c.l.b16 %v402
    %v495 = vunpack.c.h.b16 %v402
    %v496 = vunpack.c.l.b16 %v403
    %v497 = vunpack.c.h.b16 %v403
    %v498 = vunpack.c.l.b16 %v404
    %v499 = vunpack.c.h.b16 %v404
    %v500 = vunpack.c.l.b16 %v405
    %v501 = vunpack.c.h.b16 %v405
    %v502 = vunpack.c.l.b16 %v406
    %v503 = vunpack.c.h.b16 %v406
    %v504 = vunpack.c.l.b16 %v407
    %v505 = vunpack.c.h.b16 %v407
    %v506 = vunpack.c.l.b16 %v408
    %v507 = vunpack.c.h.b16 %v408
    %v508 = vunpack.c.l.b16 %v409
    %v509 = vunpack.c.h.b16 %v409
    %v510 = vunpack.c.l.b16 %v410
    %v511 = vunpack.c.h.b16 %v410
    %v512 = vunpack.c.l.b16 %v411
    %v513 = vunpack.c.h.b16 %v411
    %v514 = vunpack.c.l.b16 %v412
    %v515 = vunpack.c.h.b16 %v412
    %v516 = vunpack.c.l.b16 %v413
    %v517 = vunpack.c.h.b16 %v413
    %v518 = vunpack.c.l.b16 %v414
    %v519 = vunpack.c.h.b16 %v414
    %v520 = vunpack.c.l.b16 %v415
    %v521 = vunpack.c.h.b16 %v415
    %v522 = vunpack.c.l.b16 %v416
    %v523 = vunpack.c.h.b16 %v416
    %v524 = vunpack.c.l.b16 %v417
    %v525 = vunpack.c.h.b16 %v417
    %v526 = vunpack.c.l.b16 %v418
    %v527 = vunpack.c.h.b16 %v418
    %v528 = vunpack.c.l.b16 %v419
    %v529 = vunpack.c.h.b16 %v419
    %v530 = vunpack.c.l.b16 %v420
    %v531 = vunpack.c.h.b16 %v420
    %v532 = vunpack.c.l.b16 %v421
    %v533 = vunpack.c.h.b16 %v421
    %v534 = vunpack.c.l.b16 %v422
    %v535 = vunpack.c.h.b16 %v422
    %v536 = vunpack.c.l.b16 %v423
    %v537 = vunpack.c.h.b16 %v423
    %v538 = vunpack.c.l.b16 %v424
    %v539 = vunpack.c.h.b16 %v424
    %v540 = vunpack.c.l.b16 %v425
    %v541 = vunpack.c.h.b16 %v425
    %v542 = vunpack.c.l.b16 %v426
    %v543 = vunpack.c.h.b16 %v426
    %v544 = vunpack.c.l.b16 %v427
    %v545 = vunpack.c.h.b16 %v427
    %v546 = vpack.c.b16 %v486, %v482
    %v547 = vpack.c.b16 %v487, %v483
    %v548 = vpack.c.b16 %v488, %v484
    %v549 = vpack.c.b16 %v489, %v485
    %v550 = vpack.c.b16 %v494, %v490
    %v551 = vpack.c.b16 %v495, %v491
    %v552 = vpack.c.b16 %v496, %v492
    %v553 = vpack.c.b16 %v497, %v493
    %v554 = vpack.c.b16 %v502, %v498
    %v555 = vpack.c.b16 %v503, %v499
    %v556 = vpack.c.b16 %v504, %v500
    %v557 = vpack.c.b16 %v505, %v501
    %v558 = vpack.c.b16 %v510, %v506
    %v559 = vpack.c.b16 %v511, %v507
    %v560 = vpack.c.b16 %v512, %v508
    %v561 = vpack.c.b16 %v513, %v509
    %v562 = vpack.c.b16 %v518, %v514
    %v563 = vpack.c.b16 %v519, %v515
    %v564 = vpack.c.b16 %v520, %v516
    %v565 = vpack.c.b16 %v521, %v517
    %v566 = vpack.c.b16 %v526, %v522
    %v567 = vpack.c.b16 %v527, %v523
    %v568 = vpack.c.b16 %v528, %v524
    %v569 = vpack.c.b16 %v529, %v525
    %v570 = vpack.c.b16 %v534, %v530
    %v571 = vpack.c.b16 %v535, %v531
    %v572 = vpack.c.b16 %v536, %v532
    %v573 = vpack.c.b16 %v537, %v533
    %v574 = vpack.c.b16 %v542, %v538
    %v575 = vpack.c.b16 %v543, %v539
    %v576 = vpack.c.b16 %v544, %v540
    %v577 = vpack.c.b16 %v545, %v541
    %610 = vmatprep.subr.bf16.mxu0 %v575
    %611 = vmatpush1.bf16.msra.mxu0 %v574
    %612 = vmatprep.subr.bf16.mxu0 %v571
    %613 = vmatpush1.bf16.msra.mxu0 %v570
    %614 = vmatprep.subr.bf16.mxu0 %v567
    %615 = vmatpush1.bf16.msra.mxu0 %v566
    %616 = vmatprep.subr.bf16.mxu0 %v563
    %617 = vmatpush1.bf16.msra.mxu0 %v562
    %618 = vmatprep.subr.bf16.mxu0 %v559
    %619 = vmatpush1.bf16.msra.mxu0 %v558
    %620 = vmatprep.subr.bf16.mxu0 %v555
    %621 = vmatpush1.bf16.msra.mxu0 %v554
    %622 = vmatprep.subr.bf16.mxu0 %v551
    %623 = vmatpush1.bf16.msra.mxu0 %v550
    %624 = vmatprep.subr.bf16.mxu0 %v547
    %625 = vmatpush1.bf16.msra.mxu0 %v546
    %626 = vmatprep.subr.bf16.mxu0 0
    %627 = vmatpush2.bf16.msra.mxu0 0
    %628 = vmatprep.subr.bf16.mxu0 0
    %629 = vmatpush2.bf16.msra.mxu0 0
    %630 = vmatprep.subr.bf16.mxu0 0
    %631 = vmatpush2.bf16.msra.mxu0 0
    %632 = vmatprep.subr.bf16.mxu0 0
    %633 = vmatpush2.bf16.msra.mxu0 0
    %634 = vmatprep.subr.bf16.mxu0 0
    %635 = vmatpush2.bf16.msra.mxu0 0
    %636 = vmatprep.subr.bf16.mxu0 0
    %637 = vmatpush2.bf16.msra.mxu0 0
    %638 = vmatprep.subr.bf16.mxu0 0
    %639 = vmatpush2.bf16.msra.mxu0 0
    %640 = vmatprep.subr.bf16.mxu0 0
    %641 = vmatpush2.bf16.msra.mxu0 0
    %642 = vmatprep.mubr.bf16.mxu0 0
    %643 = vmatmul.mubr.bf16.gmra.mxu0 %v395
    %v644 = vpop.f32.mrf.mxu0
    %v645 = vadd.f32 %v433, %v644
    %v646 = vpop.f32.mrf.mxu0
    %v647 = vadd.f32 %v437, %v646
    %v648 = vpop.f32.mrf.mxu0
    %v649 = vpop.f32.mrf.mxu0
    %650 = vdwg.mxu0
    %651 = vmatprep.subr.bf16.mxu0 %v577
    %652 = vmatpush1.bf16.msra.mxu0 %v576
    %653 = vmatprep.subr.bf16.mxu0 %v573
    %654 = vmatpush1.bf16.msra.mxu0 %v572
    %655 = vmatprep.subr.bf16.mxu0 %v569
    %656 = vmatpush1.bf16.msra.mxu0 %v568
    %657 = vmatprep.subr.bf16.mxu0 %v565
    %658 = vmatpush1.bf16.msra.mxu0 %v564
    %659 = vmatprep.subr.bf16.mxu0 %v561
    %660 = vmatpush1.bf16.msra.mxu0 %v560
    %661 = vmatprep.subr.bf16.mxu0 %v557
    %662 = vmatpush1.bf16.msra.mxu0 %v556
    %663 = vmatprep.subr.bf16.mxu0 %v553
    %664 = vmatpush1.bf16.msra.mxu0 %v552
    %665 = vmatprep.subr.bf16.mxu0 %v549
    %666 = vmatpush1.bf16.msra.mxu0 %v548
    %667 = vmatprep.subr.bf16.mxu0 0
    %668 = vmatpush2.bf16.msra.mxu0 0
    %669 = vmatprep.subr.bf16.mxu0 0
    %670 = vmatpush2.bf16.msra.mxu0 0
    %671 = vmatprep.subr.bf16.mxu0 0
    %672 = vmatpush2.bf16.msra.mxu0 0
    %673 = vmatprep.subr.bf16.mxu0 0
    %674 = vmatpush2.bf16.msra.mxu0 0
    %675 = vmatprep.subr.bf16.mxu0 0
    %676 = vmatpush2.bf16.msra.mxu0 0
    %677 = vmatprep.subr.bf16.mxu0 0
    %678 = vmatpush2.bf16.msra.mxu0 0
    %679 = vmatprep.subr.bf16.mxu0 0
    %680 = vmatpush2.bf16.msra.mxu0 0
    %681 = vmatprep.subr.bf16.mxu0 0
    %682 = vmatpush2.bf16.msra.mxu0 0
    %683 = vmatprep.mubr.bf16.mxu0 0
    %684 = vmatmul.mubr.bf16.gmra.mxu0 %v395
    %v685 = vpop.f32.mrf.mxu0
    %v686 = vadd.f32 %v441, %v685
    %v687 = vpop.f32.mrf.mxu0
    %v688 = vadd.f32 %v445, %v687
    %v689 = vpop.f32.mrf.mxu0
    %v690 = vpop.f32.mrf.mxu0
    %691 = vdwg.mxu0
    %v692 = vmax.f32 %v645, 0.0
    %v693 = vmax.f32 %v647, 0.0
    %v694 = vmax.f32 %v686, 0.0
    %v695 = vmax.f32 %v688, 0.0
    %v696 = vpack.c.bf16 %v692, %v692
    %v697 = vpack.c.bf16 %v693, %v693
    %v698 = vpack.c.bf16 %v694, %v694
    %v699 = vpack.c.bf16 %v695, %v695
    %v700 = vld [vmem:[#allocation6] sm:$0xff]
    %v701 = vld [vmem:[#allocation6 + $0x8] sm:$0xff]
    %v702 = vld [vmem:[#allocation6 + $0x10] sm:$0xff]
    %v703 = vld [vmem:[#allocation6 + $0x18] sm:$0xff]
    %v704 = vld [vmem:[#allocation6 + $0x20] sm:$0xff]
    %v705 = vld [vmem:[#allocation6 + $0x28] sm:$0xff]
    %v706 = vld [vmem:[#allocation6 + $0x30] sm:$0xff]
    %v707 = vld [vmem:[#allocation6 + $0x38] sm:$0xff]
    %v708 = vld [vmem:[#allocation6 + $0x40] sm:$0xff]
    %v709 = vld [vmem:[#allocation6 + $0x48] sm:$0xff]
    %v710 = vld [vmem:[#allocation6 + $0x50] sm:$0xff]
    %v711 = vld [vmem:[#allocation6 + $0x58] sm:$0xff]
    %v712 = vld [vmem:[#allocation6 + $0x60] sm:$0xff]
    %v713 = vld [vmem:[#allocation6 + $0x68] sm:$0xff]
    %v714 = vld [vmem:[#allocation6 + $0x70] sm:$0xff]
    %v715 = vld [vmem:[#allocation6 + $0x78] sm:$0xff]
    %v716 = vld [vmem:[#allocation6 + $0x80] sm:$0xff]
    %v717 = vld [vmem:[#allocation6 + $0x88] sm:$0xff]
    %v718 = vld [vmem:[#allocation6 + $0x90] sm:$0xff]
    %v719 = vld [vmem:[#allocation6 + $0x98] sm:$0xff]
    %v720 = vld [vmem:[#allocation6 + $0xa0] sm:$0xff]
    %v721 = vld [vmem:[#allocation6 + $0xa8] sm:$0xff]
    %v722 = vld [vmem:[#allocation6 + $0xb0] sm:$0xff]
    %v723 = vld [vmem:[#allocation6 + $0xb8] sm:$0xff]
    %v724 = vld [vmem:[#allocation6 + $0xc0] sm:$0xff]
    %v725 = vld [vmem:[#allocation6 + $0xc8] sm:$0xff]
    %v726 = vld [vmem:[#allocation6 + $0xd0] sm:$0xff]
    %v727 = vld [vmem:[#allocation6 + $0xd8] sm:$0xff]
    %v728 = vld [vmem:[#allocation6 + $0xe0] sm:$0xff]
    %v729 = vld [vmem:[#allocation6 + $0xe8] sm:$0xff]
    %v730 = vld [vmem:[#allocation6 + $0xf0] sm:$0xff]
    %v731 = vld [vmem:[#allocation6 + $0xf8] sm:$0xff]
    %v732 = vld [vmem:[#allocation6 + $0x100] sm:$0xff]
    %v733 = vld [vmem:[#allocation6 + $0x108] sm:$0xff]
    %v734 = vld [vmem:[#allocation6 + $0x110] sm:$0xff]
    %v735 = vld [vmem:[#allocation6 + $0x118] sm:$0xff]
    %v736 = vld [vmem:[#allocation6 + $0x120] sm:$0xff]
    %v737 = vld [vmem:[#allocation6 + $0x128] sm:$0xff]
    %v738 = vld [vmem:[#allocation6 + $0x130] sm:$0xff]
    %v739 = vld [vmem:[#allocation6 + $0x138] sm:$0xff]
    %v740 = vld [vmem:[#allocation6 + $0x140] sm:$0xff]
    %v741 = vld [vmem:[#allocation6 + $0x148] sm:$0xff]
    %v742 = vld [vmem:[#allocation6 + $0x150] sm:$0xff]
    %v743 = vld [vmem:[#allocation6 + $0x158] sm:$0xff]
    %v744 = vld [vmem:[#allocation6 + $0x160] sm:$0xff]
    %v745 = vld [vmem:[#allocation6 + $0x168] sm:$0xff]
    %v746 = vld [vmem:[#allocation6 + $0x170] sm:$0xff]
    %v747 = vld [vmem:[#allocation6 + $0x178] sm:$0xff]
    %v748 = vld [vmem:[#allocation6 + $0x180] sm:$0xff]
    %v749 = vld [vmem:[#allocation6 + $0x188] sm:$0xff]
    %v750 = vld [vmem:[#allocation6 + $0x190] sm:$0xff]
    %v751 = vld [vmem:[#allocation6 + $0x198] sm:$0xff]
    %v752 = vld [vmem:[#allocation6 + $0x1a0] sm:$0xff]
    %v753 = vld [vmem:[#allocation6 + $0x1a8] sm:$0xff]
    %v754 = vld [vmem:[#allocation6 + $0x1b0] sm:$0xff]
    %v755 = vld [vmem:[#allocation6 + $0x1b8] sm:$0xff]
    %v756 = vld [vmem:[#allocation6 + $0x1c0] sm:$0xff]
    %v757 = vld [vmem:[#allocation6 + $0x1c8] sm:$0xff]
    %v758 = vld [vmem:[#allocation6 + $0x1d0] sm:$0xff]
    %v759 = vld [vmem:[#allocation6 + $0x1d8] sm:$0xff]
    %v760 = vld [vmem:[#allocation6 + $0x1e0] sm:$0xff]
    %v761 = vld [vmem:[#allocation6 + $0x1e8] sm:$0xff]
    %v762 = vld [vmem:[#allocation6 + $0x1f0] sm:$0xff]
    %v763 = vld [vmem:[#allocation6 + $0x1f8] sm:$0xff]
    %v764 = vld [vmem:[#allocation6 + $0x200] sm:$0xff]
    %v765 = vld [vmem:[#allocation6 + $0x208] sm:$0xff]
    %v766 = vld [vmem:[#allocation6 + $0x210] sm:$0xff]
    %v767 = vld [vmem:[#allocation6 + $0x218] sm:$0xff]
    %v768 = vld [vmem:[#allocation6 + $0x220] sm:$0xff]
    %v769 = vld [vmem:[#allocation6 + $0x228] sm:$0xff]
    %v770 = vld [vmem:[#allocation6 + $0x230] sm:$0xff]
    %v771 = vld [vmem:[#allocation6 + $0x238] sm:$0xff]
    %v772 = vld [vmem:[#allocation6 + $0x240] sm:$0xff]
    %v773 = vld [vmem:[#allocation6 + $0x248] sm:$0xff]
    %v774 = vld [vmem:[#allocation6 + $0x250] sm:$0xff]
    %v775 = vld [vmem:[#allocation6 + $0x258] sm:$0xff]
    %v776 = vld [vmem:[#allocation6 + $0x260] sm:$0xff]
    %v777 = vld [vmem:[#allocation6 + $0x268] sm:$0xff]
    %v778 = vld [vmem:[#allocation6 + $0x270] sm:$0xff]
    %v779 = vld [vmem:[#allocation6 + $0x278] sm:$0xff]
    %v780 = vld [vmem:[#allocation6 + $0x280] sm:$0xff]
    %v781 = vld [vmem:[#allocation6 + $0x288] sm:$0xff]
    %v782 = vld [vmem:[#allocation6 + $0x290] sm:$0xff]
    %v783 = vld [vmem:[#allocation6 + $0x298] sm:$0xff]
    %v784 = vld [vmem:[#allocation6 + $0x2a0] sm:$0xff]
    %v785 = vld [vmem:[#allocation6 + $0x2a8] sm:$0xff]
    %v786 = vld [vmem:[#allocation6 + $0x2b0] sm:$0xff]
    %v787 = vld [vmem:[#allocation6 + $0x2b8] sm:$0xff]
    %v788 = vld [vmem:[#allocation6 + $0x2c0] sm:$0xff]
    %v789 = vld [vmem:[#allocation6 + $0x2c8] sm:$0xff]
    %v790 = vld [vmem:[#allocation6 + $0x2d0] sm:$0xff]
    %v791 = vld [vmem:[#allocation6 + $0x2d8] sm:$0xff]
    %v792 = vld [vmem:[#allocation6 + $0x2e0] sm:$0xff]
    %v793 = vld [vmem:[#allocation6 + $0x2e8] sm:$0xff]
    %v794 = vld [vmem:[#allocation6 + $0x2f0] sm:$0xff]
    %v795 = vld [vmem:[#allocation6 + $0x2f8] sm:$0xff]
    %v796 = vld [vmem:[#allocation6 + $0x300] sm:$0xff]
    %v797 = vld [vmem:[#allocation6 + $0x308] sm:$0xff]
    %v798 = vld [vmem:[#allocation6 + $0x310] sm:$0xff]
    %v799 = vld [vmem:[#allocation6 + $0x318] sm:$0xff]
    %v800 = vld [vmem:[#allocation6 + $0x320] sm:$0xff]
    %v801 = vld [vmem:[#allocation6 + $0x328] sm:$0xff]
    %v802 = vld [vmem:[#allocation6 + $0x330] sm:$0xff]
    %v803 = vld [vmem:[#allocation6 + $0x338] sm:$0xff]
    %v804 = vld [vmem:[#allocation6 + $0x340] sm:$0xff]
    %v805 = vld [vmem:[#allocation6 + $0x348] sm:$0xff]
    %v806 = vld [vmem:[#allocation6 + $0x350] sm:$0xff]
    %v807 = vld [vmem:[#allocation6 + $0x358] sm:$0xff]
    %v808 = vld [vmem:[#allocation6 + $0x360] sm:$0xff]
    %v809 = vld [vmem:[#allocation6 + $0x368] sm:$0xff]
    %v810 = vld [vmem:[#allocation6 + $0x370] sm:$0xff]
    %v811 = vld [vmem:[#allocation6 + $0x378] sm:$0xff]
    %v812 = vld [vmem:[#allocation6 + $0x380] sm:$0xff]
    %v813 = vld [vmem:[#allocation6 + $0x388] sm:$0xff]
    %v814 = vld [vmem:[#allocation6 + $0x390] sm:$0xff]
    %v815 = vld [vmem:[#allocation6 + $0x398] sm:$0xff]
    %v816 = vld [vmem:[#allocation6 + $0x3a0] sm:$0xff]
    %v817 = vld [vmem:[#allocation6 + $0x3a8] sm:$0xff]
    %v818 = vld [vmem:[#allocation6 + $0x3b0] sm:$0xff]
    %v819 = vld [vmem:[#allocation6 + $0x3b8] sm:$0xff]
    %v820 = vld [vmem:[#allocation6 + $0x3c0] sm:$0xff]
    %v821 = vld [vmem:[#allocation6 + $0x3c8] sm:$0xff]
    %v822 = vld [vmem:[#allocation6 + $0x3d0] sm:$0xff]
    %v823 = vld [vmem:[#allocation6 + $0x3d8] sm:$0xff]
    %v824 = vld [vmem:[#allocation6 + $0x3e0] sm:$0xff]
    %v825 = vld [vmem:[#allocation6 + $0x3e8] sm:$0xff]
    %v826 = vld [vmem:[#allocation6 + $0x3f0] sm:$0xff]
    %v827 = vld [vmem:[#allocation6 + $0x3f8] sm:$0xff]
    %v828 = vld [vmem:[#allocation6 + $0x400] sm:$0xff]
    %v829 = vld [vmem:[#allocation6 + $0x408] sm:$0xff]
    %v830 = vld [vmem:[#allocation6 + $0x410] sm:$0xff]
    %v831 = vld [vmem:[#allocation6 + $0x418] sm:$0xff]
    %v832 = vld [vmem:[#allocation6 + $0x420] sm:$0xff]
    %v833 = vld [vmem:[#allocation6 + $0x428] sm:$0xff]
    %v834 = vld [vmem:[#allocation6 + $0x430] sm:$0xff]
    %v835 = vld [vmem:[#allocation6 + $0x438] sm:$0xff]
    %v836 = vld [vmem:[#allocation6 + $0x440] sm:$0xff]
    %v837 = vld [vmem:[#allocation6 + $0x448] sm:$0xff]
    %v838 = vld [vmem:[#allocation6 + $0x450] sm:$0xff]
    %v839 = vld [vmem:[#allocation6 + $0x458] sm:$0xff]
    %v840 = vld [vmem:[#allocation6 + $0x460] sm:$0xff]
    %v841 = vld [vmem:[#allocation6 + $0x468] sm:$0xff]
    %v842 = vld [vmem:[#allocation6 + $0x470] sm:$0xff]
    %v843 = vld [vmem:[#allocation6 + $0x478] sm:$0xff]
    %v844 = vld [vmem:[#allocation6 + $0x480] sm:$0xff]
    %v845 = vld [vmem:[#allocation6 + $0x488] sm:$0xff]
    %v846 = vld [vmem:[#allocation6 + $0x490] sm:$0xff]
    %v847 = vld [vmem:[#allocation6 + $0x498] sm:$0xff]
    %v848 = vld [vmem:[#allocation6 + $0x4a0] sm:$0xff]
    %v849 = vld [vmem:[#allocation6 + $0x4a8] sm:$0xff]
    %v850 = vld [vmem:[#allocation6 + $0x4b0] sm:$0xff]
    %v851 = vld [vmem:[#allocation6 + $0x4b8] sm:$0xff]
    %v852 = vld [vmem:[#allocation6 + $0x4c0] sm:$0xff]
    %v853 = vld [vmem:[#allocation6 + $0x4c8] sm:$0xff]
    %v854 = vld [vmem:[#allocation6 + $0x4d0] sm:$0xff]
    %v855 = vld [vmem:[#allocation6 + $0x4d8] sm:$0xff]
    %v856 = vld [vmem:[#allocation6 + $0x4e0] sm:$0xff]
    %v857 = vld [vmem:[#allocation6 + $0x4e8] sm:$0xff]
    %v858 = vld [vmem:[#allocation6 + $0x4f0] sm:$0xff]
    %v859 = vld [vmem:[#allocation6 + $0x4f8] sm:$0xff]
    %v860 = vld [vmem:[#allocation6 + $0x500] sm:$0xff]
    %v861 = vld [vmem:[#allocation6 + $0x508] sm:$0xff]
    %v862 = vld [vmem:[#allocation6 + $0x510] sm:$0xff]
    %v863 = vld [vmem:[#allocation6 + $0x518] sm:$0xff]
    %v864 = vld [vmem:[#allocation6 + $0x520] sm:$0xff]
    %v865 = vld [vmem:[#allocation6 + $0x528] sm:$0xff]
    %v866 = vld [vmem:[#allocation6 + $0x530] sm:$0xff]
    %v867 = vld [vmem:[#allocation6 + $0x538] sm:$0xff]
    %v868 = vld [vmem:[#allocation6 + $0x540] sm:$0xff]
    %v869 = vld [vmem:[#allocation6 + $0x548] sm:$0xff]
    %v870 = vld [vmem:[#allocation6 + $0x550] sm:$0xff]
    %v871 = vld [vmem:[#allocation6 + $0x558] sm:$0xff]
    %v872 = vld [vmem:[#allocation6 + $0x560] sm:$0xff]
    %v873 = vld [vmem:[#allocation6 + $0x568] sm:$0xff]
    %v874 = vld [vmem:[#allocation6 + $0x570] sm:$0xff]
    %v875 = vld [vmem:[#allocation6 + $0x578] sm:$0xff]
    %v876 = vld [vmem:[#allocation6 + $0x580] sm:$0xff]
    %v877 = vld [vmem:[#allocation6 + $0x588] sm:$0xff]
    %v878 = vld [vmem:[#allocation6 + $0x590] sm:$0xff]
    %v879 = vld [vmem:[#allocation6 + $0x598] sm:$0xff]
    %v880 = vld [vmem:[#allocation6 + $0x5a0] sm:$0xff]
    %v881 = vld [vmem:[#allocation6 + $0x5a8] sm:$0xff]
    %v882 = vld [vmem:[#allocation6 + $0x5b0] sm:$0xff]
    %v883 = vld [vmem:[#allocation6 + $0x5b8] sm:$0xff]
    %v884 = vld [vmem:[#allocation6 + $0x5c0] sm:$0xff]
    %v885 = vld [vmem:[#allocation6 + $0x5c8] sm:$0xff]
    %v886 = vld [vmem:[#allocation6 + $0x5d0] sm:$0xff]
    %v887 = vld [vmem:[#allocation6 + $0x5d8] sm:$0xff]
    %v888 = vld [vmem:[#allocation6 + $0x5e0] sm:$0xff]
    %v889 = vld [vmem:[#allocation6 + $0x5e8] sm:$0xff]
    %v890 = vld [vmem:[#allocation6 + $0x5f0] sm:$0xff]
    %v891 = vld [vmem:[#allocation6 + $0x5f8] sm:$0xff]
    %v892 = vld [vmem:[#allocation6 + $0x600] sm:$0xff]
    %v893 = vld [vmem:[#allocation6 + $0x608] sm:$0xff]
    %v894 = vld [vmem:[#allocation6 + $0x610] sm:$0xff]
    %v895 = vld [vmem:[#allocation6 + $0x618] sm:$0xff]
    %v896 = vld [vmem:[#allocation6 + $0x620] sm:$0xff]
    %v897 = vld [vmem:[#allocation6 + $0x628] sm:$0xff]
    %v898 = vld [vmem:[#allocation6 + $0x630] sm:$0xff]
    %v899 = vld [vmem:[#allocation6 + $0x638] sm:$0xff]
    %v900 = vld [vmem:[#allocation6 + $0x640] sm:$0xff]
    %v901 = vld [vmem:[#allocation6 + $0x648] sm:$0xff]
    %v902 = vld [vmem:[#allocation6 + $0x650] sm:$0xff]
    %v903 = vld [vmem:[#allocation6 + $0x658] sm:$0xff]
    %v904 = vld [vmem:[#allocation6 + $0x660] sm:$0xff]
    %v905 = vld [vmem:[#allocation6 + $0x668] sm:$0xff]
    %v906 = vld [vmem:[#allocation6 + $0x670] sm:$0xff]
    %v907 = vld [vmem:[#allocation6 + $0x678] sm:$0xff]
    %v908 = vld [vmem:[#allocation6 + $0x680] sm:$0xff]
    %v909 = vld [vmem:[#allocation6 + $0x688] sm:$0xff]
    %v910 = vld [vmem:[#allocation6 + $0x690] sm:$0xff]
    %v911 = vld [vmem:[#allocation6 + $0x698] sm:$0xff]
    %v912 = vld [vmem:[#allocation6 + $0x6a0] sm:$0xff]
    %v913 = vld [vmem:[#allocation6 + $0x6a8] sm:$0xff]
    %v914 = vld [vmem:[#allocation6 + $0x6b0] sm:$0xff]
    %v915 = vld [vmem:[#allocation6 + $0x6b8] sm:$0xff]
    %v916 = vld [vmem:[#allocation6 + $0x6c0] sm:$0xff]
    %v917 = vld [vmem:[#allocation6 + $0x6c8] sm:$0xff]
    %v918 = vld [vmem:[#allocation6 + $0x6d0] sm:$0xff]
    %v919 = vld [vmem:[#allocation6 + $0x6d8] sm:$0xff]
    %v920 = vld [vmem:[#allocation6 + $0x6e0] sm:$0xff]
    %v921 = vld [vmem:[#allocation6 + $0x6e8] sm:$0xff]
    %v922 = vld [vmem:[#allocation6 + $0x6f0] sm:$0xff]
    %v923 = vld [vmem:[#allocation6 + $0x6f8] sm:$0xff]
    %v924 = vld [vmem:[#allocation6 + $0x700] sm:$0xff]
    %v925 = vld [vmem:[#allocation6 + $0x708] sm:$0xff]
    %v926 = vld [vmem:[#allocation6 + $0x710] sm:$0xff]
    %v927 = vld [vmem:[#allocation6 + $0x718] sm:$0xff]
    %v928 = vld [vmem:[#allocation6 + $0x720] sm:$0xff]
    %v929 = vld [vmem:[#allocation6 + $0x728] sm:$0xff]
    %v930 = vld [vmem:[#allocation6 + $0x730] sm:$0xff]
    %v931 = vld [vmem:[#allocation6 + $0x738] sm:$0xff]
    %v932 = vld [vmem:[#allocation6 + $0x740] sm:$0xff]
    %v933 = vld [vmem:[#allocation6 + $0x748] sm:$0xff]
    %v934 = vld [vmem:[#allocation6 + $0x750] sm:$0xff]
    %v935 = vld [vmem:[#allocation6 + $0x758] sm:$0xff]
    %v936 = vld [vmem:[#allocation6 + $0x760] sm:$0xff]
    %v937 = vld [vmem:[#allocation6 + $0x768] sm:$0xff]
    %v938 = vld [vmem:[#allocation6 + $0x770] sm:$0xff]
    %v939 = vld [vmem:[#allocation6 + $0x778] sm:$0xff]
    %v940 = vld [vmem:[#allocation6 + $0x780] sm:$0xff]
    %v941 = vld [vmem:[#allocation6 + $0x788] sm:$0xff]
    %v942 = vld [vmem:[#allocation6 + $0x790] sm:$0xff]
    %v943 = vld [vmem:[#allocation6 + $0x798] sm:$0xff]
    %v944 = vld [vmem:[#allocation6 + $0x7a0] sm:$0xff]
    %v945 = vld [vmem:[#allocation6 + $0x7a8] sm:$0xff]
    %v946 = vld [vmem:[#allocation6 + $0x7b0] sm:$0xff]
    %v947 = vld [vmem:[#allocation6 + $0x7b8] sm:$0xff]
    %v948 = vld [vmem:[#allocation6 + $0x7c0] sm:$0xff]
    %v949 = vld [vmem:[#allocation6 + $0x7c8] sm:$0xff]
    %v950 = vld [vmem:[#allocation6 + $0x7d0] sm:$0xff]
    %v951 = vld [vmem:[#allocation6 + $0x7d8] sm:$0xff]
    %v952 = vld [vmem:[#allocation6 + $0x7e0] sm:$0xff]
    %v953 = vld [vmem:[#allocation6 + $0x7e8] sm:$0xff]
    %v954 = vld [vmem:[#allocation6 + $0x7f0] sm:$0xff]
    %v955 = vld [vmem:[#allocation6 + $0x7f8] sm:$0xff]
    %v956 = vld [vmem:[%s9] sm:$0xff]
    %v958 = vlaneseq
    %v959 = vshrl.u32 %v958, 7
    %v960 = vsub.s32 0, %v959
    %v961 = vrot.slane %v956, %v960
    %v962 = vlaneseq
    %v963 = vshrl.u32 %v962, 7
    %v964 = vsub.s32 1, %v963
    %v965 = vrot.slane %v956, %v964
    %v966 = vlaneseq
    %v967 = vshrl.u32 %v966, 7
    %v968 = vsub.s32 2, %v967
    %v969 = vrot.slane %v956, %v968
    %v970 = vlaneseq
    %v971 = vshrl.u32 %v970, 7
    %v972 = vsub.s32 3, %v971
    %v973 = vrot.slane %v956, %v972
    %v974 = vlaneseq
    %v975 = vshrl.u32 %v974, 7
    %v976 = vsub.s32 4, %v975
    %v977 = vrot.slane %v956, %v976
    %v978 = vlaneseq
    %v979 = vshrl.u32 %v978, 7
    %v980 = vsub.s32 5, %v979
    %v981 = vrot.slane %v956, %v980
    %v982 = vlaneseq
    %v983 = vshrl.u32 %v982, 7
    %v984 = vsub.s32 6, %v983
    %v985 = vrot.slane %v956, %v984
    %v986 = vlaneseq
    %v987 = vshrl.u32 %v986, 7
    %v988 = vsub.s32 7, %v987
    %v989 = vrot.slane %v956, %v988
    %v1254 = vunpack.c.l.b16 %v700
    %v1255 = vunpack.c.h.b16 %v700
    %v1256 = vunpack.c.l.b16 %v701
    %v1257 = vunpack.c.h.b16 %v701
    %v1258 = vunpack.c.l.b16 %v702
    %v1259 = vunpack.c.h.b16 %v702
    %v1260 = vunpack.c.l.b16 %v703
    %v1261 = vunpack.c.h.b16 %v703
    %v1262 = vunpack.c.l.b16 %v704
    %v1263 = vunpack.c.h.b16 %v704
    %v1264 = vunpack.c.l.b16 %v705
    %v1265 = vunpack.c.h.b16 %v705
    %v1266 = vunpack.c.l.b16 %v706
    %v1267 = vunpack.c.h.b16 %v706
    %v1268 = vunpack.c.l.b16 %v707
    %v1269 = vunpack.c.h.b16 %v707
    %v1270 = vunpack.c.l.b16 %v708
    %v1271 = vunpack.c.h.b16 %v708
    %v1272 = vunpack.c.l.b16 %v709
    %v1273 = vunpack.c.h.b16 %v709
    %v1274 = vunpack.c.l.b16 %v710
    %v1275 = vunpack.c.h.b16 %v710
    %v1276 = vunpack.c.l.b16 %v711
    %v1277 = vunpack.c.h.b16 %v711
    %v1278 = vunpack.c.l.b16 %v712
    %v1279 = vunpack.c.h.b16 %v712
    %v1280 = vunpack.c.l.b16 %v713
    %v1281 = vunpack.c.h.b16 %v713
    %v1282 = vunpack.c.l.b16 %v714
    %v1283 = vunpack.c.h.b16 %v714
    %v1284 = vunpack.c.l.b16 %v715
    %v1285 = vunpack.c.h.b16 %v715
    %v1286 = vunpack.c.l.b16 %v716
    %v1287 = vunpack.c.h.b16 %v716
    %v1288 = vunpack.c.l.b16 %v717
    %v1289 = vunpack.c.h.b16 %v717
    %v1290 = vunpack.c.l.b16 %v718
    %v1291 = vunpack.c.h.b16 %v718
    %v1292 = vunpack.c.l.b16 %v719
    %v1293 = vunpack.c.h.b16 %v719
    %v1294 = vunpack.c.l.b16 %v720
    %v1295 = vunpack.c.h.b16 %v720
    %v1296 = vunpack.c.l.b16 %v721
    %v1297 = vunpack.c.h.b16 %v721
    %v1298 = vunpack.c.l.b16 %v722
    %v1299 = vunpack.c.h.b16 %v722
    %v1300 = vunpack.c.l.b16 %v723
    %v1301 = vunpack.c.h.b16 %v723
    %v1302 = vunpack.c.l.b16 %v724
    %v1303 = vunpack.c.h.b16 %v724
    %v1304 = vunpack.c.l.b16 %v725
    %v1305 = vunpack.c.h.b16 %v725
    %v1306 = vunpack.c.l.b16 %v726
    %v1307 = vunpack.c.h.b16 %v726
    %v1308 = vunpack.c.l.b16 %v727
    %v1309 = vunpack.c.h.b16 %v727
    %v1310 = vunpack.c.l.b16 %v728
    %v1311 = vunpack.c.h.b16 %v728
    %v1312 = vunpack.c.l.b16 %v729
    %v1313 = vunpack.c.h.b16 %v729
    %v1314 = vunpack.c.l.b16 %v730
    %v1315 = vunpack.c.h.b16 %v730
    %v1316 = vunpack.c.l.b16 %v731
    %v1317 = vunpack.c.h.b16 %v731
    %v1318 = vunpack.c.l.b16 %v732
    %v1319 = vunpack.c.h.b16 %v732
    %v1320 = vunpack.c.l.b16 %v733
    %v1321 = vunpack.c.h.b16 %v733
    %v1322 = vunpack.c.l.b16 %v734
    %v1323 = vunpack.c.h.b16 %v734
    %v1324 = vunpack.c.l.b16 %v735
    %v1325 = vunpack.c.h.b16 %v735
    %v1326 = vunpack.c.l.b16 %v736
    %v1327 = vunpack.c.h.b16 %v736
    %v1328 = vunpack.c.l.b16 %v737
    %v1329 = vunpack.c.h.b16 %v737
    %v1330 = vunpack.c.l.b16 %v738
    %v1331 = vunpack.c.h.b16 %v738
    %v1332 = vunpack.c.l.b16 %v739
    %v1333 = vunpack.c.h.b16 %v739
    %v1334 = vunpack.c.l.b16 %v740
    %v1335 = vunpack.c.h.b16 %v740
    %v1336 = vunpack.c.l.b16 %v741
    %v1337 = vunpack.c.h.b16 %v741
    %v1338 = vunpack.c.l.b16 %v742
    %v1339 = vunpack.c.h.b16 %v742
    %v1340 = vunpack.c.l.b16 %v743
    %v1341 = vunpack.c.h.b16 %v743
    %v1342 = vunpack.c.l.b16 %v744
    %v1343 = vunpack.c.h.b16 %v744
    %v1344 = vunpack.c.l.b16 %v745
    %v1345 = vunpack.c.h.b16 %v745
    %v1346 = vunpack.c.l.b16 %v746
    %v1347 = vunpack.c.h.b16 %v746
    %v1348 = vunpack.c.l.b16 %v747
    %v1349 = vunpack.c.h.b16 %v747
    %v1350 = vunpack.c.l.b16 %v748
    %v1351 = vunpack.c.h.b16 %v748
    %v1352 = vunpack.c.l.b16 %v749
    %v1353 = vunpack.c.h.b16 %v749
    %v1354 = vunpack.c.l.b16 %v750
    %v1355 = vunpack.c.h.b16 %v750
    %v1356 = vunpack.c.l.b16 %v751
    %v1357 = vunpack.c.h.b16 %v751
    %v1358 = vunpack.c.l.b16 %v752
    %v1359 = vunpack.c.h.b16 %v752
    %v1360 = vunpack.c.l.b16 %v753
    %v1361 = vunpack.c.h.b16 %v753
    %v1362 = vunpack.c.l.b16 %v754
    %v1363 = vunpack.c.h.b16 %v754
    %v1364 = vunpack.c.l.b16 %v755
    %v1365 = vunpack.c.h.b16 %v755
    %v1366 = vunpack.c.l.b16 %v756
    %v1367 = vunpack.c.h.b16 %v756
    %v1368 = vunpack.c.l.b16 %v757
    %v1369 = vunpack.c.h.b16 %v757
    %v1370 = vunpack.c.l.b16 %v758
    %v1371 = vunpack.c.h.b16 %v758
    %v1372 = vunpack.c.l.b16 %v759
    %v1373 = vunpack.c.h.b16 %v759
    %v1374 = vunpack.c.l.b16 %v760
    %v1375 = vunpack.c.h.b16 %v760
    %v1376 = vunpack.c.l.b16 %v761
    %v1377 = vunpack.c.h.b16 %v761
    %v1378 = vunpack.c.l.b16 %v762
    %v1379 = vunpack.c.h.b16 %v762
    %v1380 = vunpack.c.l.b16 %v763
    %v1381 = vunpack.c.h.b16 %v763
    %v1382 = vunpack.c.l.b16 %v764
    %v1383 = vunpack.c.h.b16 %v764
    %v1384 = vunpack.c.l.b16 %v765
    %v1385 = vunpack.c.h.b16 %v765
    %v1386 = vunpack.c.l.b16 %v766
    %v1387 = vunpack.c.h.b16 %v766
    %v1388 = vunpack.c.l.b16 %v767
    %v1389 = vunpack.c.h.b16 %v767
    %v1390 = vunpack.c.l.b16 %v768
    %v1391 = vunpack.c.h.b16 %v768
    %v1392 = vunpack.c.l.b16 %v769
    %v1393 = vunpack.c.h.b16 %v769
    %v1394 = vunpack.c.l.b16 %v770
    %v1395 = vunpack.c.h.b16 %v770
    %v1396 = vunpack.c.l.b16 %v771
    %v1397 = vunpack.c.h.b16 %v771
    %v1398 = vunpack.c.l.b16 %v772
    %v1399 = vunpack.c.h.b16 %v772
    %v1400 = vunpack.c.l.b16 %v773
    %v1401 = vunpack.c.h.b16 %v773
    %v1402 = vunpack.c.l.b16 %v774
    %v1403 = vunpack.c.h.b16 %v774
    %v1404 = vunpack.c.l.b16 %v775
    %v1405 = vunpack.c.h.b16 %v775
    %v1406 = vunpack.c.l.b16 %v776
    %v1407 = vunpack.c.h.b16 %v776
    %v1408 = vunpack.c.l.b16 %v777
    %v1409 = vunpack.c.h.b16 %v777
    %v1410 = vunpack.c.l.b16 %v778
    %v1411 = vunpack.c.h.b16 %v778
    %v1412 = vunpack.c.l.b16 %v779
    %v1413 = vunpack.c.h.b16 %v779
    %v1414 = vunpack.c.l.b16 %v780
    %v1415 = vunpack.c.h.b16 %v780
    %v1416 = vunpack.c.l.b16 %v781
    %v1417 = vunpack.c.h.b16 %v781
    %v1418 = vunpack.c.l.b16 %v782
    %v1419 = vunpack.c.h.b16 %v782
    %v1420 = vunpack.c.l.b16 %v783
    %v1421 = vunpack.c.h.b16 %v783
    %v1422 = vunpack.c.l.b16 %v784
    %v1423 = vunpack.c.h.b16 %v784
    %v1424 = vunpack.c.l.b16 %v785
    %v1425 = vunpack.c.h.b16 %v785
    %v1426 = vunpack.c.l.b16 %v786
    %v1427 = vunpack.c.h.b16 %v786
    %v1428 = vunpack.c.l.b16 %v787
    %v1429 = vunpack.c.h.b16 %v787
    %v1430 = vunpack.c.l.b16 %v788
    %v1431 = vunpack.c.h.b16 %v788
    %v1432 = vunpack.c.l.b16 %v789
    %v1433 = vunpack.c.h.b16 %v789
    %v1434 = vunpack.c.l.b16 %v790
    %v1435 = vunpack.c.h.b16 %v790
    %v1436 = vunpack.c.l.b16 %v791
    %v1437 = vunpack.c.h.b16 %v791
    %v1438 = vunpack.c.l.b16 %v792
    %v1439 = vunpack.c.h.b16 %v792
    %v1440 = vunpack.c.l.b16 %v793
    %v1441 = vunpack.c.h.b16 %v793
    %v1442 = vunpack.c.l.b16 %v794
    %v1443 = vunpack.c.h.b16 %v794
    %v1444 = vunpack.c.l.b16 %v795
    %v1445 = vunpack.c.h.b16 %v795
    %v1446 = vunpack.c.l.b16 %v796
    %v1447 = vunpack.c.h.b16 %v796
    %v1448 = vunpack.c.l.b16 %v797
    %v1449 = vunpack.c.h.b16 %v797
    %v1450 = vunpack.c.l.b16 %v798
    %v1451 = vunpack.c.h.b16 %v798
    %v1452 = vunpack.c.l.b16 %v799
    %v1453 = vunpack.c.h.b16 %v799
    %v1454 = vunpack.c.l.b16 %v800
    %v1455 = vunpack.c.h.b16 %v800
    %v1456 = vunpack.c.l.b16 %v801
    %v1457 = vunpack.c.h.b16 %v801
    %v1458 = vunpack.c.l.b16 %v802
    %v1459 = vunpack.c.h.b16 %v802
    %v1460 = vunpack.c.l.b16 %v803
    %v1461 = vunpack.c.h.b16 %v803
    %v1462 = vunpack.c.l.b16 %v804
    %v1463 = vunpack.c.h.b16 %v804
    %v1464 = vunpack.c.l.b16 %v805
    %v1465 = vunpack.c.h.b16 %v805
    %v1466 = vunpack.c.l.b16 %v806
    %v1467 = vunpack.c.h.b16 %v806
    %v1468 = vunpack.c.l.b16 %v807
    %v1469 = vunpack.c.h.b16 %v807
    %v1470 = vunpack.c.l.b16 %v808
    %v1471 = vunpack.c.h.b16 %v808
    %v1472 = vunpack.c.l.b16 %v809
    %v1473 = vunpack.c.h.b16 %v809
    %v1474 = vunpack.c.l.b16 %v810
    %v1475 = vunpack.c.h.b16 %v810
    %v1476 = vunpack.c.l.b16 %v811
    %v1477 = vunpack.c.h.b16 %v811
    %v1478 = vunpack.c.l.b16 %v812
    %v1479 = vunpack.c.h.b16 %v812
    %v1480 = vunpack.c.l.b16 %v813
    %v1481 = vunpack.c.h.b16 %v813
    %v1482 = vunpack.c.l.b16 %v814
    %v1483 = vunpack.c.h.b16 %v814
    %v1484 = vunpack.c.l.b16 %v815
    %v1485 = vunpack.c.h.b16 %v815
    %v1486 = vunpack.c.l.b16 %v816
    %v1487 = vunpack.c.h.b16 %v816
    %v1488 = vunpack.c.l.b16 %v817
    %v1489 = vunpack.c.h.b16 %v817
    %v1490 = vunpack.c.l.b16 %v818
    %v1491 = vunpack.c.h.b16 %v818
    %v1492 = vunpack.c.l.b16 %v819
    %v1493 = vunpack.c.h.b16 %v819
    %v1494 = vunpack.c.l.b16 %v820
    %v1495 = vunpack.c.h.b16 %v820
    %v1496 = vunpack.c.l.b16 %v821
    %v1497 = vunpack.c.h.b16 %v821
    %v1498 = vunpack.c.l.b16 %v822
    %v1499 = vunpack.c.h.b16 %v822
    %v1500 = vunpack.c.l.b16 %v823
    %v1501 = vunpack.c.h.b16 %v823
    %v1502 = vunpack.c.l.b16 %v824
    %v1503 = vunpack.c.h.b16 %v824
    %v1504 = vunpack.c.l.b16 %v825
    %v1505 = vunpack.c.h.b16 %v825
    %v1506 = vunpack.c.l.b16 %v826
    %v1507 = vunpack.c.h.b16 %v826
    %v1508 = vunpack.c.l.b16 %v827
    %v1509 = vunpack.c.h.b16 %v827
    %v1510 = vunpack.c.l.b16 %v828
    %v1511 = vunpack.c.h.b16 %v828
    %v1512 = vunpack.c.l.b16 %v829
    %v1513 = vunpack.c.h.b16 %v829
    %v1514 = vunpack.c.l.b16 %v830
    %v1515 = vunpack.c.h.b16 %v830
    %v1516 = vunpack.c.l.b16 %v831
    %v1517 = vunpack.c.h.b16 %v831
    %v1518 = vunpack.c.l.b16 %v832
    %v1519 = vunpack.c.h.b16 %v832
    %v1520 = vunpack.c.l.b16 %v833
    %v1521 = vunpack.c.h.b16 %v833
    %v1522 = vunpack.c.l.b16 %v834
    %v1523 = vunpack.c.h.b16 %v834
    %v1524 = vunpack.c.l.b16 %v835
    %v1525 = vunpack.c.h.b16 %v835
    %v1526 = vunpack.c.l.b16 %v836
    %v1527 = vunpack.c.h.b16 %v836
    %v1528 = vunpack.c.l.b16 %v837
    %v1529 = vunpack.c.h.b16 %v837
    %v1530 = vunpack.c.l.b16 %v838
    %v1531 = vunpack.c.h.b16 %v838
    %v1532 = vunpack.c.l.b16 %v839
    %v1533 = vunpack.c.h.b16 %v839
    %v1534 = vunpack.c.l.b16 %v840
    %v1535 = vunpack.c.h.b16 %v840
    %v1536 = vunpack.c.l.b16 %v841
    %v1537 = vunpack.c.h.b16 %v841
    %v1538 = vunpack.c.l.b16 %v842
    %v1539 = vunpack.c.h.b16 %v842
    %v1540 = vunpack.c.l.b16 %v843
    %v1541 = vunpack.c.h.b16 %v843
    %v1542 = vunpack.c.l.b16 %v844
    %v1543 = vunpack.c.h.b16 %v844
    %v1544 = vunpack.c.l.b16 %v845
    %v1545 = vunpack.c.h.b16 %v845
    %v1546 = vunpack.c.l.b16 %v846
    %v1547 = vunpack.c.h.b16 %v846
    %v1548 = vunpack.c.l.b16 %v847
    %v1549 = vunpack.c.h.b16 %v847
    %v1550 = vunpack.c.l.b16 %v848
    %v1551 = vunpack.c.h.b16 %v848
    %v1552 = vunpack.c.l.b16 %v849
    %v1553 = vunpack.c.h.b16 %v849
    %v1554 = vunpack.c.l.b16 %v850
    %v1555 = vunpack.c.h.b16 %v850
    %v1556 = vunpack.c.l.b16 %v851
    %v1557 = vunpack.c.h.b16 %v851
    %v1558 = vunpack.c.l.b16 %v852
    %v1559 = vunpack.c.h.b16 %v852
    %v1560 = vunpack.c.l.b16 %v853
    %v1561 = vunpack.c.h.b16 %v853
    %v1562 = vunpack.c.l.b16 %v854
    %v1563 = vunpack.c.h.b16 %v854
    %v1564 = vunpack.c.l.b16 %v855
    %v1565 = vunpack.c.h.b16 %v855
    %v1566 = vunpack.c.l.b16 %v856
    %v1567 = vunpack.c.h.b16 %v856
    %v1568 = vunpack.c.l.b16 %v857
    %v1569 = vunpack.c.h.b16 %v857
    %v1570 = vunpack.c.l.b16 %v858
    %v1571 = vunpack.c.h.b16 %v858
    %v1572 = vunpack.c.l.b16 %v859
    %v1573 = vunpack.c.h.b16 %v859
    %v1574 = vunpack.c.l.b16 %v860
    %v1575 = vunpack.c.h.b16 %v860
    %v1576 = vunpack.c.l.b16 %v861
    %v1577 = vunpack.c.h.b16 %v861
    %v1578 = vunpack.c.l.b16 %v862
    %v1579 = vunpack.c.h.b16 %v862
    %v1580 = vunpack.c.l.b16 %v863
    %v1581 = vunpack.c.h.b16 %v863
    %v1582 = vunpack.c.l.b16 %v864
    %v1583 = vunpack.c.h.b16 %v864
    %v1584 = vunpack.c.l.b16 %v865
    %v1585 = vunpack.c.h.b16 %v865
    %v1586 = vunpack.c.l.b16 %v866
    %v1587 = vunpack.c.h.b16 %v866
    %v1588 = vunpack.c.l.b16 %v867
    %v1589 = vunpack.c.h.b16 %v867
    %v1590 = vunpack.c.l.b16 %v868
    %v1591 = vunpack.c.h.b16 %v868
    %v1592 = vunpack.c.l.b16 %v869
    %v1593 = vunpack.c.h.b16 %v869
    %v1594 = vunpack.c.l.b16 %v870
    %v1595 = vunpack.c.h.b16 %v870
    %v1596 = vunpack.c.l.b16 %v871
    %v1597 = vunpack.c.h.b16 %v871
    %v1598 = vunpack.c.l.b16 %v872
    %v1599 = vunpack.c.h.b16 %v872
    %v1600 = vunpack.c.l.b16 %v873
    %v1601 = vunpack.c.h.b16 %v873
    %v1602 = vunpack.c.l.b16 %v874
    %v1603 = vunpack.c.h.b16 %v874
    %v1604 = vunpack.c.l.b16 %v875
    %v1605 = vunpack.c.h.b16 %v875
    %v1606 = vunpack.c.l.b16 %v876
    %v1607 = vunpack.c.h.b16 %v876
    %v1608 = vunpack.c.l.b16 %v877
    %v1609 = vunpack.c.h.b16 %v877
    %v1610 = vunpack.c.l.b16 %v878
    %v1611 = vunpack.c.h.b16 %v878
    %v1612 = vunpack.c.l.b16 %v879
    %v1613 = vunpack.c.h.b16 %v879
    %v1614 = vunpack.c.l.b16 %v880
    %v1615 = vunpack.c.h.b16 %v880
    %v1616 = vunpack.c.l.b16 %v881
    %v1617 = vunpack.c.h.b16 %v881
    %v1618 = vunpack.c.l.b16 %v882
    %v1619 = vunpack.c.h.b16 %v882
    %v1620 = vunpack.c.l.b16 %v883
    %v1621 = vunpack.c.h.b16 %v883
    %v1622 = vunpack.c.l.b16 %v884
    %v1623 = vunpack.c.h.b16 %v884
    %v1624 = vunpack.c.l.b16 %v885
    %v1625 = vunpack.c.h.b16 %v885
    %v1626 = vunpack.c.l.b16 %v886
    %v1627 = vunpack.c.h.b16 %v886
    %v1628 = vunpack.c.l.b16 %v887
    %v1629 = vunpack.c.h.b16 %v887
    %v1630 = vunpack.c.l.b16 %v888
    %v1631 = vunpack.c.h.b16 %v888
    %v1632 = vunpack.c.l.b16 %v889
    %v1633 = vunpack.c.h.b16 %v889
    %v1634 = vunpack.c.l.b16 %v890
    %v1635 = vunpack.c.h.b16 %v890
    %v1636 = vunpack.c.l.b16 %v891
    %v1637 = vunpack.c.h.b16 %v891
    %v1638 = vunpack.c.l.b16 %v892
    %v1639 = vunpack.c.h.b16 %v892
    %v1640 = vunpack.c.l.b16 %v893
    %v1641 = vunpack.c.h.b16 %v893
    %v1642 = vunpack.c.l.b16 %v894
    %v1643 = vunpack.c.h.b16 %v894
    %v1644 = vunpack.c.l.b16 %v895
    %v1645 = vunpack.c.h.b16 %v895
    %v1646 = vunpack.c.l.b16 %v896
    %v1647 = vunpack.c.h.b16 %v896
    %v1648 = vunpack.c.l.b16 %v897
    %v1649 = vunpack.c.h.b16 %v897
    %v1650 = vunpack.c.l.b16 %v898
    %v1651 = vunpack.c.h.b16 %v898
    %v1652 = vunpack.c.l.b16 %v899
    %v1653 = vunpack.c.h.b16 %v899
    %v1654 = vunpack.c.l.b16 %v900
    %v1655 = vunpack.c.h.b16 %v900
    %v1656 = vunpack.c.l.b16 %v901
    %v1657 = vunpack.c.h.b16 %v901
    %v1658 = vunpack.c.l.b16 %v902
    %v1659 = vunpack.c.h.b16 %v902
    %v1660 = vunpack.c.l.b16 %v903
    %v1661 = vunpack.c.h.b16 %v903
    %v1662 = vunpack.c.l.b16 %v904
    %v1663 = vunpack.c.h.b16 %v904
    %v1664 = vunpack.c.l.b16 %v905
    %v1665 = vunpack.c.h.b16 %v905
    %v1666 = vunpack.c.l.b16 %v906
    %v1667 = vunpack.c.h.b16 %v906
    %v1668 = vunpack.c.l.b16 %v907
    %v1669 = vunpack.c.h.b16 %v907
    %v1670 = vunpack.c.l.b16 %v908
    %v1671 = vunpack.c.h.b16 %v908
    %v1672 = vunpack.c.l.b16 %v909
    %v1673 = vunpack.c.h.b16 %v909
    %v1674 = vunpack.c.l.b16 %v910
    %v1675 = vunpack.c.h.b16 %v910
    %v1676 = vunpack.c.l.b16 %v911
    %v1677 = vunpack.c.h.b16 %v911
    %v1678 = vunpack.c.l.b16 %v912
    %v1679 = vunpack.c.h.b16 %v912
    %v1680 = vunpack.c.l.b16 %v913
    %v1681 = vunpack.c.h.b16 %v913
    %v1682 = vunpack.c.l.b16 %v914
    %v1683 = vunpack.c.h.b16 %v914
    %v1684 = vunpack.c.l.b16 %v915
    %v1685 = vunpack.c.h.b16 %v915
    %v1686 = vunpack.c.l.b16 %v916
    %v1687 = vunpack.c.h.b16 %v916
    %v1688 = vunpack.c.l.b16 %v917
    %v1689 = vunpack.c.h.b16 %v917
    %v1690 = vunpack.c.l.b16 %v918
    %v1691 = vunpack.c.h.b16 %v918
    %v1692 = vunpack.c.l.b16 %v919
    %v1693 = vunpack.c.h.b16 %v919
    %v1694 = vunpack.c.l.b16 %v920
    %v1695 = vunpack.c.h.b16 %v920
    %v1696 = vunpack.c.l.b16 %v921
    %v1697 = vunpack.c.h.b16 %v921
    %v1698 = vunpack.c.l.b16 %v922
    %v1699 = vunpack.c.h.b16 %v922
    %v1700 = vunpack.c.l.b16 %v923
    %v1701 = vunpack.c.h.b16 %v923
    %v1702 = vunpack.c.l.b16 %v924
    %v1703 = vunpack.c.h.b16 %v924
    %v1704 = vunpack.c.l.b16 %v925
    %v1705 = vunpack.c.h.b16 %v925
    %v1706 = vunpack.c.l.b16 %v926
    %v1707 = vunpack.c.h.b16 %v926
    %v1708 = vunpack.c.l.b16 %v927
    %v1709 = vunpack.c.h.b16 %v927
    %v1710 = vunpack.c.l.b16 %v928
    %v1711 = vunpack.c.h.b16 %v928
    %v1712 = vunpack.c.l.b16 %v929
    %v1713 = vunpack.c.h.b16 %v929
    %v1714 = vunpack.c.l.b16 %v930
    %v1715 = vunpack.c.h.b16 %v930
    %v1716 = vunpack.c.l.b16 %v931
    %v1717 = vunpack.c.h.b16 %v931
    %v1718 = vunpack.c.l.b16 %v932
    %v1719 = vunpack.c.h.b16 %v932
    %v1720 = vunpack.c.l.b16 %v933
    %v1721 = vunpack.c.h.b16 %v933
    %v1722 = vunpack.c.l.b16 %v934
    %v1723 = vunpack.c.h.b16 %v934
    %v1724 = vunpack.c.l.b16 %v935
    %v1725 = vunpack.c.h.b16 %v935
    %v1726 = vunpack.c.l.b16 %v936
    %v1727 = vunpack.c.h.b16 %v936
    %v1728 = vunpack.c.l.b16 %v937
    %v1729 = vunpack.c.h.b16 %v937
    %v1730 = vunpack.c.l.b16 %v938
    %v1731 = vunpack.c.h.b16 %v938
    %v1732 = vunpack.c.l.b16 %v939
    %v1733 = vunpack.c.h.b16 %v939
    %v1734 = vunpack.c.l.b16 %v940
    %v1735 = vunpack.c.h.b16 %v940
    %v1736 = vunpack.c.l.b16 %v941
    %v1737 = vunpack.c.h.b16 %v941
    %v1738 = vunpack.c.l.b16 %v942
    %v1739 = vunpack.c.h.b16 %v942
    %v1740 = vunpack.c.l.b16 %v943
    %v1741 = vunpack.c.h.b16 %v943
    %v1742 = vunpack.c.l.b16 %v944
    %v1743 = vunpack.c.h.b16 %v944
    %v1744 = vunpack.c.l.b16 %v945
    %v1745 = vunpack.c.h.b16 %v945
    %v1746 = vunpack.c.l.b16 %v946
    %v1747 = vunpack.c.h.b16 %v946
    %v1748 = vunpack.c.l.b16 %v947
    %v1749 = vunpack.c.h.b16 %v947
    %v1750 = vunpack.c.l.b16 %v948
    %v1751 = vunpack.c.h.b16 %v948
    %v1752 = vunpack.c.l.b16 %v949
    %v1753 = vunpack.c.h.b16 %v949
    %v1754 = vunpack.c.l.b16 %v950
    %v1755 = vunpack.c.h.b16 %v950
    %v1756 = vunpack.c.l.b16 %v951
    %v1757 = vunpack.c.h.b16 %v951
    %v1758 = vunpack.c.l.b16 %v952
    %v1759 = vunpack.c.h.b16 %v952
    %v1760 = vunpack.c.l.b16 %v953
    %v1761 = vunpack.c.h.b16 %v953
    %v1762 = vunpack.c.l.b16 %v954
    %v1763 = vunpack.c.h.b16 %v954
    %v1764 = vunpack.c.l.b16 %v955
    %v1765 = vunpack.c.h.b16 %v955
    %v1766 = vpack.c.b16 %v1262, %v1254
    %v1767 = vpack.c.b16 %v1263, %v1255
    %v1768 = vpack.c.b16 %v1264, %v1256
    %v1769 = vpack.c.b16 %v1265, %v1257
    %v1770 = vpack.c.b16 %v1266, %v1258
    %v1771 = vpack.c.b16 %v1267, %v1259
    %v1772 = vpack.c.b16 %v1268, %v1260
    %v1773 = vpack.c.b16 %v1269, %v1261
    %v1774 = vpack.c.b16 %v1278, %v1270
    %v1775 = vpack.c.b16 %v1279, %v1271
    %v1776 = vpack.c.b16 %v1280, %v1272
    %v1777 = vpack.c.b16 %v1281, %v1273
    %v1778 = vpack.c.b16 %v1282, %v1274
    %v1779 = vpack.c.b16 %v1283, %v1275
    %v1780 = vpack.c.b16 %v1284, %v1276
    %v1781 = vpack.c.b16 %v1285, %v1277
    %v1782 = vpack.c.b16 %v1294, %v1286
    %v1783 = vpack.c.b16 %v1295, %v1287
    %v1784 = vpack.c.b16 %v1296, %v1288
    %v1785 = vpack.c.b16 %v1297, %v1289
    %v1786 = vpack.c.b16 %v1298, %v1290
    %v1787 = vpack.c.b16 %v1299, %v1291
    %v1788 = vpack.c.b16 %v1300, %v1292
    %v1789 = vpack.c.b16 %v1301, %v1293
    %v1790 = vpack.c.b16 %v1310, %v1302
    %v1791 = vpack.c.b16 %v1311, %v1303
    %v1792 = vpack.c.b16 %v1312, %v1304
    %v1793 = vpack.c.b16 %v1313, %v1305
    %v1794 = vpack.c.b16 %v1314, %v1306
    %v1795 = vpack.c.b16 %v1315, %v1307
    %v1796 = vpack.c.b16 %v1316, %v1308
    %v1797 = vpack.c.b16 %v1317, %v1309
    %v1798 = vpack.c.b16 %v1326, %v1318
    %v1799 = vpack.c.b16 %v1327, %v1319
    %v1800 = vpack.c.b16 %v1328, %v1320
    %v1801 = vpack.c.b16 %v1329, %v1321
    %v1802 = vpack.c.b16 %v1330, %v1322
    %v1803 = vpack.c.b16 %v1331, %v1323
    %v1804 = vpack.c.b16 %v1332, %v1324
    %v1805 = vpack.c.b16 %v1333, %v1325
    %v1806 = vpack.c.b16 %v1342, %v1334
    %v1807 = vpack.c.b16 %v1343, %v1335
    %v1808 = vpack.c.b16 %v1344, %v1336
    %v1809 = vpack.c.b16 %v1345, %v1337
    %v1810 = vpack.c.b16 %v1346, %v1338
    %v1811 = vpack.c.b16 %v1347, %v1339
    %v1812 = vpack.c.b16 %v1348, %v1340
    %v1813 = vpack.c.b16 %v1349, %v1341
    %v1814 = vpack.c.b16 %v1358, %v1350
    %v1815 = vpack.c.b16 %v1359, %v1351
    %v1816 = vpack.c.b16 %v1360, %v1352
    %v1817 = vpack.c.b16 %v1361, %v1353
    %v1818 = vpack.c.b16 %v1362, %v1354
    %v1819 = vpack.c.b16 %v1363, %v1355
    %v1820 = vpack.c.b16 %v1364, %v1356
    %v1821 = vpack.c.b16 %v1365, %v1357
    %v1822 = vpack.c.b16 %v1374, %v1366
    %v1823 = vpack.c.b16 %v1375, %v1367
    %v1824 = vpack.c.b16 %v1376, %v1368
    %v1825 = vpack.c.b16 %v1377, %v1369
    %v1826 = vpack.c.b16 %v1378, %v1370
    %v1827 = vpack.c.b16 %v1379, %v1371
    %v1828 = vpack.c.b16 %v1380, %v1372
    %v1829 = vpack.c.b16 %v1381, %v1373
    %v1830 = vpack.c.b16 %v1390, %v1382
    %v1831 = vpack.c.b16 %v1391, %v1383
    %v1832 = vpack.c.b16 %v1392, %v1384
    %v1833 = vpack.c.b16 %v1393, %v1385
    %v1834 = vpack.c.b16 %v1394, %v1386
    %v1835 = vpack.c.b16 %v1395, %v1387
    %v1836 = vpack.c.b16 %v1396, %v1388
    %v1837 = vpack.c.b16 %v1397, %v1389
    %v1838 = vpack.c.b16 %v1406, %v1398
    %v1839 = vpack.c.b16 %v1407, %v1399
    %v1840 = vpack.c.b16 %v1408, %v1400
    %v1841 = vpack.c.b16 %v1409, %v1401
    %v1842 = vpack.c.b16 %v1410, %v1402
    %v1843 = vpack.c.b16 %v1411, %v1403
    %v1844 = vpack.c.b16 %v1412, %v1404
    %v1845 = vpack.c.b16 %v1413, %v1405
    %v1846 = vpack.c.b16 %v1422, %v1414
    %v1847 = vpack.c.b16 %v1423, %v1415
    %v1848 = vpack.c.b16 %v1424, %v1416
    %v1849 = vpack.c.b16 %v1425, %v1417
    %v1850 = vpack.c.b16 %v1426, %v1418
    %v1851 = vpack.c.b16 %v1427, %v1419
    %v1852 = vpack.c.b16 %v1428, %v1420
    %v1853 = vpack.c.b16 %v1429, %v1421
    %v1854 = vpack.c.b16 %v1438, %v1430
    %v1855 = vpack.c.b16 %v1439, %v1431
    %v1856 = vpack.c.b16 %v1440, %v1432
    %v1857 = vpack.c.b16 %v1441, %v1433
    %v1858 = vpack.c.b16 %v1442, %v1434
    %v1859 = vpack.c.b16 %v1443, %v1435
    %v1860 = vpack.c.b16 %v1444, %v1436
    %v1861 = vpack.c.b16 %v1445, %v1437
    %v1862 = vpack.c.b16 %v1454, %v1446
    %v1863 = vpack.c.b16 %v1455, %v1447
    %v1864 = vpack.c.b16 %v1456, %v1448
    %v1865 = vpack.c.b16 %v1457, %v1449
    %v1866 = vpack.c.b16 %v1458, %v1450
    %v1867 = vpack.c.b16 %v1459, %v1451
    %v1868 = vpack.c.b16 %v1460, %v1452
    %v1869 = vpack.c.b16 %v1461, %v1453
    %v1870 = vpack.c.b16 %v1470, %v1462
    %v1871 = vpack.c.b16 %v1471, %v1463
    %v1872 = vpack.c.b16 %v1472, %v1464
    %v1873 = vpack.c.b16 %v1473, %v1465
    %v1874 = vpack.c.b16 %v1474, %v1466
    %v1875 = vpack.c.b16 %v1475, %v1467
    %v1876 = vpack.c.b16 %v1476, %v1468
    %v1877 = vpack.c.b16 %v1477, %v1469
    %v1878 = vpack.c.b16 %v1486, %v1478
    %v1879 = vpack.c.b16 %v1487, %v1479
    %v1880 = vpack.c.b16 %v1488, %v1480
    %v1881 = vpack.c.b16 %v1489, %v1481
    %v1882 = vpack.c.b16 %v1490, %v1482
    %v1883 = vpack.c.b16 %v1491, %v1483
    %v1884 = vpack.c.b16 %v1492, %v1484
    %v1885 = vpack.c.b16 %v1493, %v1485
    %v1886 = vpack.c.b16 %v1502, %v1494
    %v1887 = vpack.c.b16 %v1503, %v1495
    %v1888 = vpack.c.b16 %v1504, %v1496
    %v1889 = vpack.c.b16 %v1505, %v1497
    %v1890 = vpack.c.b16 %v1506, %v1498
    %v1891 = vpack.c.b16 %v1507, %v1499
    %v1892 = vpack.c.b16 %v1508, %v1500
    %v1893 = vpack.c.b16 %v1509, %v1501
    %v1894 = vpack.c.b16 %v1518, %v1510
    %v1895 = vpack.c.b16 %v1519, %v1511
    %v1896 = vpack.c.b16 %v1520, %v1512
    %v1897 = vpack.c.b16 %v1521, %v1513
    %v1898 = vpack.c.b16 %v1522, %v1514
    %v1899 = vpack.c.b16 %v1523, %v1515
    %v1900 = vpack.c.b16 %v1524, %v1516
    %v1901 = vpack.c.b16 %v1525, %v1517
    %v1902 = vpack.c.b16 %v1534, %v1526
    %v1903 = vpack.c.b16 %v1535, %v1527
    %v1904 = vpack.c.b16 %v1536, %v1528
    %v1905 = vpack.c.b16 %v1537, %v1529
    %v1906 = vpack.c.b16 %v1538, %v1530
    %v1907 = vpack.c.b16 %v1539, %v1531
    %v1908 = vpack.c.b16 %v1540, %v1532
    %v1909 = vpack.c.b16 %v1541, %v1533
    %v1910 = vpack.c.b16 %v1550, %v1542
    %v1911 = vpack.c.b16 %v1551, %v1543
    %v1912 = vpack.c.b16 %v1552, %v1544
    %v1913 = vpack.c.b16 %v1553, %v1545
    %v1914 = vpack.c.b16 %v1554, %v1546
    %v1915 = vpack.c.b16 %v1555, %v1547
    %v1916 = vpack.c.b16 %v1556, %v1548
    %v1917 = vpack.c.b16 %v1557, %v1549
    %v1918 = vpack.c.b16 %v1566, %v1558
    %v1919 = vpack.c.b16 %v1567, %v1559
    %v1920 = vpack.c.b16 %v1568, %v1560
    %v1921 = vpack.c.b16 %v1569, %v1561
    %v1922 = vpack.c.b16 %v1570, %v1562
    %v1923 = vpack.c.b16 %v1571, %v1563
    %v1924 = vpack.c.b16 %v1572, %v1564
    %v1925 = vpack.c.b16 %v1573, %v1565
    %v1926 = vpack.c.b16 %v1582, %v1574
    %v1927 = vpack.c.b16 %v1583, %v1575
    %v1928 = vpack.c.b16 %v1584, %v1576
    %v1929 = vpack.c.b16 %v1585, %v1577
    %v1930 = vpack.c.b16 %v1586, %v1578
    %v1931 = vpack.c.b16 %v1587, %v1579
    %v1932 = vpack.c.b16 %v1588, %v1580
    %v1933 = vpack.c.b16 %v1589, %v1581
    %v1934 = vpack.c.b16 %v1598, %v1590
    %v1935 = vpack.c.b16 %v1599, %v1591
    %v1936 = vpack.c.b16 %v1600, %v1592
    %v1937 = vpack.c.b16 %v1601, %v1593
    %v1938 = vpack.c.b16 %v1602, %v1594
    %v1939 = vpack.c.b16 %v1603, %v1595
    %v1940 = vpack.c.b16 %v1604, %v1596
    %v1941 = vpack.c.b16 %v1605, %v1597
    %v1942 = vpack.c.b16 %v1614, %v1606
    %v1943 = vpack.c.b16 %v1615, %v1607
    %v1944 = vpack.c.b16 %v1616, %v1608
    %v1945 = vpack.c.b16 %v1617, %v1609
    %v1946 = vpack.c.b16 %v1618, %v1610
    %v1947 = vpack.c.b16 %v1619, %v1611
    %v1948 = vpack.c.b16 %v1620, %v1612
    %v1949 = vpack.c.b16 %v1621, %v1613
    %v1950 = vpack.c.b16 %v1630, %v1622
    %v1951 = vpack.c.b16 %v1631, %v1623
    %v1952 = vpack.c.b16 %v1632, %v1624
    %v1953 = vpack.c.b16 %v1633, %v1625
    %v1954 = vpack.c.b16 %v1634, %v1626
    %v1955 = vpack.c.b16 %v1635, %v1627
    %v1956 = vpack.c.b16 %v1636, %v1628
    %v1957 = vpack.c.b16 %v1637, %v1629
    %v1958 = vpack.c.b16 %v1646, %v1638
    %v1959 = vpack.c.b16 %v1647, %v1639
    %v1960 = vpack.c.b16 %v1648, %v1640
    %v1961 = vpack.c.b16 %v1649, %v1641
    %v1962 = vpack.c.b16 %v1650, %v1642
    %v1963 = vpack.c.b16 %v1651, %v1643
    %v1964 = vpack.c.b16 %v1652, %v1644
    %v1965 = vpack.c.b16 %v1653, %v1645
    %v1966 = vpack.c.b16 %v1662, %v1654
    %v1967 = vpack.c.b16 %v1663, %v1655
    %v1968 = vpack.c.b16 %v1664, %v1656
    %v1969 = vpack.c.b16 %v1665, %v1657
    %v1970 = vpack.c.b16 %v1666, %v1658
    %v1971 = vpack.c.b16 %v1667, %v1659
    %v1972 = vpack.c.b16 %v1668, %v1660
    %v1973 = vpack.c.b16 %v1669, %v1661
    %v1974 = vpack.c.b16 %v1678, %v1670
    %v1975 = vpack.c.b16 %v1679, %v1671
    %v1976 = vpack.c.b16 %v1680, %v1672
    %v1977 = vpack.c.b16 %v1681, %v1673
    %v1978 = vpack.c.b16 %v1682, %v1674
    %v1979 = vpack.c.b16 %v1683, %v1675
    %v1980 = vpack.c.b16 %v1684, %v1676
    %v1981 = vpack.c.b16 %v1685, %v1677
    %v1982 = vpack.c.b16 %v1694, %v1686
    %v1983 = vpack.c.b16 %v1695, %v1687
    %v1984 = vpack.c.b16 %v1696, %v1688
    %v1985 = vpack.c.b16 %v1697, %v1689
    %v1986 = vpack.c.b16 %v1698, %v1690
    %v1987 = vpack.c.b16 %v1699, %v1691
    %v1988 = vpack.c.b16 %v1700, %v1692
    %v1989 = vpack.c.b16 %v1701, %v1693
    %v1990 = vpack.c.b16 %v1710, %v1702
    %v1991 = vpack.c.b16 %v1711, %v1703
    %v1992 = vpack.c.b16 %v1712, %v1704
    %v1993 = vpack.c.b16 %v1713, %v1705
    %v1994 = vpack.c.b16 %v1714, %v1706
    %v1995 = vpack.c.b16 %v1715, %v1707
    %v1996 = vpack.c.b16 %v1716, %v1708
    %v1997 = vpack.c.b16 %v1717, %v1709
    %v1998 = vpack.c.b16 %v1726, %v1718
    %v1999 = vpack.c.b16 %v1727, %v1719
    %v2000 = vpack.c.b16 %v1728, %v1720
    %v2001 = vpack.c.b16 %v1729, %v1721
    %v2002 = vpack.c.b16 %v1730, %v1722
    %v2003 = vpack.c.b16 %v1731, %v1723
    %v2004 = vpack.c.b16 %v1732, %v1724
    %v2005 = vpack.c.b16 %v1733, %v1725
    %v2006 = vpack.c.b16 %v1742, %v1734
    %v2007 = vpack.c.b16 %v1743, %v1735
    %v2008 = vpack.c.b16 %v1744, %v1736
    %v2009 = vpack.c.b16 %v1745, %v1737
    %v2010 = vpack.c.b16 %v1746, %v1738
    %v2011 = vpack.c.b16 %v1747, %v1739
    %v2012 = vpack.c.b16 %v1748, %v1740
    %v2013 = vpack.c.b16 %v1749, %v1741
    %v2014 = vpack.c.b16 %v1758, %v1750
    %v2015 = vpack.c.b16 %v1759, %v1751
    %v2016 = vpack.c.b16 %v1760, %v1752
    %v2017 = vpack.c.b16 %v1761, %v1753
    %v2018 = vpack.c.b16 %v1762, %v1754
    %v2019 = vpack.c.b16 %v1763, %v1755
    %v2020 = vpack.c.b16 %v1764, %v1756
    %v2021 = vpack.c.b16 %v1765, %v1757
    %2278 = vmatprep.subr.bf16.mxu0 %v1823
    %2279 = vmatpush1.bf16.msra.mxu0 %v1822
    %2280 = vmatprep.subr.bf16.mxu0 %v1815
    %2281 = vmatpush1.bf16.msra.mxu0 %v1814
    %2282 = vmatprep.subr.bf16.mxu0 %v1807
    %2283 = vmatpush1.bf16.msra.mxu0 %v1806
    %2284 = vmatprep.subr.bf16.mxu0 %v1799
    %2285 = vmatpush1.bf16.msra.mxu0 %v1798
    %2286 = vmatprep.subr.bf16.mxu0 %v1791
    %2287 = vmatpush1.bf16.msra.mxu0 %v1790
    %2288 = vmatprep.subr.bf16.mxu0 %v1783
    %2289 = vmatpush1.bf16.msra.mxu0 %v1782
    %2290 = vmatprep.subr.bf16.mxu0 %v1775
    %2291 = vmatpush1.bf16.msra.mxu0 %v1774
    %2292 = vmatprep.subr.bf16.mxu0 %v1767
    %2293 = vmatpush1.bf16.msra.mxu0 %v1766
    %2294 = vmatprep.subr.bf16.mxu0 %v1887
    %2295 = vmatpush2.bf16.msra.mxu0 %v1886
    %2296 = vmatprep.subr.bf16.mxu0 %v1879
    %2297 = vmatpush2.bf16.msra.mxu0 %v1878
    %2298 = vmatprep.subr.bf16.mxu0 %v1871
    %2299 = vmatpush2.bf16.msra.mxu0 %v1870
    %2300 = vmatprep.subr.bf16.mxu0 %v1863
    %2301 = vmatpush2.bf16.msra.mxu0 %v1862
    %2302 = vmatprep.subr.bf16.mxu0 %v1855
    %2303 = vmatpush2.bf16.msra.mxu0 %v1854
    %2304 = vmatprep.subr.bf16.mxu0 %v1847
    %2305 = vmatpush2.bf16.msra.mxu0 %v1846
    %2306 = vmatprep.subr.bf16.mxu0 %v1839
    %2307 = vmatpush2.bf16.msra.mxu0 %v1838
    %2308 = vmatprep.subr.bf16.mxu0 %v1831
    %2309 = vmatpush2.bf16.msra.mxu0 %v1830
    %2310 = vmatprep.mubr.bf16.mxu0 %v697
    %2311 = vmatmul.mubr.bf16.gmra.mxu0 %v696
    %v2312 = vpop.f32.mrf.mxu0
    %v2313 = vadd.f32 %v961, %v2312
    %v2314 = vpop.f32.mrf.mxu0
    %v2315 = vadd.f32 %v965, %v2314
    %v2316 = vpop.f32.mrf.mxu0
    %v2317 = vpop.f32.mrf.mxu0
    %2318 = vdwg.mxu0
    %2319 = vmatprep.subr.bf16.mxu0 %v1951
    %2320 = vmatpush1.bf16.msra.mxu0 %v1950
    %2321 = vmatprep.subr.bf16.mxu0 %v1943
    %2322 = vmatpush1.bf16.msra.mxu0 %v1942
    %2323 = vmatprep.subr.bf16.mxu0 %v1935
    %2324 = vmatpush1.bf16.msra.mxu0 %v1934
    %2325 = vmatprep.subr.bf16.mxu0 %v1927
    %2326 = vmatpush1.bf16.msra.mxu0 %v1926
    %2327 = vmatprep.subr.bf16.mxu0 %v1919
    %2328 = vmatpush1.bf16.msra.mxu0 %v1918
    %2329 = vmatprep.subr.bf16.mxu0 %v1911
    %2330 = vmatpush1.bf16.msra.mxu0 %v1910
    %2331 = vmatprep.subr.bf16.mxu0 %v1903
    %2332 = vmatpush1.bf16.msra.mxu0 %v1902
    %2333 = vmatprep.subr.bf16.mxu0 %v1895
    %2334 = vmatpush1.bf16.msra.mxu0 %v1894
    %2335 = vmatprep.subr.bf16.mxu0 %v2015
    %2336 = vmatpush2.bf16.msra.mxu0 %v2014
    %2337 = vmatprep.subr.bf16.mxu0 %v2007
    %2338 = vmatpush2.bf16.msra.mxu0 %v2006
    %2339 = vmatprep.subr.bf16.mxu0 %v1999
    %2340 = vmatpush2.bf16.msra.mxu0 %v1998
    %2341 = vmatprep.subr.bf16.mxu0 %v1991
    %2342 = vmatpush2.bf16.msra.mxu0 %v1990
    %2343 = vmatprep.subr.bf16.mxu0 %v1983
    %2344 = vmatpush2.bf16.msra.mxu0 %v1982
    %2345 = vmatprep.subr.bf16.mxu0 %v1975
    %2346 = vmatpush2.bf16.msra.mxu0 %v1974
    %2347 = vmatprep.subr.bf16.mxu0 %v1967
    %2348 = vmatpush2.bf16.msra.mxu0 %v1966
    %2349 = vmatprep.subr.bf16.mxu0 %v1959
    %2350 = vmatpush2.bf16.msra.mxu0 %v1958
    %2351 = vmatprep.mubr.bf16.mxu0 %v699
    %2352 = vmatmul.mubr.bf16.gmra.mxu0 %v698
    %v2353 = vpop.f32.mrf.mxu0
    %v2354 = vadd.f32 %v2313, %v2353
    %v2355 = vpop.f32.mrf.mxu0
    %v2356 = vadd.f32 %v2315, %v2355
    %v2357 = vpop.f32.mrf.mxu0
    %v2358 = vpop.f32.mrf.mxu0
    %2359 = vdwg.mxu0
    %2360 = vmatprep.subr.bf16.mxu0 %v1825
    %2361 = vmatpush1.bf16.msra.mxu0 %v1824
    %2362 = vmatprep.subr.bf16.mxu0 %v1817
    %2363 = vmatpush1.bf16.msra.mxu0 %v1816
    %2364 = vmatprep.subr.bf16.mxu0 %v1809
    %2365 = vmatpush1.bf16.msra.mxu0 %v1808
    %2366 = vmatprep.subr.bf16.mxu0 %v1801
    %2367 = vmatpush1.bf16.msra.mxu0 %v1800
    %2368 = vmatprep.subr.bf16.mxu0 %v1793
    %2369 = vmatpush1.bf16.msra.mxu0 %v1792
    %2370 = vmatprep.subr.bf16.mxu0 %v1785
    %2371 = vmatpush1.bf16.msra.mxu0 %v1784
    %2372 = vmatprep.subr.bf16.mxu0 %v1777
    %2373 = vmatpush1.bf16.msra.mxu0 %v1776
    %2374 = vmatprep.subr.bf16.mxu0 %v1769
    %2375 = vmatpush1.bf16.msra.mxu0 %v1768
    %2376 = vmatprep.subr.bf16.mxu0 %v1889
    %2377 = vmatpush2.bf16.msra.mxu0 %v1888
    %2378 = vmatprep.subr.bf16.mxu0 %v1881
    %2379 = vmatpush2.bf16.msra.mxu0 %v1880
    %2380 = vmatprep.subr.bf16.mxu0 %v1873
    %2381 = vmatpush2.bf16.msra.mxu0 %v1872
    %2382 = vmatprep.subr.bf16.mxu0 %v1865
    %2383 = vmatpush2.bf16.msra.mxu0 %v1864
    %2384 = vmatprep.subr.bf16.mxu0 %v1857
    %2385 = vmatpush2.bf16.msra.mxu0 %v1856
    %2386 = vmatprep.subr.bf16.mxu0 %v1849
    %2387 = vmatpush2.bf16.msra.mxu0 %v1848
    %2388 = vmatprep.subr.bf16.mxu0 %v1841
    %2389 = vmatpush2.bf16.msra.mxu0 %v1840
    %2390 = vmatprep.subr.bf16.mxu0 %v1833
    %2391 = vmatpush2.bf16.msra.mxu0 %v1832
    %2392 = vmatprep.mubr.bf16.mxu0 %v697
    %2393 = vmatmul.mubr.bf16.gmra.mxu0 %v696
    %v2394 = vpop.f32.mrf.mxu0
    %v2395 = vadd.f32 %v969, %v2394
    %v2396 = vpop.f32.mrf.mxu0
    %v2397 = vadd.f32 %v973, %v2396
    %v2398 = vpop.f32.mrf.mxu0
    %v2399 = vpop.f32.mrf.mxu0
    %2400 = vdwg.mxu0
    %2401 = vmatprep.subr.bf16.mxu0 %v1953
    %2402 = vmatpush1.bf16.msra.mxu0 %v1952
    %2403 = vmatprep.subr.bf16.mxu0 %v1945
    %2404 = vmatpush1.bf16.msra.mxu0 %v1944
    %2405 = vmatprep.subr.bf16.mxu0 %v1937
    %2406 = vmatpush1.bf16.msra.mxu0 %v1936
    %2407 = vmatprep.subr.bf16.mxu0 %v1929
    %2408 = vmatpush1.bf16.msra.mxu0 %v1928
    %2409 = vmatprep.subr.bf16.mxu0 %v1921
    %2410 = vmatpush1.bf16.msra.mxu0 %v1920
    %2411 = vmatprep.subr.bf16.mxu0 %v1913
    %2412 = vmatpush1.bf16.msra.mxu0 %v1912
    %2413 = vmatprep.subr.bf16.mxu0 %v1905
    %2414 = vmatpush1.bf16.msra.mxu0 %v1904
    %2415 = vmatprep.subr.bf16.mxu0 %v1897
    %2416 = vmatpush1.bf16.msra.mxu0 %v1896
    %2417 = vmatprep.subr.bf16.mxu0 %v2017
    %2418 = vmatpush2.bf16.msra.mxu0 %v2016
    %2419 = vmatprep.subr.bf16.mxu0 %v2009
    %2420 = vmatpush2.bf16.msra.mxu0 %v2008
    %2421 = vmatprep.subr.bf16.mxu0 %v2001
    %2422 = vmatpush2.bf16.msra.mxu0 %v2000
    %2423 = vmatprep.subr.bf16.mxu0 %v1993
    %2424 = vmatpush2.bf16.msra.mxu0 %v1992
    %2425 = vmatprep.subr.bf16.mxu0 %v1985
    %2426 = vmatpush2.bf16.msra.mxu0 %v1984
    %2427 = vmatprep.subr.bf16.mxu0 %v1977
    %2428 = vmatpush2.bf16.msra.mxu0 %v1976
    %2429 = vmatprep.subr.bf16.mxu0 %v1969
    %2430 = vmatpush2.bf16.msra.mxu0 %v1968
    %2431 = vmatprep.subr.bf16.mxu0 %v1961
    %2432 = vmatpush2.bf16.msra.mxu0 %v1960
    %2433 = vmatprep.mubr.bf16.mxu0 %v699
    %2434 = vmatmul.mubr.bf16.gmra.mxu0 %v698
    %v2435 = vpop.f32.mrf.mxu0
    %v2436 = vadd.f32 %v2395, %v2435
    %v2437 = vpop.f32.mrf.mxu0
    %v2438 = vadd.f32 %v2397, %v2437
    %v2439 = vpop.f32.mrf.mxu0
    %v2440 = vpop.f32.mrf.mxu0
    %2441 = vdwg.mxu0
    %2442 = vmatprep.subr.bf16.mxu0 %v1827
    %2443 = vmatpush1.bf16.msra.mxu0 %v1826
    %2444 = vmatprep.subr.bf16.mxu0 %v1819
    %2445 = vmatpush1.bf16.msra.mxu0 %v1818
    %2446 = vmatprep.subr.bf16.mxu0 %v1811
    %2447 = vmatpush1.bf16.msra.mxu0 %v1810
    %2448 = vmatprep.subr.bf16.mxu0 %v1803
    %2449 = vmatpush1.bf16.msra.mxu0 %v1802
    %2450 = vmatprep.subr.bf16.mxu0 %v1795
    %2451 = vmatpush1.bf16.msra.mxu0 %v1794
    %2452 = vmatprep.subr.bf16.mxu0 %v1787
    %2453 = vmatpush1.bf16.msra.mxu0 %v1786
    %2454 = vmatprep.subr.bf16.mxu0 %v1779
    %2455 = vmatpush1.bf16.msra.mxu0 %v1778
    %2456 = vmatprep.subr.bf16.mxu0 %v1771
    %2457 = vmatpush1.bf16.msra.mxu0 %v1770
    %2458 = vmatprep.subr.bf16.mxu0 %v1891
    %2459 = vmatpush2.bf16.msra.mxu0 %v1890
    %2460 = vmatprep.subr.bf16.mxu0 %v1883
    %2461 = vmatpush2.bf16.msra.mxu0 %v1882
    %2462 = vmatprep.subr.bf16.mxu0 %v1875
    %2463 = vmatpush2.bf16.msra.mxu0 %v1874
    %2464 = vmatprep.subr.bf16.mxu0 %v1867
    %2465 = vmatpush2.bf16.msra.mxu0 %v1866
    %2466 = vmatprep.subr.bf16.mxu0 %v1859
    %2467 = vmatpush2.bf16.msra.mxu0 %v1858
    %2468 = vmatprep.subr.bf16.mxu0 %v1851
    %2469 = vmatpush2.bf16.msra.mxu0 %v1850
    %2470 = vmatprep.subr.bf16.mxu0 %v1843
    %2471 = vmatpush2.bf16.msra.mxu0 %v1842
    %2472 = vmatprep.subr.bf16.mxu0 %v1835
    %2473 = vmatpush2.bf16.msra.mxu0 %v1834
    %2474 = vmatprep.mubr.bf16.mxu0 %v697
    %2475 = vmatmul.mubr.bf16.gmra.mxu0 %v696
    %v2476 = vpop.f32.mrf.mxu0
    %v2477 = vadd.f32 %v977, %v2476
    %v2478 = vpop.f32.mrf.mxu0
    %v2479 = vadd.f32 %v981, %v2478
    %v2480 = vpop.f32.mrf.mxu0
    %v2481 = vpop.f32.mrf.mxu0
    %2482 = vdwg.mxu0
    %2483 = vmatprep.subr.bf16.mxu0 %v1955
    %2484 = vmatpush1.bf16.msra.mxu0 %v1954
    %2485 = vmatprep.subr.bf16.mxu0 %v1947
    %2486 = vmatpush1.bf16.msra.mxu0 %v1946
    %2487 = vmatprep.subr.bf16.mxu0 %v1939
    %2488 = vmatpush1.bf16.msra.mxu0 %v1938
    %2489 = vmatprep.subr.bf16.mxu0 %v1931
    %2490 = vmatpush1.bf16.msra.mxu0 %v1930
    %2491 = vmatprep.subr.bf16.mxu0 %v1923
    %2492 = vmatpush1.bf16.msra.mxu0 %v1922
    %2493 = vmatprep.subr.bf16.mxu0 %v1915
    %2494 = vmatpush1.bf16.msra.mxu0 %v1914
    %2495 = vmatprep.subr.bf16.mxu0 %v1907
    %2496 = vmatpush1.bf16.msra.mxu0 %v1906
    %2497 = vmatprep.subr.bf16.mxu0 %v1899
    %2498 = vmatpush1.bf16.msra.mxu0 %v1898
    %2499 = vmatprep.subr.bf16.mxu0 %v2019
    %2500 = vmatpush2.bf16.msra.mxu0 %v2018
    %2501 = vmatprep.subr.bf16.mxu0 %v2011
    %2502 = vmatpush2.bf16.msra.mxu0 %v2010
    %2503 = vmatprep.subr.bf16.mxu0 %v2003
    %2504 = vmatpush2.bf16.msra.mxu0 %v2002
    %2505 = vmatprep.subr.bf16.mxu0 %v1995
    %2506 = vmatpush2.bf16.msra.mxu0 %v1994
    %2507 = vmatprep.subr.bf16.mxu0 %v1987
    %2508 = vmatpush2.bf16.msra.mxu0 %v1986
    %2509 = vmatprep.subr.bf16.mxu0 %v1979
    %2510 = vmatpush2.bf16.msra.mxu0 %v1978
    %2511 = vmatprep.subr.bf16.mxu0 %v1971
    %2512 = vmatpush2.bf16.msra.mxu0 %v1970
    %2513 = vmatprep.subr.bf16.mxu0 %v1963
    %2514 = vmatpush2.bf16.msra.mxu0 %v1962
    %2515 = vmatprep.mubr.bf16.mxu0 %v699
    %2516 = vmatmul.mubr.bf16.gmra.mxu0 %v698
    %v2517 = vpop.f32.mrf.mxu0
    %v2518 = vadd.f32 %v2477, %v2517
    %v2519 = vpop.f32.mrf.mxu0
    %v2520 = vadd.f32 %v2479, %v2519
    %v2521 = vpop.f32.mrf.mxu0
    %v2522 = vpop.f32.mrf.mxu0
    %2523 = vdwg.mxu0
    %2524 = vmatprep.subr.bf16.mxu0 %v1829
    %2525 = vmatpush1.bf16.msra.mxu0 %v1828
    %2526 = vmatprep.subr.bf16.mxu0 %v1821
    %2527 = vmatpush1.bf16.msra.mxu0 %v1820
    %2528 = vmatprep.subr.bf16.mxu0 %v1813
    %2529 = vmatpush1.bf16.msra.mxu0 %v1812
    %2530 = vmatprep.subr.bf16.mxu0 %v1805
    %2531 = vmatpush1.bf16.msra.mxu0 %v1804
    %2532 = vmatprep.subr.bf16.mxu0 %v1797
    %2533 = vmatpush1.bf16.msra.mxu0 %v1796
    %2534 = vmatprep.subr.bf16.mxu0 %v1789
    %2535 = vmatpush1.bf16.msra.mxu0 %v1788
    %2536 = vmatprep.subr.bf16.mxu0 %v1781
    %2537 = vmatpush1.bf16.msra.mxu0 %v1780
    %2538 = vmatprep.subr.bf16.mxu0 %v1773
    %2539 = vmatpush1.bf16.msra.mxu0 %v1772
    %2540 = vmatprep.subr.bf16.mxu0 %v1893
    %2541 = vmatpush2.bf16.msra.mxu0 %v1892
    %2542 = vmatprep.subr.bf16.mxu0 %v1885
    %2543 = vmatpush2.bf16.msra.mxu0 %v1884
    %2544 = vmatprep.subr.bf16.mxu0 %v1877
    %2545 = vmatpush2.bf16.msra.mxu0 %v1876
    %2546 = vmatprep.subr.bf16.mxu0 %v1869
    %2547 = vmatpush2.bf16.msra.mxu0 %v1868
    %2548 = vmatprep.subr.bf16.mxu0 %v1861
    %2549 = vmatpush2.bf16.msra.mxu0 %v1860
    %2550 = vmatprep.subr.bf16.mxu0 %v1853
    %2551 = vmatpush2.bf16.msra.mxu0 %v1852
    %2552 = vmatprep.subr.bf16.mxu0 %v1845
    %2553 = vmatpush2.bf16.msra.mxu0 %v1844
    %2554 = vmatprep.subr.bf16.mxu0 %v1837
    %2555 = vmatpush2.bf16.msra.mxu0 %v1836
    %2556 = vmatprep.mubr.bf16.mxu0 %v697
    %2557 = vmatmul.mubr.bf16.gmra.mxu0 %v696
    %v2558 = vpop.f32.mrf.mxu0
    %v2559 = vadd.f32 %v985, %v2558
    %v2560 = vpop.f32.mrf.mxu0
    %v2561 = vadd.f32 %v989, %v2560
    %v2562 = vpop.f32.mrf.mxu0
    %v2563 = vpop.f32.mrf.mxu0
    %2564 = vdwg.mxu0
    %2565 = vmatprep.subr.bf16.mxu0 %v1957
    %2566 = vmatpush1.bf16.msra.mxu0 %v1956
    %2567 = vmatprep.subr.bf16.mxu0 %v1949
    %2568 = vmatpush1.bf16.msra.mxu0 %v1948
    %2569 = vmatprep.subr.bf16.mxu0 %v1941
    %2570 = vmatpush1.bf16.msra.mxu0 %v1940
    %2571 = vmatprep.subr.bf16.mxu0 %v1933
    %2572 = vmatpush1.bf16.msra.mxu0 %v1932
    %2573 = vmatprep.subr.bf16.mxu0 %v1925
    %2574 = vmatpush1.bf16.msra.mxu0 %v1924
    %2575 = vmatprep.subr.bf16.mxu0 %v1917
    %2576 = vmatpush1.bf16.msra.mxu0 %v1916
    %2577 = vmatprep.subr.bf16.mxu0 %v1909
    %2578 = vmatpush1.bf16.msra.mxu0 %v1908
    %2579 = vmatprep.subr.bf16.mxu0 %v1901
    %2580 = vmatpush1.bf16.msra.mxu0 %v1900
    %2581 = vmatprep.subr.bf16.mxu0 %v2021
    %2582 = vmatpush2.bf16.msra.mxu0 %v2020
    %2583 = vmatprep.subr.bf16.mxu0 %v2013
    %2584 = vmatpush2.bf16.msra.mxu0 %v2012
    %2585 = vmatprep.subr.bf16.mxu0 %v2005
    %2586 = vmatpush2.bf16.msra.mxu0 %v2004
    %2587 = vmatprep.subr.bf16.mxu0 %v1997
    %2588 = vmatpush2.bf16.msra.mxu0 %v1996
    %2589 = vmatprep.subr.bf16.mxu0 %v1989
    %2590 = vmatpush2.bf16.msra.mxu0 %v1988
    %2591 = vmatprep.subr.bf16.mxu0 %v1981
    %2592 = vmatpush2.bf16.msra.mxu0 %v1980
    %2593 = vmatprep.subr.bf16.mxu0 %v1973
    %2594 = vmatpush2.bf16.msra.mxu0 %v1972
    %2595 = vmatprep.subr.bf16.mxu0 %v1965
    %2596 = vmatpush2.bf16.msra.mxu0 %v1964
    %2597 = vmatprep.mubr.bf16.mxu0 %v699
    %2598 = vmatmul.mubr.bf16.gmra.mxu0 %v698
    %v2599 = vpop.f32.mrf.mxu0
    %v2600 = vadd.f32 %v2559, %v2599
    %v2601 = vpop.f32.mrf.mxu0
    %v2602 = vadd.f32 %v2561, %v2601
    %v2603 = vpop.f32.mrf.mxu0
    %v2604 = vpop.f32.mrf.mxu0
    %2605 = vdwg.mxu0
    %v2606 = vmax.f32 %v2354, 0.0
    %v2607 = vmax.f32 %v2356, 0.0
    %v2608 = vmax.f32 %v2436, 0.0
    %v2609 = vmax.f32 %v2438, 0.0
    %v2610 = vmax.f32 %v2518, 0.0
    %v2611 = vmax.f32 %v2520, 0.0
    %v2612 = vmax.f32 %v2600, 0.0
    %v2613 = vmax.f32 %v2602, 0.0
    %v2614 = vpack.c.bf16 %v2606, %v2606
    %v2615 = vpack.c.bf16 %v2607, %v2607
    %v2616 = vpack.c.bf16 %v2608, %v2608
    %v2617 = vpack.c.bf16 %v2609, %v2609
    %v2618 = vpack.c.bf16 %v2610, %v2610
    %v2619 = vpack.c.bf16 %v2611, %v2611
    %v2620 = vpack.c.bf16 %v2612, %v2612
    %v2621 = vpack.c.bf16 %v2613, %v2613
    %v2622 = vld [vmem:[#allocation8] sm:$0xff]
    %v2623 = vld [vmem:[#allocation8 + $0x8] sm:$0xff]
    %v2624 = vld [vmem:[#allocation8 + $0x10] sm:$0xff]
    %v2625 = vld [vmem:[#allocation8 + $0x18] sm:$0xff]
    %v2626 = vld [vmem:[#allocation8 + $0x20] sm:$0xff]
    %v2627 = vld [vmem:[#allocation8 + $0x28] sm:$0xff]
    %v2628 = vld [vmem:[#allocation8 + $0x30] sm:$0xff]
    %v2629 = vld [vmem:[#allocation8 + $0x38] sm:$0xff]
    %v2630 = vld [vmem:[#allocation8 + $0x40] sm:$0xff]
    %v2631 = vld [vmem:[#allocation8 + $0x48] sm:$0xff]
    %v2632 = vld [vmem:[#allocation8 + $0x50] sm:$0xff]
    %v2633 = vld [vmem:[#allocation8 + $0x58] sm:$0xff]
    %v2634 = vld [vmem:[#allocation8 + $0x60] sm:$0xff]
    %v2635 = vld [vmem:[#allocation8 + $0x68] sm:$0xff]
    %v2636 = vld [vmem:[#allocation8 + $0x70] sm:$0xff]
    %v2637 = vld [vmem:[#allocation8 + $0x78] sm:$0xff]
    %v2638 = vld [vmem:[#allocation8 + $0x80] sm:$0xff]
    %v2639 = vld [vmem:[#allocation8 + $0x88] sm:$0xff]
    %v2640 = vld [vmem:[#allocation8 + $0x90] sm:$0xff]
    %v2641 = vld [vmem:[#allocation8 + $0x98] sm:$0xff]
    %v2642 = vld [vmem:[#allocation8 + $0xa0] sm:$0xff]
    %v2643 = vld [vmem:[#allocation8 + $0xa8] sm:$0xff]
    %v2644 = vld [vmem:[#allocation8 + $0xb0] sm:$0xff]
    %v2645 = vld [vmem:[#allocation8 + $0xb8] sm:$0xff]
    %v2646 = vld [vmem:[#allocation8 + $0xc0] sm:$0xff]
    %v2647 = vld [vmem:[#allocation8 + $0xc8] sm:$0xff]
    %v2648 = vld [vmem:[#allocation8 + $0xd0] sm:$0xff]
    %v2649 = vld [vmem:[#allocation8 + $0xd8] sm:$0xff]
    %v2650 = vld [vmem:[#allocation8 + $0xe0] sm:$0xff]
    %v2651 = vld [vmem:[#allocation8 + $0xe8] sm:$0xff]
    %v2652 = vld [vmem:[#allocation8 + $0xf0] sm:$0xff]
    %v2653 = vld [vmem:[#allocation8 + $0xf8] sm:$0xff]
    %v2654 = vld [vmem:[#allocation8 + $0x100] sm:$0xff]
    %v2655 = vld [vmem:[#allocation8 + $0x108] sm:$0xff]
    %v2656 = vld [vmem:[#allocation8 + $0x110] sm:$0xff]
    %v2657 = vld [vmem:[#allocation8 + $0x118] sm:$0xff]
    %v2658 = vld [vmem:[#allocation8 + $0x120] sm:$0xff]
    %v2659 = vld [vmem:[#allocation8 + $0x128] sm:$0xff]
    %v2660 = vld [vmem:[#allocation8 + $0x130] sm:$0xff]
    %v2661 = vld [vmem:[#allocation8 + $0x138] sm:$0xff]
    %v2662 = vld [vmem:[#allocation8 + $0x140] sm:$0xff]
    %v2663 = vld [vmem:[#allocation8 + $0x148] sm:$0xff]
    %v2664 = vld [vmem:[#allocation8 + $0x150] sm:$0xff]
    %v2665 = vld [vmem:[#allocation8 + $0x158] sm:$0xff]
    %v2666 = vld [vmem:[#allocation8 + $0x160] sm:$0xff]
    %v2667 = vld [vmem:[#allocation8 + $0x168] sm:$0xff]
    %v2668 = vld [vmem:[#allocation8 + $0x170] sm:$0xff]
    %v2669 = vld [vmem:[#allocation8 + $0x178] sm:$0xff]
    %v2670 = vld [vmem:[#allocation8 + $0x180] sm:$0xff]
    %v2671 = vld [vmem:[#allocation8 + $0x188] sm:$0xff]
    %v2672 = vld [vmem:[#allocation8 + $0x190] sm:$0xff]
    %v2673 = vld [vmem:[#allocation8 + $0x198] sm:$0xff]
    %v2674 = vld [vmem:[#allocation8 + $0x1a0] sm:$0xff]
    %v2675 = vld [vmem:[#allocation8 + $0x1a8] sm:$0xff]
    %v2676 = vld [vmem:[#allocation8 + $0x1b0] sm:$0xff]
    %v2677 = vld [vmem:[#allocation8 + $0x1b8] sm:$0xff]
    %v2678 = vld [vmem:[#allocation8 + $0x1c0] sm:$0xff]
    %v2679 = vld [vmem:[#allocation8 + $0x1c8] sm:$0xff]
    %v2680 = vld [vmem:[#allocation8 + $0x1d0] sm:$0xff]
    %v2681 = vld [vmem:[#allocation8 + $0x1d8] sm:$0xff]
    %v2682 = vld [vmem:[#allocation8 + $0x1e0] sm:$0xff]
    %v2683 = vld [vmem:[#allocation8 + $0x1e8] sm:$0xff]
    %v2684 = vld [vmem:[#allocation8 + $0x1f0] sm:$0xff]
    %v2685 = vld [vmem:[#allocation8 + $0x1f8] sm:$0xff]
    %v2686 = vld [vmem:[#allocation8 + $0x200] sm:$0xff]
    %v2687 = vld [vmem:[#allocation8 + $0x208] sm:$0xff]
    %v2688 = vld [vmem:[#allocation8 + $0x210] sm:$0xff]
    %v2689 = vld [vmem:[#allocation8 + $0x218] sm:$0xff]
    %v2690 = vld [vmem:[#allocation8 + $0x220] sm:$0xff]
    %v2691 = vld [vmem:[#allocation8 + $0x228] sm:$0xff]
    %v2692 = vld [vmem:[#allocation8 + $0x230] sm:$0xff]
    %v2693 = vld [vmem:[#allocation8 + $0x238] sm:$0xff]
    %v2694 = vld [vmem:[#allocation8 + $0x240] sm:$0xff]
    %v2695 = vld [vmem:[#allocation8 + $0x248] sm:$0xff]
    %v2696 = vld [vmem:[#allocation8 + $0x250] sm:$0xff]
    %v2697 = vld [vmem:[#allocation8 + $0x258] sm:$0xff]
    %v2698 = vld [vmem:[#allocation8 + $0x260] sm:$0xff]
    %v2699 = vld [vmem:[#allocation8 + $0x268] sm:$0xff]
    %v2700 = vld [vmem:[#allocation8 + $0x270] sm:$0xff]
    %v2701 = vld [vmem:[#allocation8 + $0x278] sm:$0xff]
    %v2702 = vld [vmem:[#allocation8 + $0x280] sm:$0xff]
    %v2703 = vld [vmem:[#allocation8 + $0x288] sm:$0xff]
    %v2704 = vld [vmem:[#allocation8 + $0x290] sm:$0xff]
    %v2705 = vld [vmem:[#allocation8 + $0x298] sm:$0xff]
    %v2706 = vld [vmem:[#allocation8 + $0x2a0] sm:$0xff]
    %v2707 = vld [vmem:[#allocation8 + $0x2a8] sm:$0xff]
    %v2708 = vld [vmem:[#allocation8 + $0x2b0] sm:$0xff]
    %v2709 = vld [vmem:[#allocation8 + $0x2b8] sm:$0xff]
    %v2710 = vld [vmem:[#allocation8 + $0x2c0] sm:$0xff]
    %v2711 = vld [vmem:[#allocation8 + $0x2c8] sm:$0xff]
    %v2712 = vld [vmem:[#allocation8 + $0x2d0] sm:$0xff]
    %v2713 = vld [vmem:[#allocation8 + $0x2d8] sm:$0xff]
    %v2714 = vld [vmem:[#allocation8 + $0x2e0] sm:$0xff]
    %v2715 = vld [vmem:[#allocation8 + $0x2e8] sm:$0xff]
    %v2716 = vld [vmem:[#allocation8 + $0x2f0] sm:$0xff]
    %v2717 = vld [vmem:[#allocation8 + $0x2f8] sm:$0xff]
    %v2718 = vld [vmem:[#allocation8 + $0x300] sm:$0xff]
    %v2719 = vld [vmem:[#allocation8 + $0x308] sm:$0xff]
    %v2720 = vld [vmem:[#allocation8 + $0x310] sm:$0xff]
    %v2721 = vld [vmem:[#allocation8 + $0x318] sm:$0xff]
    %v2722 = vld [vmem:[#allocation8 + $0x320] sm:$0xff]
    %v2723 = vld [vmem:[#allocation8 + $0x328] sm:$0xff]
    %v2724 = vld [vmem:[#allocation8 + $0x330] sm:$0xff]
    %v2725 = vld [vmem:[#allocation8 + $0x338] sm:$0xff]
    %v2726 = vld [vmem:[#allocation8 + $0x340] sm:$0xff]
    %v2727 = vld [vmem:[#allocation8 + $0x348] sm:$0xff]
    %v2728 = vld [vmem:[#allocation8 + $0x350] sm:$0xff]
    %v2729 = vld [vmem:[#allocation8 + $0x358] sm:$0xff]
    %v2730 = vld [vmem:[#allocation8 + $0x360] sm:$0xff]
    %v2731 = vld [vmem:[#allocation8 + $0x368] sm:$0xff]
    %v2732 = vld [vmem:[#allocation8 + $0x370] sm:$0xff]
    %v2733 = vld [vmem:[#allocation8 + $0x378] sm:$0xff]
    %v2734 = vld [vmem:[#allocation8 + $0x380] sm:$0xff]
    %v2735 = vld [vmem:[#allocation8 + $0x388] sm:$0xff]
    %v2736 = vld [vmem:[#allocation8 + $0x390] sm:$0xff]
    %v2737 = vld [vmem:[#allocation8 + $0x398] sm:$0xff]
    %v2738 = vld [vmem:[#allocation8 + $0x3a0] sm:$0xff]
    %v2739 = vld [vmem:[#allocation8 + $0x3a8] sm:$0xff]
    %v2740 = vld [vmem:[#allocation8 + $0x3b0] sm:$0xff]
    %v2741 = vld [vmem:[#allocation8 + $0x3b8] sm:$0xff]
    %v2742 = vld [vmem:[#allocation8 + $0x3c0] sm:$0xff]
    %v2743 = vld [vmem:[#allocation8 + $0x3c8] sm:$0xff]
    %v2744 = vld [vmem:[#allocation8 + $0x3d0] sm:$0xff]
    %v2745 = vld [vmem:[#allocation8 + $0x3d8] sm:$0xff]
    %v2746 = vld [vmem:[#allocation8 + $0x3e0] sm:$0xff]
    %v2747 = vld [vmem:[#allocation8 + $0x3e8] sm:$0xff]
    %v2748 = vld [vmem:[#allocation8 + $0x3f0] sm:$0xff]
    %v2749 = vld [vmem:[#allocation8 + $0x3f8] sm:$0xff]
    %v2750 = vld [vmem:[#allocation8 + $0x400] sm:$0xff]
    %v2751 = vld [vmem:[#allocation8 + $0x408] sm:$0xff]
    %v2752 = vld [vmem:[#allocation8 + $0x410] sm:$0xff]
    %v2753 = vld [vmem:[#allocation8 + $0x418] sm:$0xff]
    %v2754 = vld [vmem:[#allocation8 + $0x420] sm:$0xff]
    %v2755 = vld [vmem:[#allocation8 + $0x428] sm:$0xff]
    %v2756 = vld [vmem:[#allocation8 + $0x430] sm:$0xff]
    %v2757 = vld [vmem:[#allocation8 + $0x438] sm:$0xff]
    %v2758 = vld [vmem:[#allocation8 + $0x440] sm:$0xff]
    %v2759 = vld [vmem:[#allocation8 + $0x448] sm:$0xff]
    %v2760 = vld [vmem:[#allocation8 + $0x450] sm:$0xff]
    %v2761 = vld [vmem:[#allocation8 + $0x458] sm:$0xff]
    %v2762 = vld [vmem:[#allocation8 + $0x460] sm:$0xff]
    %v2763 = vld [vmem:[#allocation8 + $0x468] sm:$0xff]
    %v2764 = vld [vmem:[#allocation8 + $0x470] sm:$0xff]
    %v2765 = vld [vmem:[#allocation8 + $0x478] sm:$0xff]
    %v2766 = vld [vmem:[#allocation8 + $0x480] sm:$0xff]
    %v2767 = vld [vmem:[#allocation8 + $0x488] sm:$0xff]
    %v2768 = vld [vmem:[#allocation8 + $0x490] sm:$0xff]
    %v2769 = vld [vmem:[#allocation8 + $0x498] sm:$0xff]
    %v2770 = vld [vmem:[#allocation8 + $0x4a0] sm:$0xff]
    %v2771 = vld [vmem:[#allocation8 + $0x4a8] sm:$0xff]
    %v2772 = vld [vmem:[#allocation8 + $0x4b0] sm:$0xff]
    %v2773 = vld [vmem:[#allocation8 + $0x4b8] sm:$0xff]
    %v2774 = vld [vmem:[#allocation8 + $0x4c0] sm:$0xff]
    %v2775 = vld [vmem:[#allocation8 + $0x4c8] sm:$0xff]
    %v2776 = vld [vmem:[#allocation8 + $0x4d0] sm:$0xff]
    %v2777 = vld [vmem:[#allocation8 + $0x4d8] sm:$0xff]
    %v2778 = vld [vmem:[#allocation8 + $0x4e0] sm:$0xff]
    %v2779 = vld [vmem:[#allocation8 + $0x4e8] sm:$0xff]
    %v2780 = vld [vmem:[#allocation8 + $0x4f0] sm:$0xff]
    %v2781 = vld [vmem:[#allocation8 + $0x4f8] sm:$0xff]
    %v2782 = vld [vmem:[#allocation8 + $0x500] sm:$0xff]
    %v2783 = vld [vmem:[#allocation8 + $0x508] sm:$0xff]
    %v2784 = vld [vmem:[#allocation8 + $0x510] sm:$0xff]
    %v2785 = vld [vmem:[#allocation8 + $0x518] sm:$0xff]
    %v2786 = vld [vmem:[#allocation8 + $0x520] sm:$0xff]
    %v2787 = vld [vmem:[#allocation8 + $0x528] sm:$0xff]
    %v2788 = vld [vmem:[#allocation8 + $0x530] sm:$0xff]
    %v2789 = vld [vmem:[#allocation8 + $0x538] sm:$0xff]
    %v2790 = vld [vmem:[#allocation8 + $0x540] sm:$0xff]
    %v2791 = vld [vmem:[#allocation8 + $0x548] sm:$0xff]
    %v2792 = vld [vmem:[#allocation8 + $0x550] sm:$0xff]
    %v2793 = vld [vmem:[#allocation8 + $0x558] sm:$0xff]
    %v2794 = vld [vmem:[#allocation8 + $0x560] sm:$0xff]
    %v2795 = vld [vmem:[#allocation8 + $0x568] sm:$0xff]
    %v2796 = vld [vmem:[#allocation8 + $0x570] sm:$0xff]
    %v2797 = vld [vmem:[#allocation8 + $0x578] sm:$0xff]
    %v2798 = vld [vmem:[#allocation8 + $0x580] sm:$0xff]
    %v2799 = vld [vmem:[#allocation8 + $0x588] sm:$0xff]
    %v2800 = vld [vmem:[#allocation8 + $0x590] sm:$0xff]
    %v2801 = vld [vmem:[#allocation8 + $0x598] sm:$0xff]
    %v2802 = vld [vmem:[#allocation8 + $0x5a0] sm:$0xff]
    %v2803 = vld [vmem:[#allocation8 + $0x5a8] sm:$0xff]
    %v2804 = vld [vmem:[#allocation8 + $0x5b0] sm:$0xff]
    %v2805 = vld [vmem:[#allocation8 + $0x5b8] sm:$0xff]
    %v2806 = vld [vmem:[#allocation8 + $0x5c0] sm:$0xff]
    %v2807 = vld [vmem:[#allocation8 + $0x5c8] sm:$0xff]
    %v2808 = vld [vmem:[#allocation8 + $0x5d0] sm:$0xff]
    %v2809 = vld [vmem:[#allocation8 + $0x5d8] sm:$0xff]
    %v2810 = vld [vmem:[#allocation8 + $0x5e0] sm:$0xff]
    %v2811 = vld [vmem:[#allocation8 + $0x5e8] sm:$0xff]
    %v2812 = vld [vmem:[#allocation8 + $0x5f0] sm:$0xff]
    %v2813 = vld [vmem:[#allocation8 + $0x5f8] sm:$0xff]
    %v2814 = vld [vmem:[#allocation8 + $0x600] sm:$0xff]
    %v2815 = vld [vmem:[#allocation8 + $0x608] sm:$0xff]
    %v2816 = vld [vmem:[#allocation8 + $0x610] sm:$0xff]
    %v2817 = vld [vmem:[#allocation8 + $0x618] sm:$0xff]
    %v2818 = vld [vmem:[#allocation8 + $0x620] sm:$0xff]
    %v2819 = vld [vmem:[#allocation8 + $0x628] sm:$0xff]
    %v2820 = vld [vmem:[#allocation8 + $0x630] sm:$0xff]
    %v2821 = vld [vmem:[#allocation8 + $0x638] sm:$0xff]
    %v2822 = vld [vmem:[#allocation8 + $0x640] sm:$0xff]
    %v2823 = vld [vmem:[#allocation8 + $0x648] sm:$0xff]
    %v2824 = vld [vmem:[#allocation8 + $0x650] sm:$0xff]
    %v2825 = vld [vmem:[#allocation8 + $0x658] sm:$0xff]
    %v2826 = vld [vmem:[#allocation8 + $0x660] sm:$0xff]
    %v2827 = vld [vmem:[#allocation8 + $0x668] sm:$0xff]
    %v2828 = vld [vmem:[#allocation8 + $0x670] sm:$0xff]
    %v2829 = vld [vmem:[#allocation8 + $0x678] sm:$0xff]
    %v2830 = vld [vmem:[#allocation8 + $0x680] sm:$0xff]
    %v2831 = vld [vmem:[#allocation8 + $0x688] sm:$0xff]
    %v2832 = vld [vmem:[#allocation8 + $0x690] sm:$0xff]
    %v2833 = vld [vmem:[#allocation8 + $0x698] sm:$0xff]
    %v2834 = vld [vmem:[#allocation8 + $0x6a0] sm:$0xff]
    %v2835 = vld [vmem:[#allocation8 + $0x6a8] sm:$0xff]
    %v2836 = vld [vmem:[#allocation8 + $0x6b0] sm:$0xff]
    %v2837 = vld [vmem:[#allocation8 + $0x6b8] sm:$0xff]
    %v2838 = vld [vmem:[#allocation8 + $0x6c0] sm:$0xff]
    %v2839 = vld [vmem:[#allocation8 + $0x6c8] sm:$0xff]
    %v2840 = vld [vmem:[#allocation8 + $0x6d0] sm:$0xff]
    %v2841 = vld [vmem:[#allocation8 + $0x6d8] sm:$0xff]
    %v2842 = vld [vmem:[#allocation8 + $0x6e0] sm:$0xff]
    %v2843 = vld [vmem:[#allocation8 + $0x6e8] sm:$0xff]
    %v2844 = vld [vmem:[#allocation8 + $0x6f0] sm:$0xff]
    %v2845 = vld [vmem:[#allocation8 + $0x6f8] sm:$0xff]
    %v2846 = vld [vmem:[#allocation8 + $0x700] sm:$0xff]
    %v2847 = vld [vmem:[#allocation8 + $0x708] sm:$0xff]
    %v2848 = vld [vmem:[#allocation8 + $0x710] sm:$0xff]
    %v2849 = vld [vmem:[#allocation8 + $0x718] sm:$0xff]
    %v2850 = vld [vmem:[#allocation8 + $0x720] sm:$0xff]
    %v2851 = vld [vmem:[#allocation8 + $0x728] sm:$0xff]
    %v2852 = vld [vmem:[#allocation8 + $0x730] sm:$0xff]
    %v2853 = vld [vmem:[#allocation8 + $0x738] sm:$0xff]
    %v2854 = vld [vmem:[#allocation8 + $0x740] sm:$0xff]
    %v2855 = vld [vmem:[#allocation8 + $0x748] sm:$0xff]
    %v2856 = vld [vmem:[#allocation8 + $0x750] sm:$0xff]
    %v2857 = vld [vmem:[#allocation8 + $0x758] sm:$0xff]
    %v2858 = vld [vmem:[#allocation8 + $0x760] sm:$0xff]
    %v2859 = vld [vmem:[#allocation8 + $0x768] sm:$0xff]
    %v2860 = vld [vmem:[#allocation8 + $0x770] sm:$0xff]
    %v2861 = vld [vmem:[#allocation8 + $0x778] sm:$0xff]
    %v2862 = vld [vmem:[#allocation8 + $0x780] sm:$0xff]
    %v2863 = vld [vmem:[#allocation8 + $0x788] sm:$0xff]
    %v2864 = vld [vmem:[#allocation8 + $0x790] sm:$0xff]
    %v2865 = vld [vmem:[#allocation8 + $0x798] sm:$0xff]
    %v2866 = vld [vmem:[#allocation8 + $0x7a0] sm:$0xff]
    %v2867 = vld [vmem:[#allocation8 + $0x7a8] sm:$0xff]
    %v2868 = vld [vmem:[#allocation8 + $0x7b0] sm:$0xff]
    %v2869 = vld [vmem:[#allocation8 + $0x7b8] sm:$0xff]
    %v2870 = vld [vmem:[#allocation8 + $0x7c0] sm:$0xff]
    %v2871 = vld [vmem:[#allocation8 + $0x7c8] sm:$0xff]
    %v2872 = vld [vmem:[#allocation8 + $0x7d0] sm:$0xff]
    %v2873 = vld [vmem:[#allocation8 + $0x7d8] sm:$0xff]
    %v2874 = vld [vmem:[#allocation8 + $0x7e0] sm:$0xff]
    %v2875 = vld [vmem:[#allocation8 + $0x7e8] sm:$0xff]
    %v2876 = vld [vmem:[#allocation8 + $0x7f0] sm:$0xff]
    %v2877 = vld [vmem:[#allocation8 + $0x7f8] sm:$0xff]
    %v2878 = vld [vmem:[%s11] sm:$0xf]
    %v2880 = vlaneseq
    %v2881 = vshrl.u32 %v2880, 7
    %v2882 = vsub.s32 0, %v2881
    %v2883 = vrot.slane %v2878, %v2882
    %v2884 = vlaneseq
    %v2885 = vshrl.u32 %v2884, 7
    %v2886 = vsub.s32 1, %v2885
    %v2887 = vrot.slane %v2878, %v2886
    %v2888 = vlaneseq
    %v2889 = vshrl.u32 %v2888, 7
    %v2890 = vsub.s32 2, %v2889
    %v2891 = vrot.slane %v2878, %v2890
    %v2892 = vlaneseq
    %v2893 = vshrl.u32 %v2892, 7
    %v2894 = vsub.s32 3, %v2893
    %v2895 = vrot.slane %v2878, %v2894
    %v3156 = vunpack.c.l.b16 %v2622
    %v3157 = vunpack.c.h.b16 %v2622
    %v3158 = vunpack.c.l.b16 %v2623
    %v3159 = vunpack.c.h.b16 %v2623
    %v3160 = vunpack.c.l.b16 %v2624
    %v3161 = vunpack.c.h.b16 %v2624
    %v3162 = vunpack.c.l.b16 %v2625
    %v3163 = vunpack.c.h.b16 %v2625
    %v3164 = vunpack.c.l.b16 %v2626
    %v3165 = vunpack.c.h.b16 %v2626
    %v3166 = vunpack.c.l.b16 %v2627
    %v3167 = vunpack.c.h.b16 %v2627
    %v3168 = vunpack.c.l.b16 %v2628
    %v3169 = vunpack.c.h.b16 %v2628
    %v3170 = vunpack.c.l.b16 %v2629
    %v3171 = vunpack.c.h.b16 %v2629
    %v3172 = vunpack.c.l.b16 %v2630
    %v3173 = vunpack.c.h.b16 %v2630
    %v3174 = vunpack.c.l.b16 %v2631
    %v3175 = vunpack.c.h.b16 %v2631
    %v3176 = vunpack.c.l.b16 %v2632
    %v3177 = vunpack.c.h.b16 %v2632
    %v3178 = vunpack.c.l.b16 %v2633
    %v3179 = vunpack.c.h.b16 %v2633
    %v3180 = vunpack.c.l.b16 %v2634
    %v3181 = vunpack.c.h.b16 %v2634
    %v3182 = vunpack.c.l.b16 %v2635
    %v3183 = vunpack.c.h.b16 %v2635
    %v3184 = vunpack.c.l.b16 %v2636
    %v3185 = vunpack.c.h.b16 %v2636
    %v3186 = vunpack.c.l.b16 %v2637
    %v3187 = vunpack.c.h.b16 %v2637
    %v3188 = vunpack.c.l.b16 %v2638
    %v3189 = vunpack.c.h.b16 %v2638
    %v3190 = vunpack.c.l.b16 %v2639
    %v3191 = vunpack.c.h.b16 %v2639
    %v3192 = vunpack.c.l.b16 %v2640
    %v3193 = vunpack.c.h.b16 %v2640
    %v3194 = vunpack.c.l.b16 %v2641
    %v3195 = vunpack.c.h.b16 %v2641
    %v3196 = vunpack.c.l.b16 %v2642
    %v3197 = vunpack.c.h.b16 %v2642
    %v3198 = vunpack.c.l.b16 %v2643
    %v3199 = vunpack.c.h.b16 %v2643
    %v3200 = vunpack.c.l.b16 %v2644
    %v3201 = vunpack.c.h.b16 %v2644
    %v3202 = vunpack.c.l.b16 %v2645
    %v3203 = vunpack.c.h.b16 %v2645
    %v3204 = vunpack.c.l.b16 %v2646
    %v3205 = vunpack.c.h.b16 %v2646
    %v3206 = vunpack.c.l.b16 %v2647
    %v3207 = vunpack.c.h.b16 %v2647
    %v3208 = vunpack.c.l.b16 %v2648
    %v3209 = vunpack.c.h.b16 %v2648
    %v3210 = vunpack.c.l.b16 %v2649
    %v3211 = vunpack.c.h.b16 %v2649
    %v3212 = vunpack.c.l.b16 %v2650
    %v3213 = vunpack.c.h.b16 %v2650
    %v3214 = vunpack.c.l.b16 %v2651
    %v3215 = vunpack.c.h.b16 %v2651
    %v3216 = vunpack.c.l.b16 %v2652
    %v3217 = vunpack.c.h.b16 %v2652
    %v3218 = vunpack.c.l.b16 %v2653
    %v3219 = vunpack.c.h.b16 %v2653
    %v3220 = vunpack.c.l.b16 %v2654
    %v3221 = vunpack.c.h.b16 %v2654
    %v3222 = vunpack.c.l.b16 %v2655
    %v3223 = vunpack.c.h.b16 %v2655
    %v3224 = vunpack.c.l.b16 %v2656
    %v3225 = vunpack.c.h.b16 %v2656
    %v3226 = vunpack.c.l.b16 %v2657
    %v3227 = vunpack.c.h.b16 %v2657
    %v3228 = vunpack.c.l.b16 %v2658
    %v3229 = vunpack.c.h.b16 %v2658
    %v3230 = vunpack.c.l.b16 %v2659
    %v3231 = vunpack.c.h.b16 %v2659
    %v3232 = vunpack.c.l.b16 %v2660
    %v3233 = vunpack.c.h.b16 %v2660
    %v3234 = vunpack.c.l.b16 %v2661
    %v3235 = vunpack.c.h.b16 %v2661
    %v3236 = vunpack.c.l.b16 %v2662
    %v3237 = vunpack.c.h.b16 %v2662
    %v3238 = vunpack.c.l.b16 %v2663
    %v3239 = vunpack.c.h.b16 %v2663
    %v3240 = vunpack.c.l.b16 %v2664
    %v3241 = vunpack.c.h.b16 %v2664
    %v3242 = vunpack.c.l.b16 %v2665
    %v3243 = vunpack.c.h.b16 %v2665
    %v3244 = vunpack.c.l.b16 %v2666
    %v3245 = vunpack.c.h.b16 %v2666
    %v3246 = vunpack.c.l.b16 %v2667
    %v3247 = vunpack.c.h.b16 %v2667
    %v3248 = vunpack.c.l.b16 %v2668
    %v3249 = vunpack.c.h.b16 %v2668
    %v3250 = vunpack.c.l.b16 %v2669
    %v3251 = vunpack.c.h.b16 %v2669
    %v3252 = vunpack.c.l.b16 %v2670
    %v3253 = vunpack.c.h.b16 %v2670
    %v3254 = vunpack.c.l.b16 %v2671
    %v3255 = vunpack.c.h.b16 %v2671
    %v3256 = vunpack.c.l.b16 %v2672
    %v3257 = vunpack.c.h.b16 %v2672
    %v3258 = vunpack.c.l.b16 %v2673
    %v3259 = vunpack.c.h.b16 %v2673
    %v3260 = vunpack.c.l.b16 %v2674
    %v3261 = vunpack.c.h.b16 %v2674
    %v3262 = vunpack.c.l.b16 %v2675
    %v3263 = vunpack.c.h.b16 %v2675
    %v3264 = vunpack.c.l.b16 %v2676
    %v3265 = vunpack.c.h.b16 %v2676
    %v3266 = vunpack.c.l.b16 %v2677
    %v3267 = vunpack.c.h.b16 %v2677
    %v3268 = vunpack.c.l.b16 %v2678
    %v3269 = vunpack.c.h.b16 %v2678
    %v3270 = vunpack.c.l.b16 %v2679
    %v3271 = vunpack.c.h.b16 %v2679
    %v3272 = vunpack.c.l.b16 %v2680
    %v3273 = vunpack.c.h.b16 %v2680
    %v3274 = vunpack.c.l.b16 %v2681
    %v3275 = vunpack.c.h.b16 %v2681
    %v3276 = vunpack.c.l.b16 %v2682
    %v3277 = vunpack.c.h.b16 %v2682
    %v3278 = vunpack.c.l.b16 %v2683
    %v3279 = vunpack.c.h.b16 %v2683
    %v3280 = vunpack.c.l.b16 %v2684
    %v3281 = vunpack.c.h.b16 %v2684
    %v3282 = vunpack.c.l.b16 %v2685
    %v3283 = vunpack.c.h.b16 %v2685
    %v3284 = vunpack.c.l.b16 %v2686
    %v3285 = vunpack.c.h.b16 %v2686
    %v3286 = vunpack.c.l.b16 %v2687
    %v3287 = vunpack.c.h.b16 %v2687
    %v3288 = vunpack.c.l.b16 %v2688
    %v3289 = vunpack.c.h.b16 %v2688
    %v3290 = vunpack.c.l.b16 %v2689
    %v3291 = vunpack.c.h.b16 %v2689
    %v3292 = vunpack.c.l.b16 %v2690
    %v3293 = vunpack.c.h.b16 %v2690
    %v3294 = vunpack.c.l.b16 %v2691
    %v3295 = vunpack.c.h.b16 %v2691
    %v3296 = vunpack.c.l.b16 %v2692
    %v3297 = vunpack.c.h.b16 %v2692
    %v3298 = vunpack.c.l.b16 %v2693
    %v3299 = vunpack.c.h.b16 %v2693
    %v3300 = vunpack.c.l.b16 %v2694
    %v3301 = vunpack.c.h.b16 %v2694
    %v3302 = vunpack.c.l.b16 %v2695
    %v3303 = vunpack.c.h.b16 %v2695
    %v3304 = vunpack.c.l.b16 %v2696
    %v3305 = vunpack.c.h.b16 %v2696
    %v3306 = vunpack.c.l.b16 %v2697
    %v3307 = vunpack.c.h.b16 %v2697
    %v3308 = vunpack.c.l.b16 %v2698
    %v3309 = vunpack.c.h.b16 %v2698
    %v3310 = vunpack.c.l.b16 %v2699
    %v3311 = vunpack.c.h.b16 %v2699
    %v3312 = vunpack.c.l.b16 %v2700
    %v3313 = vunpack.c.h.b16 %v2700
    %v3314 = vunpack.c.l.b16 %v2701
    %v3315 = vunpack.c.h.b16 %v2701
    %v3316 = vunpack.c.l.b16 %v2702
    %v3317 = vunpack.c.h.b16 %v2702
    %v3318 = vunpack.c.l.b16 %v2703
    %v3319 = vunpack.c.h.b16 %v2703
    %v3320 = vunpack.c.l.b16 %v2704
    %v3321 = vunpack.c.h.b16 %v2704
    %v3322 = vunpack.c.l.b16 %v2705
    %v3323 = vunpack.c.h.b16 %v2705
    %v3324 = vunpack.c.l.b16 %v2706
    %v3325 = vunpack.c.h.b16 %v2706
    %v3326 = vunpack.c.l.b16 %v2707
    %v3327 = vunpack.c.h.b16 %v2707
    %v3328 = vunpack.c.l.b16 %v2708
    %v3329 = vunpack.c.h.b16 %v2708
    %v3330 = vunpack.c.l.b16 %v2709
    %v3331 = vunpack.c.h.b16 %v2709
    %v3332 = vunpack.c.l.b16 %v2710
    %v3333 = vunpack.c.h.b16 %v2710
    %v3334 = vunpack.c.l.b16 %v2711
    %v3335 = vunpack.c.h.b16 %v2711
    %v3336 = vunpack.c.l.b16 %v2712
    %v3337 = vunpack.c.h.b16 %v2712
    %v3338 = vunpack.c.l.b16 %v2713
    %v3339 = vunpack.c.h.b16 %v2713
    %v3340 = vunpack.c.l.b16 %v2714
    %v3341 = vunpack.c.h.b16 %v2714
    %v3342 = vunpack.c.l.b16 %v2715
    %v3343 = vunpack.c.h.b16 %v2715
    %v3344 = vunpack.c.l.b16 %v2716
    %v3345 = vunpack.c.h.b16 %v2716
    %v3346 = vunpack.c.l.b16 %v2717
    %v3347 = vunpack.c.h.b16 %v2717
    %v3348 = vunpack.c.l.b16 %v2718
    %v3349 = vunpack.c.h.b16 %v2718
    %v3350 = vunpack.c.l.b16 %v2719
    %v3351 = vunpack.c.h.b16 %v2719
    %v3352 = vunpack.c.l.b16 %v2720
    %v3353 = vunpack.c.h.b16 %v2720
    %v3354 = vunpack.c.l.b16 %v2721
    %v3355 = vunpack.c.h.b16 %v2721
    %v3356 = vunpack.c.l.b16 %v2722
    %v3357 = vunpack.c.h.b16 %v2722
    %v3358 = vunpack.c.l.b16 %v2723
    %v3359 = vunpack.c.h.b16 %v2723
    %v3360 = vunpack.c.l.b16 %v2724
    %v3361 = vunpack.c.h.b16 %v2724
    %v3362 = vunpack.c.l.b16 %v2725
    %v3363 = vunpack.c.h.b16 %v2725
    %v3364 = vunpack.c.l.b16 %v2726
    %v3365 = vunpack.c.h.b16 %v2726
    %v3366 = vunpack.c.l.b16 %v2727
    %v3367 = vunpack.c.h.b16 %v2727
    %v3368 = vunpack.c.l.b16 %v2728
    %v3369 = vunpack.c.h.b16 %v2728
    %v3370 = vunpack.c.l.b16 %v2729
    %v3371 = vunpack.c.h.b16 %v2729
    %v3372 = vunpack.c.l.b16 %v2730
    %v3373 = vunpack.c.h.b16 %v2730
    %v3374 = vunpack.c.l.b16 %v2731
    %v3375 = vunpack.c.h.b16 %v2731
    %v3376 = vunpack.c.l.b16 %v2732
    %v3377 = vunpack.c.h.b16 %v2732
    %v3378 = vunpack.c.l.b16 %v2733
    %v3379 = vunpack.c.h.b16 %v2733
    %v3380 = vunpack.c.l.b16 %v2734
    %v3381 = vunpack.c.h.b16 %v2734
    %v3382 = vunpack.c.l.b16 %v2735
    %v3383 = vunpack.c.h.b16 %v2735
    %v3384 = vunpack.c.l.b16 %v2736
    %v3385 = vunpack.c.h.b16 %v2736
    %v3386 = vunpack.c.l.b16 %v2737
    %v3387 = vunpack.c.h.b16 %v2737
    %v3388 = vunpack.c.l.b16 %v2738
    %v3389 = vunpack.c.h.b16 %v2738
    %v3390 = vunpack.c.l.b16 %v2739
    %v3391 = vunpack.c.h.b16 %v2739
    %v3392 = vunpack.c.l.b16 %v2740
    %v3393 = vunpack.c.h.b16 %v2740
    %v3394 = vunpack.c.l.b16 %v2741
    %v3395 = vunpack.c.h.b16 %v2741
    %v3396 = vunpack.c.l.b16 %v2742
    %v3397 = vunpack.c.h.b16 %v2742
    %v3398 = vunpack.c.l.b16 %v2743
    %v3399 = vunpack.c.h.b16 %v2743
    %v3400 = vunpack.c.l.b16 %v2744
    %v3401 = vunpack.c.h.b16 %v2744
    %v3402 = vunpack.c.l.b16 %v2745
    %v3403 = vunpack.c.h.b16 %v2745
    %v3404 = vunpack.c.l.b16 %v2746
    %v3405 = vunpack.c.h.b16 %v2746
    %v3406 = vunpack.c.l.b16 %v2747
    %v3407 = vunpack.c.h.b16 %v2747
    %v3408 = vunpack.c.l.b16 %v2748
    %v3409 = vunpack.c.h.b16 %v2748
    %v3410 = vunpack.c.l.b16 %v2749
    %v3411 = vunpack.c.h.b16 %v2749
    %v3412 = vunpack.c.l.b16 %v2750
    %v3413 = vunpack.c.h.b16 %v2750
    %v3414 = vunpack.c.l.b16 %v2751
    %v3415 = vunpack.c.h.b16 %v2751
    %v3416 = vunpack.c.l.b16 %v2752
    %v3417 = vunpack.c.h.b16 %v2752
    %v3418 = vunpack.c.l.b16 %v2753
    %v3419 = vunpack.c.h.b16 %v2753
    %v3420 = vunpack.c.l.b16 %v2754
    %v3421 = vunpack.c.h.b16 %v2754
    %v3422 = vunpack.c.l.b16 %v2755
    %v3423 = vunpack.c.h.b16 %v2755
    %v3424 = vunpack.c.l.b16 %v2756
    %v3425 = vunpack.c.h.b16 %v2756
    %v3426 = vunpack.c.l.b16 %v2757
    %v3427 = vunpack.c.h.b16 %v2757
    %v3428 = vunpack.c.l.b16 %v2758
    %v3429 = vunpack.c.h.b16 %v2758
    %v3430 = vunpack.c.l.b16 %v2759
    %v3431 = vunpack.c.h.b16 %v2759
    %v3432 = vunpack.c.l.b16 %v2760
    %v3433 = vunpack.c.h.b16 %v2760
    %v3434 = vunpack.c.l.b16 %v2761
    %v3435 = vunpack.c.h.b16 %v2761
    %v3436 = vunpack.c.l.b16 %v2762
    %v3437 = vunpack.c.h.b16 %v2762
    %v3438 = vunpack.c.l.b16 %v2763
    %v3439 = vunpack.c.h.b16 %v2763
    %v3440 = vunpack.c.l.b16 %v2764
    %v3441 = vunpack.c.h.b16 %v2764
    %v3442 = vunpack.c.l.b16 %v2765
    %v3443 = vunpack.c.h.b16 %v2765
    %v3444 = vunpack.c.l.b16 %v2766
    %v3445 = vunpack.c.h.b16 %v2766
    %v3446 = vunpack.c.l.b16 %v2767
    %v3447 = vunpack.c.h.b16 %v2767
    %v3448 = vunpack.c.l.b16 %v2768
    %v3449 = vunpack.c.h.b16 %v2768
    %v3450 = vunpack.c.l.b16 %v2769
    %v3451 = vunpack.c.h.b16 %v2769
    %v3452 = vunpack.c.l.b16 %v2770
    %v3453 = vunpack.c.h.b16 %v2770
    %v3454 = vunpack.c.l.b16 %v2771
    %v3455 = vunpack.c.h.b16 %v2771
    %v3456 = vunpack.c.l.b16 %v2772
    %v3457 = vunpack.c.h.b16 %v2772
    %v3458 = vunpack.c.l.b16 %v2773
    %v3459 = vunpack.c.h.b16 %v2773
    %v3460 = vunpack.c.l.b16 %v2774
    %v3461 = vunpack.c.h.b16 %v2774
    %v3462 = vunpack.c.l.b16 %v2775
    %v3463 = vunpack.c.h.b16 %v2775
    %v3464 = vunpack.c.l.b16 %v2776
    %v3465 = vunpack.c.h.b16 %v2776
    %v3466 = vunpack.c.l.b16 %v2777
    %v3467 = vunpack.c.h.b16 %v2777
    %v3468 = vunpack.c.l.b16 %v2778
    %v3469 = vunpack.c.h.b16 %v2778
    %v3470 = vunpack.c.l.b16 %v2779
    %v3471 = vunpack.c.h.b16 %v2779
    %v3472 = vunpack.c.l.b16 %v2780
    %v3473 = vunpack.c.h.b16 %v2780
    %v3474 = vunpack.c.l.b16 %v2781
    %v3475 = vunpack.c.h.b16 %v2781
    %v3476 = vunpack.c.l.b16 %v2782
    %v3477 = vunpack.c.h.b16 %v2782
    %v3478 = vunpack.c.l.b16 %v2783
    %v3479 = vunpack.c.h.b16 %v2783
    %v3480 = vunpack.c.l.b16 %v2784
    %v3481 = vunpack.c.h.b16 %v2784
    %v3482 = vunpack.c.l.b16 %v2785
    %v3483 = vunpack.c.h.b16 %v2785
    %v3484 = vunpack.c.l.b16 %v2786
    %v3485 = vunpack.c.h.b16 %v2786
    %v3486 = vunpack.c.l.b16 %v2787
    %v3487 = vunpack.c.h.b16 %v2787
    %v3488 = vunpack.c.l.b16 %v2788
    %v3489 = vunpack.c.h.b16 %v2788
    %v3490 = vunpack.c.l.b16 %v2789
    %v3491 = vunpack.c.h.b16 %v2789
    %v3492 = vunpack.c.l.b16 %v2790
    %v3493 = vunpack.c.h.b16 %v2790
    %v3494 = vunpack.c.l.b16 %v2791
    %v3495 = vunpack.c.h.b16 %v2791
    %v3496 = vunpack.c.l.b16 %v2792
    %v3497 = vunpack.c.h.b16 %v2792
    %v3498 = vunpack.c.l.b16 %v2793
    %v3499 = vunpack.c.h.b16 %v2793
    %v3500 = vunpack.c.l.b16 %v2794
    %v3501 = vunpack.c.h.b16 %v2794
    %v3502 = vunpack.c.l.b16 %v2795
    %v3503 = vunpack.c.h.b16 %v2795
    %v3504 = vunpack.c.l.b16 %v2796
    %v3505 = vunpack.c.h.b16 %v2796
    %v3506 = vunpack.c.l.b16 %v2797
    %v3507 = vunpack.c.h.b16 %v2797
    %v3508 = vunpack.c.l.b16 %v2798
    %v3509 = vunpack.c.h.b16 %v2798
    %v3510 = vunpack.c.l.b16 %v2799
    %v3511 = vunpack.c.h.b16 %v2799
    %v3512 = vunpack.c.l.b16 %v2800
    %v3513 = vunpack.c.h.b16 %v2800
    %v3514 = vunpack.c.l.b16 %v2801
    %v3515 = vunpack.c.h.b16 %v2801
    %v3516 = vunpack.c.l.b16 %v2802
    %v3517 = vunpack.c.h.b16 %v2802
    %v3518 = vunpack.c.l.b16 %v2803
    %v3519 = vunpack.c.h.b16 %v2803
    %v3520 = vunpack.c.l.b16 %v2804
    %v3521 = vunpack.c.h.b16 %v2804
    %v3522 = vunpack.c.l.b16 %v2805
    %v3523 = vunpack.c.h.b16 %v2805
    %v3524 = vunpack.c.l.b16 %v2806
    %v3525 = vunpack.c.h.b16 %v2806
    %v3526 = vunpack.c.l.b16 %v2807
    %v3527 = vunpack.c.h.b16 %v2807
    %v3528 = vunpack.c.l.b16 %v2808
    %v3529 = vunpack.c.h.b16 %v2808
    %v3530 = vunpack.c.l.b16 %v2809
    %v3531 = vunpack.c.h.b16 %v2809
    %v3532 = vunpack.c.l.b16 %v2810
    %v3533 = vunpack.c.h.b16 %v2810
    %v3534 = vunpack.c.l.b16 %v2811
    %v3535 = vunpack.c.h.b16 %v2811
    %v3536 = vunpack.c.l.b16 %v2812
    %v3537 = vunpack.c.h.b16 %v2812
    %v3538 = vunpack.c.l.b16 %v2813
    %v3539 = vunpack.c.h.b16 %v2813
    %v3540 = vunpack.c.l.b16 %v2814
    %v3541 = vunpack.c.h.b16 %v2814
    %v3542 = vunpack.c.l.b16 %v2815
    %v3543 = vunpack.c.h.b16 %v2815
    %v3544 = vunpack.c.l.b16 %v2816
    %v3545 = vunpack.c.h.b16 %v2816
    %v3546 = vunpack.c.l.b16 %v2817
    %v3547 = vunpack.c.h.b16 %v2817
    %v3548 = vunpack.c.l.b16 %v2818
    %v3549 = vunpack.c.h.b16 %v2818
    %v3550 = vunpack.c.l.b16 %v2819
    %v3551 = vunpack.c.h.b16 %v2819
    %v3552 = vunpack.c.l.b16 %v2820
    %v3553 = vunpack.c.h.b16 %v2820
    %v3554 = vunpack.c.l.b16 %v2821
    %v3555 = vunpack.c.h.b16 %v2821
    %v3556 = vunpack.c.l.b16 %v2822
    %v3557 = vunpack.c.h.b16 %v2822
    %v3558 = vunpack.c.l.b16 %v2823
    %v3559 = vunpack.c.h.b16 %v2823
    %v3560 = vunpack.c.l.b16 %v2824
    %v3561 = vunpack.c.h.b16 %v2824
    %v3562 = vunpack.c.l.b16 %v2825
    %v3563 = vunpack.c.h.b16 %v2825
    %v3564 = vunpack.c.l.b16 %v2826
    %v3565 = vunpack.c.h.b16 %v2826
    %v3566 = vunpack.c.l.b16 %v2827
    %v3567 = vunpack.c.h.b16 %v2827
    %v3568 = vunpack.c.l.b16 %v2828
    %v3569 = vunpack.c.h.b16 %v2828
    %v3570 = vunpack.c.l.b16 %v2829
    %v3571 = vunpack.c.h.b16 %v2829
    %v3572 = vunpack.c.l.b16 %v2830
    %v3573 = vunpack.c.h.b16 %v2830
    %v3574 = vunpack.c.l.b16 %v2831
    %v3575 = vunpack.c.h.b16 %v2831
    %v3576 = vunpack.c.l.b16 %v2832
    %v3577 = vunpack.c.h.b16 %v2832
    %v3578 = vunpack.c.l.b16 %v2833
    %v3579 = vunpack.c.h.b16 %v2833
    %v3580 = vunpack.c.l.b16 %v2834
    %v3581 = vunpack.c.h.b16 %v2834
    %v3582 = vunpack.c.l.b16 %v2835
    %v3583 = vunpack.c.h.b16 %v2835
    %v3584 = vunpack.c.l.b16 %v2836
    %v3585 = vunpack.c.h.b16 %v2836
    %v3586 = vunpack.c.l.b16 %v2837
    %v3587 = vunpack.c.h.b16 %v2837
    %v3588 = vunpack.c.l.b16 %v2838
    %v3589 = vunpack.c.h.b16 %v2838
    %v3590 = vunpack.c.l.b16 %v2839
    %v3591 = vunpack.c.h.b16 %v2839
    %v3592 = vunpack.c.l.b16 %v2840
    %v3593 = vunpack.c.h.b16 %v2840
    %v3594 = vunpack.c.l.b16 %v2841
    %v3595 = vunpack.c.h.b16 %v2841
    %v3596 = vunpack.c.l.b16 %v2842
    %v3597 = vunpack.c.h.b16 %v2842
    %v3598 = vunpack.c.l.b16 %v2843
    %v3599 = vunpack.c.h.b16 %v2843
    %v3600 = vunpack.c.l.b16 %v2844
    %v3601 = vunpack.c.h.b16 %v2844
    %v3602 = vunpack.c.l.b16 %v2845
    %v3603 = vunpack.c.h.b16 %v2845
    %v3604 = vunpack.c.l.b16 %v2846
    %v3605 = vunpack.c.h.b16 %v2846
    %v3606 = vunpack.c.l.b16 %v2847
    %v3607 = vunpack.c.h.b16 %v2847
    %v3608 = vunpack.c.l.b16 %v2848
    %v3609 = vunpack.c.h.b16 %v2848
    %v3610 = vunpack.c.l.b16 %v2849
    %v3611 = vunpack.c.h.b16 %v2849
    %v3612 = vunpack.c.l.b16 %v2850
    %v3613 = vunpack.c.h.b16 %v2850
    %v3614 = vunpack.c.l.b16 %v2851
    %v3615 = vunpack.c.h.b16 %v2851
    %v3616 = vunpack.c.l.b16 %v2852
    %v3617 = vunpack.c.h.b16 %v2852
    %v3618 = vunpack.c.l.b16 %v2853
    %v3619 = vunpack.c.h.b16 %v2853
    %v3620 = vunpack.c.l.b16 %v2854
    %v3621 = vunpack.c.h.b16 %v2854
    %v3622 = vunpack.c.l.b16 %v2855
    %v3623 = vunpack.c.h.b16 %v2855
    %v3624 = vunpack.c.l.b16 %v2856
    %v3625 = vunpack.c.h.b16 %v2856
    %v3626 = vunpack.c.l.b16 %v2857
    %v3627 = vunpack.c.h.b16 %v2857
    %v3628 = vunpack.c.l.b16 %v2858
    %v3629 = vunpack.c.h.b16 %v2858
    %v3630 = vunpack.c.l.b16 %v2859
    %v3631 = vunpack.c.h.b16 %v2859
    %v3632 = vunpack.c.l.b16 %v2860
    %v3633 = vunpack.c.h.b16 %v2860
    %v3634 = vunpack.c.l.b16 %v2861
    %v3635 = vunpack.c.h.b16 %v2861
    %v3636 = vunpack.c.l.b16 %v2862
    %v3637 = vunpack.c.h.b16 %v2862
    %v3638 = vunpack.c.l.b16 %v2863
    %v3639 = vunpack.c.h.b16 %v2863
    %v3640 = vunpack.c.l.b16 %v2864
    %v3641 = vunpack.c.h.b16 %v2864
    %v3642 = vunpack.c.l.b16 %v2865
    %v3643 = vunpack.c.h.b16 %v2865
    %v3644 = vunpack.c.l.b16 %v2866
    %v3645 = vunpack.c.h.b16 %v2866
    %v3646 = vunpack.c.l.b16 %v2867
    %v3647 = vunpack.c.h.b16 %v2867
    %v3648 = vunpack.c.l.b16 %v2868
    %v3649 = vunpack.c.h.b16 %v2868
    %v3650 = vunpack.c.l.b16 %v2869
    %v3651 = vunpack.c.h.b16 %v2869
    %v3652 = vunpack.c.l.b16 %v2870
    %v3653 = vunpack.c.h.b16 %v2870
    %v3654 = vunpack.c.l.b16 %v2871
    %v3655 = vunpack.c.h.b16 %v2871
    %v3656 = vunpack.c.l.b16 %v2872
    %v3657 = vunpack.c.h.b16 %v2872
    %v3658 = vunpack.c.l.b16 %v2873
    %v3659 = vunpack.c.h.b16 %v2873
    %v3660 = vunpack.c.l.b16 %v2874
    %v3661 = vunpack.c.h.b16 %v2874
    %v3662 = vunpack.c.l.b16 %v2875
    %v3663 = vunpack.c.h.b16 %v2875
    %v3664 = vunpack.c.l.b16 %v2876
    %v3665 = vunpack.c.h.b16 %v2876
    %v3666 = vunpack.c.l.b16 %v2877
    %v3667 = vunpack.c.h.b16 %v2877
    %v3668 = vpack.c.b16 %v3160, %v3156
    %v3669 = vpack.c.b16 %v3161, %v3157
    %v3670 = vpack.c.b16 %v3162, %v3158
    %v3671 = vpack.c.b16 %v3163, %v3159
    %v3672 = vpack.c.b16 %v3168, %v3164
    %v3673 = vpack.c.b16 %v3169, %v3165
    %v3674 = vpack.c.b16 %v3170, %v3166
    %v3675 = vpack.c.b16 %v3171, %v3167
    %v3676 = vpack.c.b16 %v3176, %v3172
    %v3677 = vpack.c.b16 %v3177, %v3173
    %v3678 = vpack.c.b16 %v3178, %v3174
    %v3679 = vpack.c.b16 %v3179, %v3175
    %v3680 = vpack.c.b16 %v3184, %v3180
    %v3681 = vpack.c.b16 %v3185, %v3181
    %v3682 = vpack.c.b16 %v3186, %v3182
    %v3683 = vpack.c.b16 %v3187, %v3183
    %v3684 = vpack.c.b16 %v3192, %v3188
    %v3685 = vpack.c.b16 %v3193, %v3189
    %v3686 = vpack.c.b16 %v3194, %v3190
    %v3687 = vpack.c.b16 %v3195, %v3191
    %v3688 = vpack.c.b16 %v3200, %v3196
    %v3689 = vpack.c.b16 %v3201, %v3197
    %v3690 = vpack.c.b16 %v3202, %v3198
    %v3691 = vpack.c.b16 %v3203, %v3199
    %v3692 = vpack.c.b16 %v3208, %v3204
    %v3693 = vpack.c.b16 %v3209, %v3205
    %v3694 = vpack.c.b16 %v3210, %v3206
    %v3695 = vpack.c.b16 %v3211, %v3207
    %v3696 = vpack.c.b16 %v3216, %v3212
    %v3697 = vpack.c.b16 %v3217, %v3213
    %v3698 = vpack.c.b16 %v3218, %v3214
    %v3699 = vpack.c.b16 %v3219, %v3215
    %v3700 = vpack.c.b16 %v3224, %v3220
    %v3701 = vpack.c.b16 %v3225, %v3221
    %v3702 = vpack.c.b16 %v3226, %v3222
    %v3703 = vpack.c.b16 %v3227, %v3223
    %v3704 = vpack.c.b16 %v3232, %v3228
    %v3705 = vpack.c.b16 %v3233, %v3229
    %v3706 = vpack.c.b16 %v3234, %v3230
    %v3707 = vpack.c.b16 %v3235, %v3231
    %v3708 = vpack.c.b16 %v3240, %v3236
    %v3709 = vpack.c.b16 %v3241, %v3237
    %v3710 = vpack.c.b16 %v3242, %v3238
    %v3711 = vpack.c.b16 %v3243, %v3239
    %v3712 = vpack.c.b16 %v3248, %v3244
    %v3713 = vpack.c.b16 %v3249, %v3245
    %v3714 = vpack.c.b16 %v3250, %v3246
    %v3715 = vpack.c.b16 %v3251, %v3247
    %v3716 = vpack.c.b16 %v3256, %v3252
    %v3717 = vpack.c.b16 %v3257, %v3253
    %v3718 = vpack.c.b16 %v3258, %v3254
    %v3719 = vpack.c.b16 %v3259, %v3255
    %v3720 = vpack.c.b16 %v3264, %v3260
    %v3721 = vpack.c.b16 %v3265, %v3261
    %v3722 = vpack.c.b16 %v3266, %v3262
    %v3723 = vpack.c.b16 %v3267, %v3263
    %v3724 = vpack.c.b16 %v3272, %v3268
    %v3725 = vpack.c.b16 %v3273, %v3269
    %v3726 = vpack.c.b16 %v3274, %v3270
    %v3727 = vpack.c.b16 %v3275, %v3271
    %v3728 = vpack.c.b16 %v3280, %v3276
    %v3729 = vpack.c.b16 %v3281, %v3277
    %v3730 = vpack.c.b16 %v3282, %v3278
    %v3731 = vpack.c.b16 %v3283, %v3279
    %v3732 = vpack.c.b16 %v3288, %v3284
    %v3733 = vpack.c.b16 %v3289, %v3285
    %v3734 = vpack.c.b16 %v3290, %v3286
    %v3735 = vpack.c.b16 %v3291, %v3287
    %v3736 = vpack.c.b16 %v3296, %v3292
    %v3737 = vpack.c.b16 %v3297, %v3293
    %v3738 = vpack.c.b16 %v3298, %v3294
    %v3739 = vpack.c.b16 %v3299, %v3295
    %v3740 = vpack.c.b16 %v3304, %v3300
    %v3741 = vpack.c.b16 %v3305, %v3301
    %v3742 = vpack.c.b16 %v3306, %v3302
    %v3743 = vpack.c.b16 %v3307, %v3303
    %v3744 = vpack.c.b16 %v3312, %v3308
    %v3745 = vpack.c.b16 %v3313, %v3309
    %v3746 = vpack.c.b16 %v3314, %v3310
    %v3747 = vpack.c.b16 %v3315, %v3311
    %v3748 = vpack.c.b16 %v3320, %v3316
    %v3749 = vpack.c.b16 %v3321, %v3317
    %v3750 = vpack.c.b16 %v3322, %v3318
    %v3751 = vpack.c.b16 %v3323, %v3319
    %v3752 = vpack.c.b16 %v3328, %v3324
    %v3753 = vpack.c.b16 %v3329, %v3325
    %v3754 = vpack.c.b16 %v3330, %v3326
    %v3755 = vpack.c.b16 %v3331, %v3327
    %v3756 = vpack.c.b16 %v3336, %v3332
    %v3757 = vpack.c.b16 %v3337, %v3333
    %v3758 = vpack.c.b16 %v3338, %v3334
    %v3759 = vpack.c.b16 %v3339, %v3335
    %v3760 = vpack.c.b16 %v3344, %v3340
    %v3761 = vpack.c.b16 %v3345, %v3341
    %v3762 = vpack.c.b16 %v3346, %v3342
    %v3763 = vpack.c.b16 %v3347, %v3343
    %v3764 = vpack.c.b16 %v3352, %v3348
    %v3765 = vpack.c.b16 %v3353, %v3349
    %v3766 = vpack.c.b16 %v3354, %v3350
    %v3767 = vpack.c.b16 %v3355, %v3351
    %v3768 = vpack.c.b16 %v3360, %v3356
    %v3769 = vpack.c.b16 %v3361, %v3357
    %v3770 = vpack.c.b16 %v3362, %v3358
    %v3771 = vpack.c.b16 %v3363, %v3359
    %v3772 = vpack.c.b16 %v3368, %v3364
    %v3773 = vpack.c.b16 %v3369, %v3365
    %v3774 = vpack.c.b16 %v3370, %v3366
    %v3775 = vpack.c.b16 %v3371, %v3367
    %v3776 = vpack.c.b16 %v3376, %v3372
    %v3777 = vpack.c.b16 %v3377, %v3373
    %v3778 = vpack.c.b16 %v3378, %v3374
    %v3779 = vpack.c.b16 %v3379, %v3375
    %v3780 = vpack.c.b16 %v3384, %v3380
    %v3781 = vpack.c.b16 %v3385, %v3381
    %v3782 = vpack.c.b16 %v3386, %v3382
    %v3783 = vpack.c.b16 %v3387, %v3383
    %v3784 = vpack.c.b16 %v3392, %v3388
    %v3785 = vpack.c.b16 %v3393, %v3389
    %v3786 = vpack.c.b16 %v3394, %v3390
    %v3787 = vpack.c.b16 %v3395, %v3391
    %v3788 = vpack.c.b16 %v3400, %v3396
    %v3789 = vpack.c.b16 %v3401, %v3397
    %v3790 = vpack.c.b16 %v3402, %v3398
    %v3791 = vpack.c.b16 %v3403, %v3399
    %v3792 = vpack.c.b16 %v3408, %v3404
    %v3793 = vpack.c.b16 %v3409, %v3405
    %v3794 = vpack.c.b16 %v3410, %v3406
    %v3795 = vpack.c.b16 %v3411, %v3407
    %v3796 = vpack.c.b16 %v3416, %v3412
    %v3797 = vpack.c.b16 %v3417, %v3413
    %v3798 = vpack.c.b16 %v3418, %v3414
    %v3799 = vpack.c.b16 %v3419, %v3415
    %v3800 = vpack.c.b16 %v3424, %v3420
    %v3801 = vpack.c.b16 %v3425, %v3421
    %v3802 = vpack.c.b16 %v3426, %v3422
    %v3803 = vpack.c.b16 %v3427, %v3423
    %v3804 = vpack.c.b16 %v3432, %v3428
    %v3805 = vpack.c.b16 %v3433, %v3429
    %v3806 = vpack.c.b16 %v3434, %v3430
    %v3807 = vpack.c.b16 %v3435, %v3431
    %v3808 = vpack.c.b16 %v3440, %v3436
    %v3809 = vpack.c.b16 %v3441, %v3437
    %v3810 = vpack.c.b16 %v3442, %v3438
    %v3811 = vpack.c.b16 %v3443, %v3439
    %v3812 = vpack.c.b16 %v3448, %v3444
    %v3813 = vpack.c.b16 %v3449, %v3445
    %v3814 = vpack.c.b16 %v3450, %v3446
    %v3815 = vpack.c.b16 %v3451, %v3447
    %v3816 = vpack.c.b16 %v3456, %v3452
    %v3817 = vpack.c.b16 %v3457, %v3453
    %v3818 = vpack.c.b16 %v3458, %v3454
    %v3819 = vpack.c.b16 %v3459, %v3455
    %v3820 = vpack.c.b16 %v3464, %v3460
    %v3821 = vpack.c.b16 %v3465, %v3461
    %v3822 = vpack.c.b16 %v3466, %v3462
    %v3823 = vpack.c.b16 %v3467, %v3463
    %v3824 = vpack.c.b16 %v3472, %v3468
    %v3825 = vpack.c.b16 %v3473, %v3469
    %v3826 = vpack.c.b16 %v3474, %v3470
    %v3827 = vpack.c.b16 %v3475, %v3471
    %v3828 = vpack.c.b16 %v3480, %v3476
    %v3829 = vpack.c.b16 %v3481, %v3477
    %v3830 = vpack.c.b16 %v3482, %v3478
    %v3831 = vpack.c.b16 %v3483, %v3479
    %v3832 = vpack.c.b16 %v3488, %v3484
    %v3833 = vpack.c.b16 %v3489, %v3485
    %v3834 = vpack.c.b16 %v3490, %v3486
    %v3835 = vpack.c.b16 %v3491, %v3487
    %v3836 = vpack.c.b16 %v3496, %v3492
    %v3837 = vpack.c.b16 %v3497, %v3493
    %v3838 = vpack.c.b16 %v3498, %v3494
    %v3839 = vpack.c.b16 %v3499, %v3495
    %v3840 = vpack.c.b16 %v3504, %v3500
    %v3841 = vpack.c.b16 %v3505, %v3501
    %v3842 = vpack.c.b16 %v3506, %v3502
    %v3843 = vpack.c.b16 %v3507, %v3503
    %v3844 = vpack.c.b16 %v3512, %v3508
    %v3845 = vpack.c.b16 %v3513, %v3509
    %v3846 = vpack.c.b16 %v3514, %v3510
    %v3847 = vpack.c.b16 %v3515, %v3511
    %v3848 = vpack.c.b16 %v3520, %v3516
    %v3849 = vpack.c.b16 %v3521, %v3517
    %v3850 = vpack.c.b16 %v3522, %v3518
    %v3851 = vpack.c.b16 %v3523, %v3519
    %v3852 = vpack.c.b16 %v3528, %v3524
    %v3853 = vpack.c.b16 %v3529, %v3525
    %v3854 = vpack.c.b16 %v3530, %v3526
    %v3855 = vpack.c.b16 %v3531, %v3527
    %v3856 = vpack.c.b16 %v3536, %v3532
    %v3857 = vpack.c.b16 %v3537, %v3533
    %v3858 = vpack.c.b16 %v3538, %v3534
    %v3859 = vpack.c.b16 %v3539, %v3535
    %v3860 = vpack.c.b16 %v3544, %v3540
    %v3861 = vpack.c.b16 %v3545, %v3541
    %v3862 = vpack.c.b16 %v3546, %v3542
    %v3863 = vpack.c.b16 %v3547, %v3543
    %v3864 = vpack.c.b16 %v3552, %v3548
    %v3865 = vpack.c.b16 %v3553, %v3549
    %v3866 = vpack.c.b16 %v3554, %v3550
    %v3867 = vpack.c.b16 %v3555, %v3551
    %v3868 = vpack.c.b16 %v3560, %v3556
    %v3869 = vpack.c.b16 %v3561, %v3557
    %v3870 = vpack.c.b16 %v3562, %v3558
    %v3871 = vpack.c.b16 %v3563, %v3559
    %v3872 = vpack.c.b16 %v3568, %v3564
    %v3873 = vpack.c.b16 %v3569, %v3565
    %v3874 = vpack.c.b16 %v3570, %v3566
    %v3875 = vpack.c.b16 %v3571, %v3567
    %v3876 = vpack.c.b16 %v3576, %v3572
    %v3877 = vpack.c.b16 %v3577, %v3573
    %v3878 = vpack.c.b16 %v3578, %v3574
    %v3879 = vpack.c.b16 %v3579, %v3575
    %v3880 = vpack.c.b16 %v3584, %v3580
    %v3881 = vpack.c.b16 %v3585, %v3581
    %v3882 = vpack.c.b16 %v3586, %v3582
    %v3883 = vpack.c.b16 %v3587, %v3583
    %v3884 = vpack.c.b16 %v3592, %v3588
    %v3885 = vpack.c.b16 %v3593, %v3589
    %v3886 = vpack.c.b16 %v3594, %v3590
    %v3887 = vpack.c.b16 %v3595, %v3591
    %v3888 = vpack.c.b16 %v3600, %v3596
    %v3889 = vpack.c.b16 %v3601, %v3597
    %v3890 = vpack.c.b16 %v3602, %v3598
    %v3891 = vpack.c.b16 %v3603, %v3599
    %v3892 = vpack.c.b16 %v3608, %v3604
    %v3893 = vpack.c.b16 %v3609, %v3605
    %v3894 = vpack.c.b16 %v3610, %v3606
    %v3895 = vpack.c.b16 %v3611, %v3607
    %v3896 = vpack.c.b16 %v3616, %v3612
    %v3897 = vpack.c.b16 %v3617, %v3613
    %v3898 = vpack.c.b16 %v3618, %v3614
    %v3899 = vpack.c.b16 %v3619, %v3615
    %v3900 = vpack.c.b16 %v3624, %v3620
    %v3901 = vpack.c.b16 %v3625, %v3621
    %v3902 = vpack.c.b16 %v3626, %v3622
    %v3903 = vpack.c.b16 %v3627, %v3623
    %v3904 = vpack.c.b16 %v3632, %v3628
    %v3905 = vpack.c.b16 %v3633, %v3629
    %v3906 = vpack.c.b16 %v3634, %v3630
    %v3907 = vpack.c.b16 %v3635, %v3631
    %v3908 = vpack.c.b16 %v3640, %v3636
    %v3909 = vpack.c.b16 %v3641, %v3637
    %v3910 = vpack.c.b16 %v3642, %v3638
    %v3911 = vpack.c.b16 %v3643, %v3639
    %v3912 = vpack.c.b16 %v3648, %v3644
    %v3913 = vpack.c.b16 %v3649, %v3645
    %v3914 = vpack.c.b16 %v3650, %v3646
    %v3915 = vpack.c.b16 %v3651, %v3647
    %v3916 = vpack.c.b16 %v3656, %v3652
    %v3917 = vpack.c.b16 %v3657, %v3653
    %v3918 = vpack.c.b16 %v3658, %v3654
    %v3919 = vpack.c.b16 %v3659, %v3655
    %v3920 = vpack.c.b16 %v3664, %v3660
    %v3921 = vpack.c.b16 %v3665, %v3661
    %v3922 = vpack.c.b16 %v3666, %v3662
    %v3923 = vpack.c.b16 %v3667, %v3663
    %4180 = vmatprep.subr.bf16.mxu0 %v3697
    %4181 = vmatpush1.bf16.msra.mxu0 %v3696
    %4182 = vmatprep.subr.bf16.mxu0 %v3693
    %4183 = vmatpush1.bf16.msra.mxu0 %v3692
    %4184 = vmatprep.subr.bf16.mxu0 %v3689
    %4185 = vmatpush1.bf16.msra.mxu0 %v3688
    %4186 = vmatprep.subr.bf16.mxu0 %v3685
    %4187 = vmatpush1.bf16.msra.mxu0 %v3684
    %4188 = vmatprep.subr.bf16.mxu0 %v3681
    %4189 = vmatpush1.bf16.msra.mxu0 %v3680
    %4190 = vmatprep.subr.bf16.mxu0 %v3677
    %4191 = vmatpush1.bf16.msra.mxu0 %v3676
    %4192 = vmatprep.subr.bf16.mxu0 %v3673
    %4193 = vmatpush1.bf16.msra.mxu0 %v3672
    %4194 = vmatprep.subr.bf16.mxu0 %v3669
    %4195 = vmatpush1.bf16.msra.mxu0 %v3668
    %4196 = vmatprep.subr.bf16.mxu0 %v3729
    %4197 = vmatpush2.bf16.msra.mxu0 %v3728
    %4198 = vmatprep.subr.bf16.mxu0 %v3725
    %4199 = vmatpush2.bf16.msra.mxu0 %v3724
    %4200 = vmatprep.subr.bf16.mxu0 %v3721
    %4201 = vmatpush2.bf16.msra.mxu0 %v3720
    %4202 = vmatprep.subr.bf16.mxu0 %v3717
    %4203 = vmatpush2.bf16.msra.mxu0 %v3716
    %4204 = vmatprep.subr.bf16.mxu0 %v3713
    %4205 = vmatpush2.bf16.msra.mxu0 %v3712
    %4206 = vmatprep.subr.bf16.mxu0 %v3709
    %4207 = vmatpush2.bf16.msra.mxu0 %v3708
    %4208 = vmatprep.subr.bf16.mxu0 %v3705
    %4209 = vmatpush2.bf16.msra.mxu0 %v3704
    %4210 = vmatprep.subr.bf16.mxu0 %v3701
    %4211 = vmatpush2.bf16.msra.mxu0 %v3700
    %4212 = vmatprep.mubr.bf16.mxu0 %v2615
    %4213 = vmatmul.mubr.bf16.gmra.mxu0 %v2614
    %v4214 = vpop.f32.mrf.mxu0
    %v4215 = vadd.f32 %v2883, %v4214
    %v4216 = vpop.f32.mrf.mxu0
    %v4217 = vadd.f32 %v2887, %v4216
    %v4218 = vpop.f32.mrf.mxu0
    %v4219 = vpop.f32.mrf.mxu0
    %4220 = vdwg.mxu0
    %4221 = vmatprep.subr.bf16.mxu0 %v3761
    %4222 = vmatpush1.bf16.msra.mxu0 %v3760
    %4223 = vmatprep.subr.bf16.mxu0 %v3757
    %4224 = vmatpush1.bf16.msra.mxu0 %v3756
    %4225 = vmatprep.subr.bf16.mxu0 %v3753
    %4226 = vmatpush1.bf16.msra.mxu0 %v3752
    %4227 = vmatprep.subr.bf16.mxu0 %v3749
    %4228 = vmatpush1.bf16.msra.mxu0 %v3748
    %4229 = vmatprep.subr.bf16.mxu0 %v3745
    %4230 = vmatpush1.bf16.msra.mxu0 %v3744
    %4231 = vmatprep.subr.bf16.mxu0 %v3741
    %4232 = vmatpush1.bf16.msra.mxu0 %v3740
    %4233 = vmatprep.subr.bf16.mxu0 %v3737
    %4234 = vmatpush1.bf16.msra.mxu0 %v3736
    %4235 = vmatprep.subr.bf16.mxu0 %v3733
    %4236 = vmatpush1.bf16.msra.mxu0 %v3732
    %4237 = vmatprep.subr.bf16.mxu0 %v3793
    %4238 = vmatpush2.bf16.msra.mxu0 %v3792
    %4239 = vmatprep.subr.bf16.mxu0 %v3789
    %4240 = vmatpush2.bf16.msra.mxu0 %v3788
    %4241 = vmatprep.subr.bf16.mxu0 %v3785
    %4242 = vmatpush2.bf16.msra.mxu0 %v3784
    %4243 = vmatprep.subr.bf16.mxu0 %v3781
    %4244 = vmatpush2.bf16.msra.mxu0 %v3780
    %4245 = vmatprep.subr.bf16.mxu0 %v3777
    %4246 = vmatpush2.bf16.msra.mxu0 %v3776
    %4247 = vmatprep.subr.bf16.mxu0 %v3773
    %4248 = vmatpush2.bf16.msra.mxu0 %v3772
    %4249 = vmatprep.subr.bf16.mxu0 %v3769
    %4250 = vmatpush2.bf16.msra.mxu0 %v3768
    %4251 = vmatprep.subr.bf16.mxu0 %v3765
    %4252 = vmatpush2.bf16.msra.mxu0 %v3764
    %4253 = vmatprep.mubr.bf16.mxu0 %v2617
    %4254 = vmatmul.mubr.bf16.gmra.mxu0 %v2616
    %v4255 = vpop.f32.mrf.mxu0
    %v4256 = vadd.f32 %v4215, %v4255
    %v4257 = vpop.f32.mrf.mxu0
    %v4258 = vadd.f32 %v4217, %v4257
    %v4259 = vpop.f32.mrf.mxu0
    %v4260 = vpop.f32.mrf.mxu0
    %4261 = vdwg.mxu0
    %4262 = vmatprep.subr.bf16.mxu0 %v3825
    %4263 = vmatpush1.bf16.msra.mxu0 %v3824
    %4264 = vmatprep.subr.bf16.mxu0 %v3821
    %4265 = vmatpush1.bf16.msra.mxu0 %v3820
    %4266 = vmatprep.subr.bf16.mxu0 %v3817
    %4267 = vmatpush1.bf16.msra.mxu0 %v3816
    %4268 = vmatprep.subr.bf16.mxu0 %v3813
    %4269 = vmatpush1.bf16.msra.mxu0 %v3812
    %4270 = vmatprep.subr.bf16.mxu0 %v3809
    %4271 = vmatpush1.bf16.msra.mxu0 %v3808
    %4272 = vmatprep.subr.bf16.mxu0 %v3805
    %4273 = vmatpush1.bf16.msra.mxu0 %v3804
    %4274 = vmatprep.subr.bf16.mxu0 %v3801
    %4275 = vmatpush1.bf16.msra.mxu0 %v3800
    %4276 = vmatprep.subr.bf16.mxu0 %v3797
    %4277 = vmatpush1.bf16.msra.mxu0 %v3796
    %4278 = vmatprep.subr.bf16.mxu0 %v3857
    %4279 = vmatpush2.bf16.msra.mxu0 %v3856
    %4280 = vmatprep.subr.bf16.mxu0 %v3853
    %4281 = vmatpush2.bf16.msra.mxu0 %v3852
    %4282 = vmatprep.subr.bf16.mxu0 %v3849
    %4283 = vmatpush2.bf16.msra.mxu0 %v3848
    %4284 = vmatprep.subr.bf16.mxu0 %v3845
    %4285 = vmatpush2.bf16.msra.mxu0 %v3844
    %4286 = vmatprep.subr.bf16.mxu0 %v3841
    %4287 = vmatpush2.bf16.msra.mxu0 %v3840
    %4288 = vmatprep.subr.bf16.mxu0 %v3837
    %4289 = vmatpush2.bf16.msra.mxu0 %v3836
    %4290 = vmatprep.subr.bf16.mxu0 %v3833
    %4291 = vmatpush2.bf16.msra.mxu0 %v3832
    %4292 = vmatprep.subr.bf16.mxu0 %v3829
    %4293 = vmatpush2.bf16.msra.mxu0 %v3828
    %4294 = vmatprep.mubr.bf16.mxu0 %v2619
    %4295 = vmatmul.mubr.bf16.gmra.mxu0 %v2618
    %v4296 = vpop.f32.mrf.mxu0
    %v4297 = vadd.f32 %v4256, %v4296
    %v4298 = vpop.f32.mrf.mxu0
    %v4299 = vadd.f32 %v4258, %v4298
    %v4300 = vpop.f32.mrf.mxu0
    %v4301 = vpop.f32.mrf.mxu0
    %4302 = vdwg.mxu0
    %4303 = vmatprep.subr.bf16.mxu0 %v3889
    %4304 = vmatpush1.bf16.msra.mxu0 %v3888
    %4305 = vmatprep.subr.bf16.mxu0 %v3885
    %4306 = vmatpush1.bf16.msra.mxu0 %v3884
    %4307 = vmatprep.subr.bf16.mxu0 %v3881
    %4308 = vmatpush1.bf16.msra.mxu0 %v3880
    %4309 = vmatprep.subr.bf16.mxu0 %v3877
    %4310 = vmatpush1.bf16.msra.mxu0 %v3876
    %4311 = vmatprep.subr.bf16.mxu0 %v3873
    %4312 = vmatpush1.bf16.msra.mxu0 %v3872
    %4313 = vmatprep.subr.bf16.mxu0 %v3869
    %4314 = vmatpush1.bf16.msra.mxu0 %v3868
    %4315 = vmatprep.subr.bf16.mxu0 %v3865
    %4316 = vmatpush1.bf16.msra.mxu0 %v3864
    %4317 = vmatprep.subr.bf16.mxu0 %v3861
    %4318 = vmatpush1.bf16.msra.mxu0 %v3860
    %4319 = vmatprep.subr.bf16.mxu0 %v3921
    %4320 = vmatpush2.bf16.msra.mxu0 %v3920
    %4321 = vmatprep.subr.bf16.mxu0 %v3917
    %4322 = vmatpush2.bf16.msra.mxu0 %v3916
    %4323 = vmatprep.subr.bf16.mxu0 %v3913
    %4324 = vmatpush2.bf16.msra.mxu0 %v3912
    %4325 = vmatprep.subr.bf16.mxu0 %v3909
    %4326 = vmatpush2.bf16.msra.mxu0 %v3908
    %4327 = vmatprep.subr.bf16.mxu0 %v3905
    %4328 = vmatpush2.bf16.msra.mxu0 %v3904
    %4329 = vmatprep.subr.bf16.mxu0 %v3901
    %4330 = vmatpush2.bf16.msra.mxu0 %v3900
    %4331 = vmatprep.subr.bf16.mxu0 %v3897
    %4332 = vmatpush2.bf16.msra.mxu0 %v3896
    %4333 = vmatprep.subr.bf16.mxu0 %v3893
    %4334 = vmatpush2.bf16.msra.mxu0 %v3892
    %4335 = vmatprep.mubr.bf16.mxu0 %v2621
    %4336 = vmatmul.mubr.bf16.gmra.mxu0 %v2620
    %v4337 = vpop.f32.mrf.mxu0
    %v4338 = vadd.f32 %v4297, %v4337
    %v4339 = vpop.f32.mrf.mxu0
    %v4340 = vadd.f32 %v4299, %v4339
    %v4341 = vpop.f32.mrf.mxu0
    %v4342 = vpop.f32.mrf.mxu0
    %4343 = vdwg.mxu0
    %4344 = vmatprep.subr.bf16.mxu0 %v3699
    %4345 = vmatpush1.bf16.msra.mxu0 %v3698
    %4346 = vmatprep.subr.bf16.mxu0 %v3695
    %4347 = vmatpush1.bf16.msra.mxu0 %v3694
    %4348 = vmatprep.subr.bf16.mxu0 %v3691
    %4349 = vmatpush1.bf16.msra.mxu0 %v3690
    %4350 = vmatprep.subr.bf16.mxu0 %v3687
    %4351 = vmatpush1.bf16.msra.mxu0 %v3686
    %4352 = vmatprep.subr.bf16.mxu0 %v3683
    %4353 = vmatpush1.bf16.msra.mxu0 %v3682
    %4354 = vmatprep.subr.bf16.mxu0 %v3679
    %4355 = vmatpush1.bf16.msra.mxu0 %v3678
    %4356 = vmatprep.subr.bf16.mxu0 %v3675
    %4357 = vmatpush1.bf16.msra.mxu0 %v3674
    %4358 = vmatprep.subr.bf16.mxu0 %v3671
    %4359 = vmatpush1.bf16.msra.mxu0 %v3670
    %4360 = vmatprep.subr.bf16.mxu0 %v3731
    %4361 = vmatpush2.bf16.msra.mxu0 %v3730
    %4362 = vmatprep.subr.bf16.mxu0 %v3727
    %4363 = vmatpush2.bf16.msra.mxu0 %v3726
    %4364 = vmatprep.subr.bf16.mxu0 %v3723
    %4365 = vmatpush2.bf16.msra.mxu0 %v3722
    %4366 = vmatprep.subr.bf16.mxu0 %v3719
    %4367 = vmatpush2.bf16.msra.mxu0 %v3718
    %4368 = vmatprep.subr.bf16.mxu0 %v3715
    %4369 = vmatpush2.bf16.msra.mxu0 %v3714
    %4370 = vmatprep.subr.bf16.mxu0 %v3711
    %4371 = vmatpush2.bf16.msra.mxu0 %v3710
    %4372 = vmatprep.subr.bf16.mxu0 %v3707
    %4373 = vmatpush2.bf16.msra.mxu0 %v3706
    %4374 = vmatprep.subr.bf16.mxu0 %v3703
    %4375 = vmatpush2.bf16.msra.mxu0 %v3702
    %4376 = vmatprep.mubr.bf16.mxu0 %v2615
    %4377 = vmatmul.mubr.bf16.gmra.mxu0 %v2614
    %v4378 = vpop.f32.mrf.mxu0
    %v4379 = vadd.f32 %v2891, %v4378
    %v4380 = vpop.f32.mrf.mxu0
    %v4381 = vadd.f32 %v2895, %v4380
    %v4382 = vpop.f32.mrf.mxu0
    %v4383 = vpop.f32.mrf.mxu0
    %4384 = vdwg.mxu0
    %4385 = vmatprep.subr.bf16.mxu0 %v3763
    %4386 = vmatpush1.bf16.msra.mxu0 %v3762
    %4387 = vmatprep.subr.bf16.mxu0 %v3759
    %4388 = vmatpush1.bf16.msra.mxu0 %v3758
    %4389 = vmatprep.subr.bf16.mxu0 %v3755
    %4390 = vmatpush1.bf16.msra.mxu0 %v3754
    %4391 = vmatprep.subr.bf16.mxu0 %v3751
    %4392 = vmatpush1.bf16.msra.mxu0 %v3750
    %4393 = vmatprep.subr.bf16.mxu0 %v3747
    %4394 = vmatpush1.bf16.msra.mxu0 %v3746
    %4395 = vmatprep.subr.bf16.mxu0 %v3743
    %4396 = vmatpush1.bf16.msra.mxu0 %v3742
    %4397 = vmatprep.subr.bf16.mxu0 %v3739
    %4398 = vmatpush1.bf16.msra.mxu0 %v3738
    %4399 = vmatprep.subr.bf16.mxu0 %v3735
    %4400 = vmatpush1.bf16.msra.mxu0 %v3734
    %4401 = vmatprep.subr.bf16.mxu0 %v3795
    %4402 = vmatpush2.bf16.msra.mxu0 %v3794
    %4403 = vmatprep.subr.bf16.mxu0 %v3791
    %4404 = vmatpush2.bf16.msra.mxu0 %v3790
    %4405 = vmatprep.subr.bf16.mxu0 %v3787
    %4406 = vmatpush2.bf16.msra.mxu0 %v3786
    %4407 = vmatprep.subr.bf16.mxu0 %v3783
    %4408 = vmatpush2.bf16.msra.mxu0 %v3782
    %4409 = vmatprep.subr.bf16.mxu0 %v3779
    %4410 = vmatpush2.bf16.msra.mxu0 %v3778
    %4411 = vmatprep.subr.bf16.mxu0 %v3775
    %4412 = vmatpush2.bf16.msra.mxu0 %v3774
    %4413 = vmatprep.subr.bf16.mxu0 %v3771
    %4414 = vmatpush2.bf16.msra.mxu0 %v3770
    %4415 = vmatprep.subr.bf16.mxu0 %v3767
    %4416 = vmatpush2.bf16.msra.mxu0 %v3766
    %4417 = vmatprep.mubr.bf16.mxu0 %v2617
    %4418 = vmatmul.mubr.bf16.gmra.mxu0 %v2616
    %v4419 = vpop.f32.mrf.mxu0
    %v4420 = vadd.f32 %v4379, %v4419
    %v4421 = vpop.f32.mrf.mxu0
    %v4422 = vadd.f32 %v4381, %v4421
    %v4423 = vpop.f32.mrf.mxu0
    %v4424 = vpop.f32.mrf.mxu0
    %4425 = vdwg.mxu0
    %4426 = vmatprep.subr.bf16.mxu0 %v3827
    %4427 = vmatpush1.bf16.msra.mxu0 %v3826
    %4428 = vmatprep.subr.bf16.mxu0 %v3823
    %4429 = vmatpush1.bf16.msra.mxu0 %v3822
    %4430 = vmatprep.subr.bf16.mxu0 %v3819
    %4431 = vmatpush1.bf16.msra.mxu0 %v3818
    %4432 = vmatprep.subr.bf16.mxu0 %v3815
    %4433 = vmatpush1.bf16.msra.mxu0 %v3814
    %4434 = vmatprep.subr.bf16.mxu0 %v3811
    %4435 = vmatpush1.bf16.msra.mxu0 %v3810
    %4436 = vmatprep.subr.bf16.mxu0 %v3807
    %4437 = vmatpush1.bf16.msra.mxu0 %v3806
    %4438 = vmatprep.subr.bf16.mxu0 %v3803
    %4439 = vmatpush1.bf16.msra.mxu0 %v3802
    %4440 = vmatprep.subr.bf16.mxu0 %v3799
    %4441 = vmatpush1.bf16.msra.mxu0 %v3798
    %4442 = vmatprep.subr.bf16.mxu0 %v3859
    %4443 = vmatpush2.bf16.msra.mxu0 %v3858
    %4444 = vmatprep.subr.bf16.mxu0 %v3855
    %4445 = vmatpush2.bf16.msra.mxu0 %v3854
    %4446 = vmatprep.subr.bf16.mxu0 %v3851
    %4447 = vmatpush2.bf16.msra.mxu0 %v3850
    %4448 = vmatprep.subr.bf16.mxu0 %v3847
    %4449 = vmatpush2.bf16.msra.mxu0 %v3846
    %4450 = vmatprep.subr.bf16.mxu0 %v3843
    %4451 = vmatpush2.bf16.msra.mxu0 %v3842
    %4452 = vmatprep.subr.bf16.mxu0 %v3839
    %4453 = vmatpush2.bf16.msra.mxu0 %v3838
    %4454 = vmatprep.subr.bf16.mxu0 %v3835
    %4455 = vmatpush2.bf16.msra.mxu0 %v3834
    %4456 = vmatprep.subr.bf16.mxu0 %v3831
    %4457 = vmatpush2.bf16.msra.mxu0 %v3830
    %4458 = vmatprep.mubr.bf16.mxu0 %v2619
    %4459 = vmatmul.mubr.bf16.gmra.mxu0 %v2618
    %v4460 = vpop.f32.mrf.mxu0
    %v4461 = vadd.f32 %v4420, %v4460
    %v4462 = vpop.f32.mrf.mxu0
    %v4463 = vadd.f32 %v4422, %v4462
    %v4464 = vpop.f32.mrf.mxu0
    %v4465 = vpop.f32.mrf.mxu0
    %4466 = vdwg.mxu0
    %4467 = vmatprep.subr.bf16.mxu0 %v3891
    %4468 = vmatpush1.bf16.msra.mxu0 %v3890
    %4469 = vmatprep.subr.bf16.mxu0 %v3887
    %4470 = vmatpush1.bf16.msra.mxu0 %v3886
    %4471 = vmatprep.subr.bf16.mxu0 %v3883
    %4472 = vmatpush1.bf16.msra.mxu0 %v3882
    %4473 = vmatprep.subr.bf16.mxu0 %v3879
    %4474 = vmatpush1.bf16.msra.mxu0 %v3878
    %4475 = vmatprep.subr.bf16.mxu0 %v3875
    %4476 = vmatpush1.bf16.msra.mxu0 %v3874
    %4477 = vmatprep.subr.bf16.mxu0 %v3871
    %4478 = vmatpush1.bf16.msra.mxu0 %v3870
    %4479 = vmatprep.subr.bf16.mxu0 %v3867
    %4480 = vmatpush1.bf16.msra.mxu0 %v3866
    %4481 = vmatprep.subr.bf16.mxu0 %v3863
    %4482 = vmatpush1.bf16.msra.mxu0 %v3862
    %4483 = vmatprep.subr.bf16.mxu0 %v3923
    %4484 = vmatpush2.bf16.msra.mxu0 %v3922
    %4485 = vmatprep.subr.bf16.mxu0 %v3919
    %4486 = vmatpush2.bf16.msra.mxu0 %v3918
    %4487 = vmatprep.subr.bf16.mxu0 %v3915
    %4488 = vmatpush2.bf16.msra.mxu0 %v3914
    %4489 = vmatprep.subr.bf16.mxu0 %v3911
    %4490 = vmatpush2.bf16.msra.mxu0 %v3910
    %4491 = vmatprep.subr.bf16.mxu0 %v3907
    %4492 = vmatpush2.bf16.msra.mxu0 %v3906
    %4493 = vmatprep.subr.bf16.mxu0 %v3903
    %4494 = vmatpush2.bf16.msra.mxu0 %v3902
    %4495 = vmatprep.subr.bf16.mxu0 %v3899
    %4496 = vmatpush2.bf16.msra.mxu0 %v3898
    %4497 = vmatprep.subr.bf16.mxu0 %v3895
    %4498 = vmatpush2.bf16.msra.mxu0 %v3894
    %4499 = vmatprep.mubr.bf16.mxu0 %v2621
    %4500 = vmatmul.mubr.bf16.gmra.mxu0 %v2620
    %v4501 = vpop.f32.mrf.mxu0
    %v4502 = vadd.f32 %v4461, %v4501
    %v4503 = vpop.f32.mrf.mxu0
    %v4504 = vadd.f32 %v4463, %v4503
    %v4505 = vpop.f32.mrf.mxu0
    %v4506 = vpop.f32.mrf.mxu0
    %4507 = vdwg.mxu0
    %v4508 = vmax.f32 %v4338, 0.0
    %v4509 = vmax.f32 %v4340, 0.0
    %v4510 = vmax.f32 %v4502, 0.0
    %v4511 = vmax.f32 %v4504, 0.0
    %v4512 = vpack.c.bf16 %v4508, %v4508
    %v4513 = vpack.c.bf16 %v4509, %v4509
    %v4514 = vpack.c.bf16 %v4510, %v4510
    %v4515 = vpack.c.bf16 %v4511, %v4511
    %v4516 = vld [vmem:[#allocation9] sm:$0xff]
    %v4517 = vld [vmem:[#allocation9 + $0x8] sm:$0xff]
    %v4518 = vld [vmem:[#allocation9 + $0x10] sm:$0xff]
    %v4519 = vld [vmem:[#allocation9 + $0x18] sm:$0xff]
    %v4520 = vld [vmem:[#allocation9 + $0x20] sm:$0xff]
    %v4521 = vld [vmem:[#allocation9 + $0x28] sm:$0xff]
    %v4522 = vld [vmem:[#allocation9 + $0x30] sm:$0xff]
    %v4523 = vld [vmem:[#allocation9 + $0x38] sm:$0xff]
    %v4524 = vld [vmem:[#allocation9 + $0x40] sm:$0xff]
    %v4525 = vld [vmem:[#allocation9 + $0x48] sm:$0xff]
    %v4526 = vld [vmem:[#allocation9 + $0x50] sm:$0xff]
    %v4527 = vld [vmem:[#allocation9 + $0x58] sm:$0xff]
    %v4528 = vld [vmem:[#allocation9 + $0x60] sm:$0xff]
    %v4529 = vld [vmem:[#allocation9 + $0x68] sm:$0xff]
    %v4530 = vld [vmem:[#allocation9 + $0x70] sm:$0xff]
    %v4531 = vld [vmem:[#allocation9 + $0x78] sm:$0xff]
    %v4532 = vld [vmem:[#allocation9 + $0x80] sm:$0xff]
    %v4533 = vld [vmem:[#allocation9 + $0x88] sm:$0xff]
    %v4534 = vld [vmem:[#allocation9 + $0x90] sm:$0xff]
    %v4535 = vld [vmem:[#allocation9 + $0x98] sm:$0xff]
    %v4536 = vld [vmem:[#allocation9 + $0xa0] sm:$0xff]
    %v4537 = vld [vmem:[#allocation9 + $0xa8] sm:$0xff]
    %v4538 = vld [vmem:[#allocation9 + $0xb0] sm:$0xff]
    %v4539 = vld [vmem:[#allocation9 + $0xb8] sm:$0xff]
    %v4540 = vld [vmem:[#allocation9 + $0xc0] sm:$0xff]
    %v4541 = vld [vmem:[#allocation9 + $0xc8] sm:$0xff]
    %v4542 = vld [vmem:[#allocation9 + $0xd0] sm:$0xff]
    %v4543 = vld [vmem:[#allocation9 + $0xd8] sm:$0xff]
    %v4544 = vld [vmem:[#allocation9 + $0xe0] sm:$0xff]
    %v4545 = vld [vmem:[#allocation9 + $0xe8] sm:$0xff]
    %v4546 = vld [vmem:[#allocation9 + $0xf0] sm:$0xff]
    %v4547 = vld [vmem:[#allocation9 + $0xf8] sm:$0xff]
    %v4548 = vld [vmem:[#allocation9 + $0x100] sm:$0xff]
    %v4549 = vld [vmem:[#allocation9 + $0x108] sm:$0xff]
    %v4550 = vld [vmem:[#allocation9 + $0x110] sm:$0xff]
    %v4551 = vld [vmem:[#allocation9 + $0x118] sm:$0xff]
    %v4552 = vld [vmem:[#allocation9 + $0x120] sm:$0xff]
    %v4553 = vld [vmem:[#allocation9 + $0x128] sm:$0xff]
    %v4554 = vld [vmem:[#allocation9 + $0x130] sm:$0xff]
    %v4555 = vld [vmem:[#allocation9 + $0x138] sm:$0xff]
    %v4556 = vld [vmem:[#allocation9 + $0x140] sm:$0xff]
    %v4557 = vld [vmem:[#allocation9 + $0x148] sm:$0xff]
    %v4558 = vld [vmem:[#allocation9 + $0x150] sm:$0xff]
    %v4559 = vld [vmem:[#allocation9 + $0x158] sm:$0xff]
    %v4560 = vld [vmem:[#allocation9 + $0x160] sm:$0xff]
    %v4561 = vld [vmem:[#allocation9 + $0x168] sm:$0xff]
    %v4562 = vld [vmem:[#allocation9 + $0x170] sm:$0xff]
    %v4563 = vld [vmem:[#allocation9 + $0x178] sm:$0xff]
    %v4564 = vld [vmem:[#allocation9 + $0x180] sm:$0xff]
    %v4565 = vld [vmem:[#allocation9 + $0x188] sm:$0xff]
    %v4566 = vld [vmem:[#allocation9 + $0x190] sm:$0xff]
    %v4567 = vld [vmem:[#allocation9 + $0x198] sm:$0xff]
    %v4568 = vld [vmem:[#allocation9 + $0x1a0] sm:$0xff]
    %v4569 = vld [vmem:[#allocation9 + $0x1a8] sm:$0xff]
    %v4570 = vld [vmem:[#allocation9 + $0x1b0] sm:$0xff]
    %v4571 = vld [vmem:[#allocation9 + $0x1b8] sm:$0xff]
    %v4572 = vld [vmem:[#allocation9 + $0x1c0] sm:$0xff]
    %v4573 = vld [vmem:[#allocation9 + $0x1c8] sm:$0xff]
    %v4574 = vld [vmem:[#allocation9 + $0x1d0] sm:$0xff]
    %v4575 = vld [vmem:[#allocation9 + $0x1d8] sm:$0xff]
    %v4576 = vld [vmem:[#allocation9 + $0x1e0] sm:$0xff]
    %v4577 = vld [vmem:[#allocation9 + $0x1e8] sm:$0xff]
    %v4578 = vld [vmem:[#allocation9 + $0x1f0] sm:$0xff]
    %v4579 = vld [vmem:[#allocation9 + $0x1f8] sm:$0xff]
    %v4580 = vld [vmem:[#allocation9 + $0x200] sm:$0xff]
    %v4581 = vld [vmem:[#allocation9 + $0x208] sm:$0xff]
    %v4582 = vld [vmem:[#allocation9 + $0x210] sm:$0xff]
    %v4583 = vld [vmem:[#allocation9 + $0x218] sm:$0xff]
    %v4584 = vld [vmem:[#allocation9 + $0x220] sm:$0xff]
    %v4585 = vld [vmem:[#allocation9 + $0x228] sm:$0xff]
    %v4586 = vld [vmem:[#allocation9 + $0x230] sm:$0xff]
    %v4587 = vld [vmem:[#allocation9 + $0x238] sm:$0xff]
    %v4588 = vld [vmem:[#allocation9 + $0x240] sm:$0xff]
    %v4589 = vld [vmem:[#allocation9 + $0x248] sm:$0xff]
    %v4590 = vld [vmem:[#allocation9 + $0x250] sm:$0xff]
    %v4591 = vld [vmem:[#allocation9 + $0x258] sm:$0xff]
    %v4592 = vld [vmem:[#allocation9 + $0x260] sm:$0xff]
    %v4593 = vld [vmem:[#allocation9 + $0x268] sm:$0xff]
    %v4594 = vld [vmem:[#allocation9 + $0x270] sm:$0xff]
    %v4595 = vld [vmem:[#allocation9 + $0x278] sm:$0xff]
    %v4596 = vld [vmem:[#allocation9 + $0x280] sm:$0xff]
    %v4597 = vld [vmem:[#allocation9 + $0x288] sm:$0xff]
    %v4598 = vld [vmem:[#allocation9 + $0x290] sm:$0xff]
    %v4599 = vld [vmem:[#allocation9 + $0x298] sm:$0xff]
    %v4600 = vld [vmem:[#allocation9 + $0x2a0] sm:$0xff]
    %v4601 = vld [vmem:[#allocation9 + $0x2a8] sm:$0xff]
    %v4602 = vld [vmem:[#allocation9 + $0x2b0] sm:$0xff]
    %v4603 = vld [vmem:[#allocation9 + $0x2b8] sm:$0xff]
    %v4604 = vld [vmem:[#allocation9 + $0x2c0] sm:$0xff]
    %v4605 = vld [vmem:[#allocation9 + $0x2c8] sm:$0xff]
    %v4606 = vld [vmem:[#allocation9 + $0x2d0] sm:$0xff]
    %v4607 = vld [vmem:[#allocation9 + $0x2d8] sm:$0xff]
    %v4608 = vld [vmem:[#allocation9 + $0x2e0] sm:$0xff]
    %v4609 = vld [vmem:[#allocation9 + $0x2e8] sm:$0xff]
    %v4610 = vld [vmem:[#allocation9 + $0x2f0] sm:$0xff]
    %v4611 = vld [vmem:[#allocation9 + $0x2f8] sm:$0xff]
    %v4612 = vld [vmem:[#allocation9 + $0x300] sm:$0xff]
    %v4613 = vld [vmem:[#allocation9 + $0x308] sm:$0xff]
    %v4614 = vld [vmem:[#allocation9 + $0x310] sm:$0xff]
    %v4615 = vld [vmem:[#allocation9 + $0x318] sm:$0xff]
    %v4616 = vld [vmem:[#allocation9 + $0x320] sm:$0xff]
    %v4617 = vld [vmem:[#allocation9 + $0x328] sm:$0xff]
    %v4618 = vld [vmem:[#allocation9 + $0x330] sm:$0xff]
    %v4619 = vld [vmem:[#allocation9 + $0x338] sm:$0xff]
    %v4620 = vld [vmem:[#allocation9 + $0x340] sm:$0xff]
    %v4621 = vld [vmem:[#allocation9 + $0x348] sm:$0xff]
    %v4622 = vld [vmem:[#allocation9 + $0x350] sm:$0xff]
    %v4623 = vld [vmem:[#allocation9 + $0x358] sm:$0xff]
    %v4624 = vld [vmem:[#allocation9 + $0x360] sm:$0xff]
    %v4625 = vld [vmem:[#allocation9 + $0x368] sm:$0xff]
    %v4626 = vld [vmem:[#allocation9 + $0x370] sm:$0xff]
    %v4627 = vld [vmem:[#allocation9 + $0x378] sm:$0xff]
    %v4628 = vld [vmem:[#allocation9 + $0x380] sm:$0xff]
    %v4629 = vld [vmem:[#allocation9 + $0x388] sm:$0xff]
    %v4630 = vld [vmem:[#allocation9 + $0x390] sm:$0xff]
    %v4631 = vld [vmem:[#allocation9 + $0x398] sm:$0xff]
    %v4632 = vld [vmem:[#allocation9 + $0x3a0] sm:$0xff]
    %v4633 = vld [vmem:[#allocation9 + $0x3a8] sm:$0xff]
    %v4634 = vld [vmem:[#allocation9 + $0x3b0] sm:$0xff]
    %v4635 = vld [vmem:[#allocation9 + $0x3b8] sm:$0xff]
    %v4636 = vld [vmem:[#allocation9 + $0x3c0] sm:$0xff]
    %v4637 = vld [vmem:[#allocation9 + $0x3c8] sm:$0xff]
    %v4638 = vld [vmem:[#allocation9 + $0x3d0] sm:$0xff]
    %v4639 = vld [vmem:[#allocation9 + $0x3d8] sm:$0xff]
    %v4640 = vld [vmem:[#allocation9 + $0x3e0] sm:$0xff]
    %v4641 = vld [vmem:[#allocation9 + $0x3e8] sm:$0xff]
    %v4642 = vld [vmem:[#allocation9 + $0x3f0] sm:$0xff]
    %v4643 = vld [vmem:[#allocation9 + $0x3f8] sm:$0xff]
    %v4644 = vld [vmem:[%s13] sm:$0xf]
    %v4646 = vlaneseq
    %v4647 = vshrl.u32 %v4646, 7
    %v4648 = vsub.s32 0, %v4647
    %v4649 = vrot.slane %v4644, %v4648
    %v4650 = vlaneseq
    %v4651 = vshrl.u32 %v4650, 7
    %v4652 = vsub.s32 1, %v4651
    %v4653 = vrot.slane %v4644, %v4652
    %v4654 = vlaneseq
    %v4655 = vshrl.u32 %v4654, 7
    %v4656 = vsub.s32 2, %v4655
    %v4657 = vrot.slane %v4644, %v4656
    %v4658 = vlaneseq
    %v4659 = vshrl.u32 %v4658, 7
    %v4660 = vsub.s32 3, %v4659
    %v4661 = vrot.slane %v4644, %v4660
    %v4794 = vunpack.c.l.b16 %v4516
    %v4795 = vunpack.c.h.b16 %v4516
    %v4796 = vunpack.c.l.b16 %v4517
    %v4797 = vunpack.c.h.b16 %v4517
    %v4798 = vunpack.c.l.b16 %v4518
    %v4799 = vunpack.c.h.b16 %v4518
    %v4800 = vunpack.c.l.b16 %v4519
    %v4801 = vunpack.c.h.b16 %v4519
    %v4802 = vunpack.c.l.b16 %v4520
    %v4803 = vunpack.c.h.b16 %v4520
    %v4804 = vunpack.c.l.b16 %v4521
    %v4805 = vunpack.c.h.b16 %v4521
    %v4806 = vunpack.c.l.b16 %v4522
    %v4807 = vunpack.c.h.b16 %v4522
    %v4808 = vunpack.c.l.b16 %v4523
    %v4809 = vunpack.c.h.b16 %v4523
    %v4810 = vunpack.c.l.b16 %v4524
    %v4811 = vunpack.c.h.b16 %v4524
    %v4812 = vunpack.c.l.b16 %v4525
    %v4813 = vunpack.c.h.b16 %v4525
    %v4814 = vunpack.c.l.b16 %v4526
    %v4815 = vunpack.c.h.b16 %v4526
    %v4816 = vunpack.c.l.b16 %v4527
    %v4817 = vunpack.c.h.b16 %v4527
    %v4818 = vunpack.c.l.b16 %v4528
    %v4819 = vunpack.c.h.b16 %v4528
    %v4820 = vunpack.c.l.b16 %v4529
    %v4821 = vunpack.c.h.b16 %v4529
    %v4822 = vunpack.c.l.b16 %v4530
    %v4823 = vunpack.c.h.b16 %v4530
    %v4824 = vunpack.c.l.b16 %v4531
    %v4825 = vunpack.c.h.b16 %v4531
    %v4826 = vunpack.c.l.b16 %v4532
    %v4827 = vunpack.c.h.b16 %v4532
    %v4828 = vunpack.c.l.b16 %v4533
    %v4829 = vunpack.c.h.b16 %v4533
    %v4830 = vunpack.c.l.b16 %v4534
    %v4831 = vunpack.c.h.b16 %v4534
    %v4832 = vunpack.c.l.b16 %v4535
    %v4833 = vunpack.c.h.b16 %v4535
    %v4834 = vunpack.c.l.b16 %v4536
    %v4835 = vunpack.c.h.b16 %v4536
    %v4836 = vunpack.c.l.b16 %v4537
    %v4837 = vunpack.c.h.b16 %v4537
    %v4838 = vunpack.c.l.b16 %v4538
    %v4839 = vunpack.c.h.b16 %v4538
    %v4840 = vunpack.c.l.b16 %v4539
    %v4841 = vunpack.c.h.b16 %v4539
    %v4842 = vunpack.c.l.b16 %v4540
    %v4843 = vunpack.c.h.b16 %v4540
    %v4844 = vunpack.c.l.b16 %v4541
    %v4845 = vunpack.c.h.b16 %v4541
    %v4846 = vunpack.c.l.b16 %v4542
    %v4847 = vunpack.c.h.b16 %v4542
    %v4848 = vunpack.c.l.b16 %v4543
    %v4849 = vunpack.c.h.b16 %v4543
    %v4850 = vunpack.c.l.b16 %v4544
    %v4851 = vunpack.c.h.b16 %v4544
    %v4852 = vunpack.c.l.b16 %v4545
    %v4853 = vunpack.c.h.b16 %v4545
    %v4854 = vunpack.c.l.b16 %v4546
    %v4855 = vunpack.c.h.b16 %v4546
    %v4856 = vunpack.c.l.b16 %v4547
    %v4857 = vunpack.c.h.b16 %v4547
    %v4858 = vunpack.c.l.b16 %v4548
    %v4859 = vunpack.c.h.b16 %v4548
    %v4860 = vunpack.c.l.b16 %v4549
    %v4861 = vunpack.c.h.b16 %v4549
    %v4862 = vunpack.c.l.b16 %v4550
    %v4863 = vunpack.c.h.b16 %v4550
    %v4864 = vunpack.c.l.b16 %v4551
    %v4865 = vunpack.c.h.b16 %v4551
    %v4866 = vunpack.c.l.b16 %v4552
    %v4867 = vunpack.c.h.b16 %v4552
    %v4868 = vunpack.c.l.b16 %v4553
    %v4869 = vunpack.c.h.b16 %v4553
    %v4870 = vunpack.c.l.b16 %v4554
    %v4871 = vunpack.c.h.b16 %v4554
    %v4872 = vunpack.c.l.b16 %v4555
    %v4873 = vunpack.c.h.b16 %v4555
    %v4874 = vunpack.c.l.b16 %v4556
    %v4875 = vunpack.c.h.b16 %v4556
    %v4876 = vunpack.c.l.b16 %v4557
    %v4877 = vunpack.c.h.b16 %v4557
    %v4878 = vunpack.c.l.b16 %v4558
    %v4879 = vunpack.c.h.b16 %v4558
    %v4880 = vunpack.c.l.b16 %v4559
    %v4881 = vunpack.c.h.b16 %v4559
    %v4882 = vunpack.c.l.b16 %v4560
    %v4883 = vunpack.c.h.b16 %v4560
    %v4884 = vunpack.c.l.b16 %v4561
    %v4885 = vunpack.c.h.b16 %v4561
    %v4886 = vunpack.c.l.b16 %v4562
    %v4887 = vunpack.c.h.b16 %v4562
    %v4888 = vunpack.c.l.b16 %v4563
    %v4889 = vunpack.c.h.b16 %v4563
    %v4890 = vunpack.c.l.b16 %v4564
    %v4891 = vunpack.c.h.b16 %v4564
    %v4892 = vunpack.c.l.b16 %v4565
    %v4893 = vunpack.c.h.b16 %v4565
    %v4894 = vunpack.c.l.b16 %v4566
    %v4895 = vunpack.c.h.b16 %v4566
    %v4896 = vunpack.c.l.b16 %v4567
    %v4897 = vunpack.c.h.b16 %v4567
    %v4898 = vunpack.c.l.b16 %v4568
    %v4899 = vunpack.c.h.b16 %v4568
    %v4900 = vunpack.c.l.b16 %v4569
    %v4901 = vunpack.c.h.b16 %v4569
    %v4902 = vunpack.c.l.b16 %v4570
    %v4903 = vunpack.c.h.b16 %v4570
    %v4904 = vunpack.c.l.b16 %v4571
    %v4905 = vunpack.c.h.b16 %v4571
    %v4906 = vunpack.c.l.b16 %v4572
    %v4907 = vunpack.c.h.b16 %v4572
    %v4908 = vunpack.c.l.b16 %v4573
    %v4909 = vunpack.c.h.b16 %v4573
    %v4910 = vunpack.c.l.b16 %v4574
    %v4911 = vunpack.c.h.b16 %v4574
    %v4912 = vunpack.c.l.b16 %v4575
    %v4913 = vunpack.c.h.b16 %v4575
    %v4914 = vunpack.c.l.b16 %v4576
    %v4915 = vunpack.c.h.b16 %v4576
    %v4916 = vunpack.c.l.b16 %v4577
    %v4917 = vunpack.c.h.b16 %v4577
    %v4918 = vunpack.c.l.b16 %v4578
    %v4919 = vunpack.c.h.b16 %v4578
    %v4920 = vunpack.c.l.b16 %v4579
    %v4921 = vunpack.c.h.b16 %v4579
    %v4922 = vunpack.c.l.b16 %v4580
    %v4923 = vunpack.c.h.b16 %v4580
    %v4924 = vunpack.c.l.b16 %v4581
    %v4925 = vunpack.c.h.b16 %v4581
    %v4926 = vunpack.c.l.b16 %v4582
    %v4927 = vunpack.c.h.b16 %v4582
    %v4928 = vunpack.c.l.b16 %v4583
    %v4929 = vunpack.c.h.b16 %v4583
    %v4930 = vunpack.c.l.b16 %v4584
    %v4931 = vunpack.c.h.b16 %v4584
    %v4932 = vunpack.c.l.b16 %v4585
    %v4933 = vunpack.c.h.b16 %v4585
    %v4934 = vunpack.c.l.b16 %v4586
    %v4935 = vunpack.c.h.b16 %v4586
    %v4936 = vunpack.c.l.b16 %v4587
    %v4937 = vunpack.c.h.b16 %v4587
    %v4938 = vunpack.c.l.b16 %v4588
    %v4939 = vunpack.c.h.b16 %v4588
    %v4940 = vunpack.c.l.b16 %v4589
    %v4941 = vunpack.c.h.b16 %v4589
    %v4942 = vunpack.c.l.b16 %v4590
    %v4943 = vunpack.c.h.b16 %v4590
    %v4944 = vunpack.c.l.b16 %v4591
    %v4945 = vunpack.c.h.b16 %v4591
    %v4946 = vunpack.c.l.b16 %v4592
    %v4947 = vunpack.c.h.b16 %v4592
    %v4948 = vunpack.c.l.b16 %v4593
    %v4949 = vunpack.c.h.b16 %v4593
    %v4950 = vunpack.c.l.b16 %v4594
    %v4951 = vunpack.c.h.b16 %v4594
    %v4952 = vunpack.c.l.b16 %v4595
    %v4953 = vunpack.c.h.b16 %v4595
    %v4954 = vunpack.c.l.b16 %v4596
    %v4955 = vunpack.c.h.b16 %v4596
    %v4956 = vunpack.c.l.b16 %v4597
    %v4957 = vunpack.c.h.b16 %v4597
    %v4958 = vunpack.c.l.b16 %v4598
    %v4959 = vunpack.c.h.b16 %v4598
    %v4960 = vunpack.c.l.b16 %v4599
    %v4961 = vunpack.c.h.b16 %v4599
    %v4962 = vunpack.c.l.b16 %v4600
    %v4963 = vunpack.c.h.b16 %v4600
    %v4964 = vunpack.c.l.b16 %v4601
    %v4965 = vunpack.c.h.b16 %v4601
    %v4966 = vunpack.c.l.b16 %v4602
    %v4967 = vunpack.c.h.b16 %v4602
    %v4968 = vunpack.c.l.b16 %v4603
    %v4969 = vunpack.c.h.b16 %v4603
    %v4970 = vunpack.c.l.b16 %v4604
    %v4971 = vunpack.c.h.b16 %v4604
    %v4972 = vunpack.c.l.b16 %v4605
    %v4973 = vunpack.c.h.b16 %v4605
    %v4974 = vunpack.c.l.b16 %v4606
    %v4975 = vunpack.c.h.b16 %v4606
    %v4976 = vunpack.c.l.b16 %v4607
    %v4977 = vunpack.c.h.b16 %v4607
    %v4978 = vunpack.c.l.b16 %v4608
    %v4979 = vunpack.c.h.b16 %v4608
    %v4980 = vunpack.c.l.b16 %v4609
    %v4981 = vunpack.c.h.b16 %v4609
    %v4982 = vunpack.c.l.b16 %v4610
    %v4983 = vunpack.c.h.b16 %v4610
    %v4984 = vunpack.c.l.b16 %v4611
    %v4985 = vunpack.c.h.b16 %v4611
    %v4986 = vunpack.c.l.b16 %v4612
    %v4987 = vunpack.c.h.b16 %v4612
    %v4988 = vunpack.c.l.b16 %v4613
    %v4989 = vunpack.c.h.b16 %v4613
    %v4990 = vunpack.c.l.b16 %v4614
    %v4991 = vunpack.c.h.b16 %v4614
    %v4992 = vunpack.c.l.b16 %v4615
    %v4993 = vunpack.c.h.b16 %v4615
    %v4994 = vunpack.c.l.b16 %v4616
    %v4995 = vunpack.c.h.b16 %v4616
    %v4996 = vunpack.c.l.b16 %v4617
    %v4997 = vunpack.c.h.b16 %v4617
    %v4998 = vunpack.c.l.b16 %v4618
    %v4999 = vunpack.c.h.b16 %v4618
    %v5000 = vunpack.c.l.b16 %v4619
    %v5001 = vunpack.c.h.b16 %v4619
    %v5002 = vunpack.c.l.b16 %v4620
    %v5003 = vunpack.c.h.b16 %v4620
    %v5004 = vunpack.c.l.b16 %v4621
    %v5005 = vunpack.c.h.b16 %v4621
    %v5006 = vunpack.c.l.b16 %v4622
    %v5007 = vunpack.c.h.b16 %v4622
    %v5008 = vunpack.c.l.b16 %v4623
    %v5009 = vunpack.c.h.b16 %v4623
    %v5010 = vunpack.c.l.b16 %v4624
    %v5011 = vunpack.c.h.b16 %v4624
    %v5012 = vunpack.c.l.b16 %v4625
    %v5013 = vunpack.c.h.b16 %v4625
    %v5014 = vunpack.c.l.b16 %v4626
    %v5015 = vunpack.c.h.b16 %v4626
    %v5016 = vunpack.c.l.b16 %v4627
    %v5017 = vunpack.c.h.b16 %v4627
    %v5018 = vunpack.c.l.b16 %v4628
    %v5019 = vunpack.c.h.b16 %v4628
    %v5020 = vunpack.c.l.b16 %v4629
    %v5021 = vunpack.c.h.b16 %v4629
    %v5022 = vunpack.c.l.b16 %v4630
    %v5023 = vunpack.c.h.b16 %v4630
    %v5024 = vunpack.c.l.b16 %v4631
    %v5025 = vunpack.c.h.b16 %v4631
    %v5026 = vunpack.c.l.b16 %v4632
    %v5027 = vunpack.c.h.b16 %v4632
    %v5028 = vunpack.c.l.b16 %v4633
    %v5029 = vunpack.c.h.b16 %v4633
    %v5030 = vunpack.c.l.b16 %v4634
    %v5031 = vunpack.c.h.b16 %v4634
    %v5032 = vunpack.c.l.b16 %v4635
    %v5033 = vunpack.c.h.b16 %v4635
    %v5034 = vunpack.c.l.b16 %v4636
    %v5035 = vunpack.c.h.b16 %v4636
    %v5036 = vunpack.c.l.b16 %v4637
    %v5037 = vunpack.c.h.b16 %v4637
    %v5038 = vunpack.c.l.b16 %v4638
    %v5039 = vunpack.c.h.b16 %v4638
    %v5040 = vunpack.c.l.b16 %v4639
    %v5041 = vunpack.c.h.b16 %v4639
    %v5042 = vunpack.c.l.b16 %v4640
    %v5043 = vunpack.c.h.b16 %v4640
    %v5044 = vunpack.c.l.b16 %v4641
    %v5045 = vunpack.c.h.b16 %v4641
    %v5046 = vunpack.c.l.b16 %v4642
    %v5047 = vunpack.c.h.b16 %v4642
    %v5048 = vunpack.c.l.b16 %v4643
    %v5049 = vunpack.c.h.b16 %v4643
    %v5050 = vpack.c.b16 %v4798, %v4794
    %v5051 = vpack.c.b16 %v4799, %v4795
    %v5052 = vpack.c.b16 %v4800, %v4796
    %v5053 = vpack.c.b16 %v4801, %v4797
    %v5054 = vpack.c.b16 %v4806, %v4802
    %v5055 = vpack.c.b16 %v4807, %v4803
    %v5056 = vpack.c.b16 %v4808, %v4804
    %v5057 = vpack.c.b16 %v4809, %v4805
    %v5058 = vpack.c.b16 %v4814, %v4810
    %v5059 = vpack.c.b16 %v4815, %v4811
    %v5060 = vpack.c.b16 %v4816, %v4812
    %v5061 = vpack.c.b16 %v4817, %v4813
    %v5062 = vpack.c.b16 %v4822, %v4818
    %v5063 = vpack.c.b16 %v4823, %v4819
    %v5064 = vpack.c.b16 %v4824, %v4820
    %v5065 = vpack.c.b16 %v4825, %v4821
    %v5066 = vpack.c.b16 %v4830, %v4826
    %v5067 = vpack.c.b16 %v4831, %v4827
    %v5068 = vpack.c.b16 %v4832, %v4828
    %v5069 = vpack.c.b16 %v4833, %v4829
    %v5070 = vpack.c.b16 %v4838, %v4834
    %v5071 = vpack.c.b16 %v4839, %v4835
    %v5072 = vpack.c.b16 %v4840, %v4836
    %v5073 = vpack.c.b16 %v4841, %v4837
    %v5074 = vpack.c.b16 %v4846, %v4842
    %v5075 = vpack.c.b16 %v4847, %v4843
    %v5076 = vpack.c.b16 %v4848, %v4844
    %v5077 = vpack.c.b16 %v4849, %v4845
    %v5078 = vpack.c.b16 %v4854, %v4850
    %v5079 = vpack.c.b16 %v4855, %v4851
    %v5080 = vpack.c.b16 %v4856, %v4852
    %v5081 = vpack.c.b16 %v4857, %v4853
    %v5082 = vpack.c.b16 %v4862, %v4858
    %v5083 = vpack.c.b16 %v4863, %v4859
    %v5084 = vpack.c.b16 %v4864, %v4860
    %v5085 = vpack.c.b16 %v4865, %v4861
    %v5086 = vpack.c.b16 %v4870, %v4866
    %v5087 = vpack.c.b16 %v4871, %v4867
    %v5088 = vpack.c.b16 %v4872, %v4868
    %v5089 = vpack.c.b16 %v4873, %v4869
    %v5090 = vpack.c.b16 %v4878, %v4874
    %v5091 = vpack.c.b16 %v4879, %v4875
    %v5092 = vpack.c.b16 %v4880, %v4876
    %v5093 = vpack.c.b16 %v4881, %v4877
    %v5094 = vpack.c.b16 %v4886, %v4882
    %v5095 = vpack.c.b16 %v4887, %v4883
    %v5096 = vpack.c.b16 %v4888, %v4884
    %v5097 = vpack.c.b16 %v4889, %v4885
    %v5098 = vpack.c.b16 %v4894, %v4890
    %v5099 = vpack.c.b16 %v4895, %v4891
    %v5100 = vpack.c.b16 %v4896, %v4892
    %v5101 = vpack.c.b16 %v4897, %v4893
    %v5102 = vpack.c.b16 %v4902, %v4898
    %v5103 = vpack.c.b16 %v4903, %v4899
    %v5104 = vpack.c.b16 %v4904, %v4900
    %v5105 = vpack.c.b16 %v4905, %v4901
    %v5106 = vpack.c.b16 %v4910, %v4906
    %v5107 = vpack.c.b16 %v4911, %v4907
    %v5108 = vpack.c.b16 %v4912, %v4908
    %v5109 = vpack.c.b16 %v4913, %v4909
    %v5110 = vpack.c.b16 %v4918, %v4914
    %v5111 = vpack.c.b16 %v4919, %v4915
    %v5112 = vpack.c.b16 %v4920, %v4916
    %v5113 = vpack.c.b16 %v4921, %v4917
    %v5114 = vpack.c.b16 %v4926, %v4922
    %v5115 = vpack.c.b16 %v4927, %v4923
    %v5116 = vpack.c.b16 %v4928, %v4924
    %v5117 = vpack.c.b16 %v4929, %v4925
    %v5118 = vpack.c.b16 %v4934, %v4930
    %v5119 = vpack.c.b16 %v4935, %v4931
    %v5120 = vpack.c.b16 %v4936, %v4932
    %v5121 = vpack.c.b16 %v4937, %v4933
    %v5122 = vpack.c.b16 %v4942, %v4938
    %v5123 = vpack.c.b16 %v4943, %v4939
    %v5124 = vpack.c.b16 %v4944, %v4940
    %v5125 = vpack.c.b16 %v4945, %v4941
    %v5126 = vpack.c.b16 %v4950, %v4946
    %v5127 = vpack.c.b16 %v4951, %v4947
    %v5128 = vpack.c.b16 %v4952, %v4948
    %v5129 = vpack.c.b16 %v4953, %v4949
    %v5130 = vpack.c.b16 %v4958, %v4954
    %v5131 = vpack.c.b16 %v4959, %v4955
    %v5132 = vpack.c.b16 %v4960, %v4956
    %v5133 = vpack.c.b16 %v4961, %v4957
    %v5134 = vpack.c.b16 %v4966, %v4962
    %v5135 = vpack.c.b16 %v4967, %v4963
    %v5136 = vpack.c.b16 %v4968, %v4964
    %v5137 = vpack.c.b16 %v4969, %v4965
    %v5138 = vpack.c.b16 %v4974, %v4970
    %v5139 = vpack.c.b16 %v4975, %v4971
    %v5140 = vpack.c.b16 %v4976, %v4972
    %v5141 = vpack.c.b16 %v4977, %v4973
    %v5142 = vpack.c.b16 %v4982, %v4978
    %v5143 = vpack.c.b16 %v4983, %v4979
    %v5144 = vpack.c.b16 %v4984, %v4980
    %v5145 = vpack.c.b16 %v4985, %v4981
    %v5146 = vpack.c.b16 %v4990, %v4986
    %v5147 = vpack.c.b16 %v4991, %v4987
    %v5148 = vpack.c.b16 %v4992, %v4988
    %v5149 = vpack.c.b16 %v4993, %v4989
    %v5150 = vpack.c.b16 %v4998, %v4994
    %v5151 = vpack.c.b16 %v4999, %v4995
    %v5152 = vpack.c.b16 %v5000, %v4996
    %v5153 = vpack.c.b16 %v5001, %v4997
    %v5154 = vpack.c.b16 %v5006, %v5002
    %v5155 = vpack.c.b16 %v5007, %v5003
    %v5156 = vpack.c.b16 %v5008, %v5004
    %v5157 = vpack.c.b16 %v5009, %v5005
    %v5158 = vpack.c.b16 %v5014, %v5010
    %v5159 = vpack.c.b16 %v5015, %v5011
    %v5160 = vpack.c.b16 %v5016, %v5012
    %v5161 = vpack.c.b16 %v5017, %v5013
    %v5162 = vpack.c.b16 %v5022, %v5018
    %v5163 = vpack.c.b16 %v5023, %v5019
    %v5164 = vpack.c.b16 %v5024, %v5020
    %v5165 = vpack.c.b16 %v5025, %v5021
    %v5166 = vpack.c.b16 %v5030, %v5026
    %v5167 = vpack.c.b16 %v5031, %v5027
    %v5168 = vpack.c.b16 %v5032, %v5028
    %v5169 = vpack.c.b16 %v5033, %v5029
    %v5170 = vpack.c.b16 %v5038, %v5034
    %v5171 = vpack.c.b16 %v5039, %v5035
    %v5172 = vpack.c.b16 %v5040, %v5036
    %v5173 = vpack.c.b16 %v5041, %v5037
    %v5174 = vpack.c.b16 %v5046, %v5042
    %v5175 = vpack.c.b16 %v5047, %v5043
    %v5176 = vpack.c.b16 %v5048, %v5044
    %v5177 = vpack.c.b16 %v5049, %v5045
    %5306 = vmatprep.subr.bf16.mxu0 %v5079
    %5307 = vmatpush1.bf16.msra.mxu0 %v5078
    %5308 = vmatprep.subr.bf16.mxu0 %v5075
    %5309 = vmatpush1.bf16.msra.mxu0 %v5074
    %5310 = vmatprep.subr.bf16.mxu0 %v5071
    %5311 = vmatpush1.bf16.msra.mxu0 %v5070
    %5312 = vmatprep.subr.bf16.mxu0 %v5067
    %5313 = vmatpush1.bf16.msra.mxu0 %v5066
    %5314 = vmatprep.subr.bf16.mxu0 %v5063
    %5315 = vmatpush1.bf16.msra.mxu0 %v5062
    %5316 = vmatprep.subr.bf16.mxu0 %v5059
    %5317 = vmatpush1.bf16.msra.mxu0 %v5058
    %5318 = vmatprep.subr.bf16.mxu0 %v5055
    %5319 = vmatpush1.bf16.msra.mxu0 %v5054
    %5320 = vmatprep.subr.bf16.mxu0 %v5051
    %5321 = vmatpush1.bf16.msra.mxu0 %v5050
    %5322 = vmatprep.subr.bf16.mxu0 %v5111
    %5323 = vmatpush2.bf16.msra.mxu0 %v5110
    %5324 = vmatprep.subr.bf16.mxu0 %v5107
    %5325 = vmatpush2.bf16.msra.mxu0 %v5106
    %5326 = vmatprep.subr.bf16.mxu0 %v5103
    %5327 = vmatpush2.bf16.msra.mxu0 %v5102
    %5328 = vmatprep.subr.bf16.mxu0 %v5099
    %5329 = vmatpush2.bf16.msra.mxu0 %v5098
    %5330 = vmatprep.subr.bf16.mxu0 %v5095
    %5331 = vmatpush2.bf16.msra.mxu0 %v5094
    %5332 = vmatprep.subr.bf16.mxu0 %v5091
    %5333 = vmatpush2.bf16.msra.mxu0 %v5090
    %5334 = vmatprep.subr.bf16.mxu0 %v5087
    %5335 = vmatpush2.bf16.msra.mxu0 %v5086
    %5336 = vmatprep.subr.bf16.mxu0 %v5083
    %5337 = vmatpush2.bf16.msra.mxu0 %v5082
    %5338 = vmatprep.mubr.bf16.mxu0 %v4513
    %5339 = vmatmul.mubr.bf16.gmra.mxu0 %v4512
    %v5340 = vpop.f32.mrf.mxu0
    %v5341 = vadd.f32 %v4649, %v5340
    %v5342 = vpop.f32.mrf.mxu0
    %v5343 = vadd.f32 %v4653, %v5342
    %v5344 = vpop.f32.mrf.mxu0
    %v5345 = vpop.f32.mrf.mxu0
    %5346 = vdwg.mxu0
    %5347 = vmatprep.subr.bf16.mxu0 %v5143
    %5348 = vmatpush1.bf16.msra.mxu0 %v5142
    %5349 = vmatprep.subr.bf16.mxu0 %v5139
    %5350 = vmatpush1.bf16.msra.mxu0 %v5138
    %5351 = vmatprep.subr.bf16.mxu0 %v5135
    %5352 = vmatpush1.bf16.msra.mxu0 %v5134
    %5353 = vmatprep.subr.bf16.mxu0 %v5131
    %5354 = vmatpush1.bf16.msra.mxu0 %v5130
    %5355 = vmatprep.subr.bf16.mxu0 %v5127
    %5356 = vmatpush1.bf16.msra.mxu0 %v5126
    %5357 = vmatprep.subr.bf16.mxu0 %v5123
    %5358 = vmatpush1.bf16.msra.mxu0 %v5122
    %5359 = vmatprep.subr.bf16.mxu0 %v5119
    %5360 = vmatpush1.bf16.msra.mxu0 %v5118
    %5361 = vmatprep.subr.bf16.mxu0 %v5115
    %5362 = vmatpush1.bf16.msra.mxu0 %v5114
    %5363 = vmatprep.subr.bf16.mxu0 %v5175
    %5364 = vmatpush2.bf16.msra.mxu0 %v5174
    %5365 = vmatprep.subr.bf16.mxu0 %v5171
    %5366 = vmatpush2.bf16.msra.mxu0 %v5170
    %5367 = vmatprep.subr.bf16.mxu0 %v5167
    %5368 = vmatpush2.bf16.msra.mxu0 %v5166
    %5369 = vmatprep.subr.bf16.mxu0 %v5163
    %5370 = vmatpush2.bf16.msra.mxu0 %v5162
    %5371 = vmatprep.subr.bf16.mxu0 %v5159
    %5372 = vmatpush2.bf16.msra.mxu0 %v5158
    %5373 = vmatprep.subr.bf16.mxu0 %v5155
    %5374 = vmatpush2.bf16.msra.mxu0 %v5154
    %5375 = vmatprep.subr.bf16.mxu0 %v5151
    %5376 = vmatpush2.bf16.msra.mxu0 %v5150
    %5377 = vmatprep.subr.bf16.mxu0 %v5147
    %5378 = vmatpush2.bf16.msra.mxu0 %v5146
    %5379 = vmatprep.mubr.bf16.mxu0 %v4515
    %5380 = vmatmul.mubr.bf16.gmra.mxu0 %v4514
    %v5381 = vpop.f32.mrf.mxu0
    %v5382 = vadd.f32 %v5341, %v5381
    %v5383 = vpop.f32.mrf.mxu0
    %v5384 = vadd.f32 %v5343, %v5383
    %v5385 = vpop.f32.mrf.mxu0
    %v5386 = vpop.f32.mrf.mxu0
    %5387 = vdwg.mxu0
    %5388 = vmatprep.subr.bf16.mxu0 %v5081
    %5389 = vmatpush1.bf16.msra.mxu0 %v5080
    %5390 = vmatprep.subr.bf16.mxu0 %v5077
    %5391 = vmatpush1.bf16.msra.mxu0 %v5076
    %5392 = vmatprep.subr.bf16.mxu0 %v5073
    %5393 = vmatpush1.bf16.msra.mxu0 %v5072
    %5394 = vmatprep.subr.bf16.mxu0 %v5069
    %5395 = vmatpush1.bf16.msra.mxu0 %v5068
    %5396 = vmatprep.subr.bf16.mxu0 %v5065
    %5397 = vmatpush1.bf16.msra.mxu0 %v5064
    %5398 = vmatprep.subr.bf16.mxu0 %v5061
    %5399 = vmatpush1.bf16.msra.mxu0 %v5060
    %5400 = vmatprep.subr.bf16.mxu0 %v5057
    %5401 = vmatpush1.bf16.msra.mxu0 %v5056
    %5402 = vmatprep.subr.bf16.mxu0 %v5053
    %5403 = vmatpush1.bf16.msra.mxu0 %v5052
    %5404 = vmatprep.subr.bf16.mxu0 %v5113
    %5405 = vmatpush2.bf16.msra.mxu0 %v5112
    %5406 = vmatprep.subr.bf16.mxu0 %v5109
    %5407 = vmatpush2.bf16.msra.mxu0 %v5108
    %5408 = vmatprep.subr.bf16.mxu0 %v5105
    %5409 = vmatpush2.bf16.msra.mxu0 %v5104
    %5410 = vmatprep.subr.bf16.mxu0 %v5101
    %5411 = vmatpush2.bf16.msra.mxu0 %v5100
    %5412 = vmatprep.subr.bf16.mxu0 %v5097
    %5413 = vmatpush2.bf16.msra.mxu0 %v5096
    %5414 = vmatprep.subr.bf16.mxu0 %v5093
    %5415 = vmatpush2.bf16.msra.mxu0 %v5092
    %5416 = vmatprep.subr.bf16.mxu0 %v5089
    %5417 = vmatpush2.bf16.msra.mxu0 %v5088
    %5418 = vmatprep.subr.bf16.mxu0 %v5085
    %5419 = vmatpush2.bf16.msra.mxu0 %v5084
    %5420 = vmatprep.mubr.bf16.mxu0 %v4513
    %5421 = vmatmul.mubr.bf16.gmra.mxu0 %v4512
    %v5422 = vpop.f32.mrf.mxu0
    %v5423 = vadd.f32 %v4657, %v5422
    %v5424 = vpop.f32.mrf.mxu0
    %v5425 = vadd.f32 %v4661, %v5424
    %v5426 = vpop.f32.mrf.mxu0
    %v5427 = vpop.f32.mrf.mxu0
    %5428 = vdwg.mxu0
    %5429 = vmatprep.subr.bf16.mxu0 %v5145
    %5430 = vmatpush1.bf16.msra.mxu0 %v5144
    %5431 = vmatprep.subr.bf16.mxu0 %v5141
    %5432 = vmatpush1.bf16.msra.mxu0 %v5140
    %5433 = vmatprep.subr.bf16.mxu0 %v5137
    %5434 = vmatpush1.bf16.msra.mxu0 %v5136
    %5435 = vmatprep.subr.bf16.mxu0 %v5133
    %5436 = vmatpush1.bf16.msra.mxu0 %v5132
    %5437 = vmatprep.subr.bf16.mxu0 %v5129
    %5438 = vmatpush1.bf16.msra.mxu0 %v5128
    %5439 = vmatprep.subr.bf16.mxu0 %v5125
    %5440 = vmatpush1.bf16.msra.mxu0 %v5124
    %5441 = vmatprep.subr.bf16.mxu0 %v5121
    %5442 = vmatpush1.bf16.msra.mxu0 %v5120
    %5443 = vmatprep.subr.bf16.mxu0 %v5117
    %5444 = vmatpush1.bf16.msra.mxu0 %v5116
    %5445 = vmatprep.subr.bf16.mxu0 %v5177
    %5446 = vmatpush2.bf16.msra.mxu0 %v5176
    %5447 = vmatprep.subr.bf16.mxu0 %v5173
    %5448 = vmatpush2.bf16.msra.mxu0 %v5172
    %5449 = vmatprep.subr.bf16.mxu0 %v5169
    %5450 = vmatpush2.bf16.msra.mxu0 %v5168
    %5451 = vmatprep.subr.bf16.mxu0 %v5165
    %5452 = vmatpush2.bf16.msra.mxu0 %v5164
    %5453 = vmatprep.subr.bf16.mxu0 %v5161
    %5454 = vmatpush2.bf16.msra.mxu0 %v5160
    %5455 = vmatprep.subr.bf16.mxu0 %v5157
    %5456 = vmatpush2.bf16.msra.mxu0 %v5156
    %5457 = vmatprep.subr.bf16.mxu0 %v5153
    %5458 = vmatpush2.bf16.msra.mxu0 %v5152
    %5459 = vmatprep.subr.bf16.mxu0 %v5149
    %5460 = vmatpush2.bf16.msra.mxu0 %v5148
    %5461 = vmatprep.mubr.bf16.mxu0 %v4515
    %5462 = vmatmul.mubr.bf16.gmra.mxu0 %v4514
    %v5463 = vpop.f32.mrf.mxu0
    %v5464 = vadd.f32 %v5423, %v5463
    %v5465 = vpop.f32.mrf.mxu0
    %v5466 = vadd.f32 %v5425, %v5465
    %v5467 = vpop.f32.mrf.mxu0
    %v5468 = vpop.f32.mrf.mxu0
    %5469 = vdwg.mxu0
    %v5470 = vmax.f32 %v5382, 0.0
    %v5471 = vmax.f32 %v5384, 0.0
    %v5472 = vmax.f32 %v5464, 0.0
    %v5473 = vmax.f32 %v5466, 0.0
    %v5474 = vpack.c.bf16 %v5470, %v5470
    %v5475 = vpack.c.bf16 %v5471, %v5471
    %v5476 = vpack.c.bf16 %v5472, %v5472
    %v5477 = vpack.c.bf16 %v5473, %v5473
    %v5478 = vld [vmem:[#allocation11] sm:$0xff]
    %v5479 = vld [vmem:[#allocation11 + $0x8] sm:$0xff]
    %v5480 = vld [vmem:[#allocation11 + $0x10] sm:$0xff]
    %v5481 = vld [vmem:[#allocation11 + $0x18] sm:$0xff]
    %v5482 = vld [vmem:[#allocation11 + $0x20] sm:$0xff]
    %v5483 = vld [vmem:[#allocation11 + $0x28] sm:$0xff]
    %v5484 = vld [vmem:[#allocation11 + $0x30] sm:$0xff]
    %v5485 = vld [vmem:[#allocation11 + $0x38] sm:$0xff]
    %v5486 = vld [vmem:[#allocation11 + $0x40] sm:$0xff]
    %v5487 = vld [vmem:[#allocation11 + $0x48] sm:$0xff]
    %v5488 = vld [vmem:[#allocation11 + $0x50] sm:$0xff]
    %v5489 = vld [vmem:[#allocation11 + $0x58] sm:$0xff]
    %v5490 = vld [vmem:[#allocation11 + $0x60] sm:$0xff]
    %v5491 = vld [vmem:[#allocation11 + $0x68] sm:$0xff]
    %v5492 = vld [vmem:[#allocation11 + $0x70] sm:$0xff]
    %v5493 = vld [vmem:[#allocation11 + $0x78] sm:$0xff]
    %v5494 = vld [vmem:[#allocation11 + $0x80] sm:$0xff]
    %v5495 = vld [vmem:[#allocation11 + $0x88] sm:$0xff]
    %v5496 = vld [vmem:[#allocation11 + $0x90] sm:$0xff]
    %v5497 = vld [vmem:[#allocation11 + $0x98] sm:$0xff]
    %v5498 = vld [vmem:[#allocation11 + $0xa0] sm:$0xff]
    %v5499 = vld [vmem:[#allocation11 + $0xa8] sm:$0xff]
    %v5500 = vld [vmem:[#allocation11 + $0xb0] sm:$0xff]
    %v5501 = vld [vmem:[#allocation11 + $0xb8] sm:$0xff]
    %v5502 = vld [vmem:[#allocation11 + $0xc0] sm:$0xff]
    %v5503 = vld [vmem:[#allocation11 + $0xc8] sm:$0xff]
    %v5504 = vld [vmem:[#allocation11 + $0xd0] sm:$0xff]
    %v5505 = vld [vmem:[#allocation11 + $0xd8] sm:$0xff]
    %v5506 = vld [vmem:[#allocation11 + $0xe0] sm:$0xff]
    %v5507 = vld [vmem:[#allocation11 + $0xe8] sm:$0xff]
    %v5508 = vld [vmem:[#allocation11 + $0xf0] sm:$0xff]
    %v5509 = vld [vmem:[#allocation11 + $0xf8] sm:$0xff]
    %v5510 = vld [vmem:[#allocation11 + $0x100] sm:$0xff]
    %v5511 = vld [vmem:[#allocation11 + $0x108] sm:$0xff]
    %v5512 = vld [vmem:[#allocation11 + $0x110] sm:$0xff]
    %v5513 = vld [vmem:[#allocation11 + $0x118] sm:$0xff]
    %v5514 = vld [vmem:[#allocation11 + $0x120] sm:$0xff]
    %v5515 = vld [vmem:[#allocation11 + $0x128] sm:$0xff]
    %v5516 = vld [vmem:[#allocation11 + $0x130] sm:$0xff]
    %v5517 = vld [vmem:[#allocation11 + $0x138] sm:$0xff]
    %v5518 = vld [vmem:[#allocation11 + $0x140] sm:$0xff]
    %v5519 = vld [vmem:[#allocation11 + $0x148] sm:$0xff]
    %v5520 = vld [vmem:[#allocation11 + $0x150] sm:$0xff]
    %v5521 = vld [vmem:[#allocation11 + $0x158] sm:$0xff]
    %v5522 = vld [vmem:[#allocation11 + $0x160] sm:$0xff]
    %v5523 = vld [vmem:[#allocation11 + $0x168] sm:$0xff]
    %v5524 = vld [vmem:[#allocation11 + $0x170] sm:$0xff]
    %v5525 = vld [vmem:[#allocation11 + $0x178] sm:$0xff]
    %v5526 = vld [vmem:[#allocation11 + $0x180] sm:$0xff]
    %v5527 = vld [vmem:[#allocation11 + $0x188] sm:$0xff]
    %v5528 = vld [vmem:[#allocation11 + $0x190] sm:$0xff]
    %v5529 = vld [vmem:[#allocation11 + $0x198] sm:$0xff]
    %v5530 = vld [vmem:[#allocation11 + $0x1a0] sm:$0xff]
    %v5531 = vld [vmem:[#allocation11 + $0x1a8] sm:$0xff]
    %v5532 = vld [vmem:[#allocation11 + $0x1b0] sm:$0xff]
    %v5533 = vld [vmem:[#allocation11 + $0x1b8] sm:$0xff]
    %v5534 = vld [vmem:[#allocation11 + $0x1c0] sm:$0xff]
    %v5535 = vld [vmem:[#allocation11 + $0x1c8] sm:$0xff]
    %v5536 = vld [vmem:[#allocation11 + $0x1d0] sm:$0xff]
    %v5537 = vld [vmem:[#allocation11 + $0x1d8] sm:$0xff]
    %v5538 = vld [vmem:[#allocation11 + $0x1e0] sm:$0xff]
    %v5539 = vld [vmem:[#allocation11 + $0x1e8] sm:$0xff]
    %v5540 = vld [vmem:[#allocation11 + $0x1f0] sm:$0xff]
    %v5541 = vld [vmem:[#allocation11 + $0x1f8] sm:$0xff]
    %v5542 = vld [vmem:[%s15] sm:$0x3]
    %v5544 = vlaneseq
    %v5545 = vshrl.u32 %v5544, 7
    %v5546 = vsub.s32 0, %v5545
    %v5547 = vrot.slane %v5542, %v5546
    %v5548 = vlaneseq
    %v5549 = vshrl.u32 %v5548, 7
    %v5550 = vsub.s32 1, %v5549
    %v5551 = vrot.slane %v5542, %v5550
    %v5618 = vunpack.c.l.b16 %v5478
    %v5619 = vunpack.c.h.b16 %v5478
    %v5620 = vunpack.c.l.b16 %v5479
    %v5621 = vunpack.c.h.b16 %v5479
    %v5622 = vunpack.c.l.b16 %v5480
    %v5623 = vunpack.c.h.b16 %v5480
    %v5624 = vunpack.c.l.b16 %v5481
    %v5625 = vunpack.c.h.b16 %v5481
    %v5626 = vunpack.c.l.b16 %v5482
    %v5627 = vunpack.c.h.b16 %v5482
    %v5628 = vunpack.c.l.b16 %v5483
    %v5629 = vunpack.c.h.b16 %v5483
    %v5630 = vunpack.c.l.b16 %v5484
    %v5631 = vunpack.c.h.b16 %v5484
    %v5632 = vunpack.c.l.b16 %v5485
    %v5633 = vunpack.c.h.b16 %v5485
    %v5634 = vunpack.c.l.b16 %v5486
    %v5635 = vunpack.c.h.b16 %v5486
    %v5636 = vunpack.c.l.b16 %v5487
    %v5637 = vunpack.c.h.b16 %v5487
    %v5638 = vunpack.c.l.b16 %v5488
    %v5639 = vunpack.c.h.b16 %v5488
    %v5640 = vunpack.c.l.b16 %v5489
    %v5641 = vunpack.c.h.b16 %v5489
    %v5642 = vunpack.c.l.b16 %v5490
    %v5643 = vunpack.c.h.b16 %v5490
    %v5644 = vunpack.c.l.b16 %v5491
    %v5645 = vunpack.c.h.b16 %v5491
    %v5646 = vunpack.c.l.b16 %v5492
    %v5647 = vunpack.c.h.b16 %v5492
    %v5648 = vunpack.c.l.b16 %v5493
    %v5649 = vunpack.c.h.b16 %v5493
    %v5650 = vunpack.c.l.b16 %v5494
    %v5651 = vunpack.c.h.b16 %v5494
    %v5652 = vunpack.c.l.b16 %v5495
    %v5653 = vunpack.c.h.b16 %v5495
    %v5654 = vunpack.c.l.b16 %v5496
    %v5655 = vunpack.c.h.b16 %v5496
    %v5656 = vunpack.c.l.b16 %v5497
    %v5657 = vunpack.c.h.b16 %v5497
    %v5658 = vunpack.c.l.b16 %v5498
    %v5659 = vunpack.c.h.b16 %v5498
    %v5660 = vunpack.c.l.b16 %v5499
    %v5661 = vunpack.c.h.b16 %v5499
    %v5662 = vunpack.c.l.b16 %v5500
    %v5663 = vunpack.c.h.b16 %v5500
    %v5664 = vunpack.c.l.b16 %v5501
    %v5665 = vunpack.c.h.b16 %v5501
    %v5666 = vunpack.c.l.b16 %v5502
    %v5667 = vunpack.c.h.b16 %v5502
    %v5668 = vunpack.c.l.b16 %v5503
    %v5669 = vunpack.c.h.b16 %v5503
    %v5670 = vunpack.c.l.b16 %v5504
    %v5671 = vunpack.c.h.b16 %v5504
    %v5672 = vunpack.c.l.b16 %v5505
    %v5673 = vunpack.c.h.b16 %v5505
    %v5674 = vunpack.c.l.b16 %v5506
    %v5675 = vunpack.c.h.b16 %v5506
    %v5676 = vunpack.c.l.b16 %v5507
    %v5677 = vunpack.c.h.b16 %v5507
    %v5678 = vunpack.c.l.b16 %v5508
    %v5679 = vunpack.c.h.b16 %v5508
    %v5680 = vunpack.c.l.b16 %v5509
    %v5681 = vunpack.c.h.b16 %v5509
    %v5682 = vunpack.c.l.b16 %v5510
    %v5683 = vunpack.c.h.b16 %v5510
    %v5684 = vunpack.c.l.b16 %v5511
    %v5685 = vunpack.c.h.b16 %v5511
    %v5686 = vunpack.c.l.b16 %v5512
    %v5687 = vunpack.c.h.b16 %v5512
    %v5688 = vunpack.c.l.b16 %v5513
    %v5689 = vunpack.c.h.b16 %v5513
    %v5690 = vunpack.c.l.b16 %v5514
    %v5691 = vunpack.c.h.b16 %v5514
    %v5692 = vunpack.c.l.b16 %v5515
    %v5693 = vunpack.c.h.b16 %v5515
    %v5694 = vunpack.c.l.b16 %v5516
    %v5695 = vunpack.c.h.b16 %v5516
    %v5696 = vunpack.c.l.b16 %v5517
    %v5697 = vunpack.c.h.b16 %v5517
    %v5698 = vunpack.c.l.b16 %v5518
    %v5699 = vunpack.c.h.b16 %v5518
    %v5700 = vunpack.c.l.b16 %v5519
    %v5701 = vunpack.c.h.b16 %v5519
    %v5702 = vunpack.c.l.b16 %v5520
    %v5703 = vunpack.c.h.b16 %v5520
    %v5704 = vunpack.c.l.b16 %v5521
    %v5705 = vunpack.c.h.b16 %v5521
    %v5706 = vunpack.c.l.b16 %v5522
    %v5707 = vunpack.c.h.b16 %v5522
    %v5708 = vunpack.c.l.b16 %v5523
    %v5709 = vunpack.c.h.b16 %v5523
    %v5710 = vunpack.c.l.b16 %v5524
    %v5711 = vunpack.c.h.b16 %v5524
    %v5712 = vunpack.c.l.b16 %v5525
    %v5713 = vunpack.c.h.b16 %v5525
    %v5714 = vunpack.c.l.b16 %v5526
    %v5715 = vunpack.c.h.b16 %v5526
    %v5716 = vunpack.c.l.b16 %v5527
    %v5717 = vunpack.c.h.b16 %v5527
    %v5718 = vunpack.c.l.b16 %v5528
    %v5719 = vunpack.c.h.b16 %v5528
    %v5720 = vunpack.c.l.b16 %v5529
    %v5721 = vunpack.c.h.b16 %v5529
    %v5722 = vunpack.c.l.b16 %v5530
    %v5723 = vunpack.c.h.b16 %v5530
    %v5724 = vunpack.c.l.b16 %v5531
    %v5725 = vunpack.c.h.b16 %v5531
    %v5726 = vunpack.c.l.b16 %v5532
    %v5727 = vunpack.c.h.b16 %v5532
    %v5728 = vunpack.c.l.b16 %v5533
    %v5729 = vunpack.c.h.b16 %v5533
    %v5730 = vunpack.c.l.b16 %v5534
    %v5731 = vunpack.c.h.b16 %v5534
    %v5732 = vunpack.c.l.b16 %v5535
    %v5733 = vunpack.c.h.b16 %v5535
    %v5734 = vunpack.c.l.b16 %v5536
    %v5735 = vunpack.c.h.b16 %v5536
    %v5736 = vunpack.c.l.b16 %v5537
    %v5737 = vunpack.c.h.b16 %v5537
    %v5738 = vunpack.c.l.b16 %v5538
    %v5739 = vunpack.c.h.b16 %v5538
    %v5740 = vunpack.c.l.b16 %v5539
    %v5741 = vunpack.c.h.b16 %v5539
    %v5742 = vunpack.c.l.b16 %v5540
    %v5743 = vunpack.c.h.b16 %v5540
    %v5744 = vunpack.c.l.b16 %v5541
    %v5745 = vunpack.c.h.b16 %v5541
    %v5746 = vpack.c.b16 %v5620, %v5618
    %v5747 = vpack.c.b16 %v5621, %v5619
    %v5748 = vpack.c.b16 %v5624, %v5622
    %v5749 = vpack.c.b16 %v5625, %v5623
    %v5750 = vpack.c.b16 %v5628, %v5626
    %v5751 = vpack.c.b16 %v5629, %v5627
    %v5752 = vpack.c.b16 %v5632, %v5630
    %v5753 = vpack.c.b16 %v5633, %v5631
    %v5754 = vpack.c.b16 %v5636, %v5634
    %v5755 = vpack.c.b16 %v5637, %v5635
    %v5756 = vpack.c.b16 %v5640, %v5638
    %v5757 = vpack.c.b16 %v5641, %v5639
    %v5758 = vpack.c.b16 %v5644, %v5642
    %v5759 = vpack.c.b16 %v5645, %v5643
    %v5760 = vpack.c.b16 %v5648, %v5646
    %v5761 = vpack.c.b16 %v5649, %v5647
    %v5762 = vpack.c.b16 %v5652, %v5650
    %v5763 = vpack.c.b16 %v5653, %v5651
    %v5764 = vpack.c.b16 %v5656, %v5654
    %v5765 = vpack.c.b16 %v5657, %v5655
    %v5766 = vpack.c.b16 %v5660, %v5658
    %v5767 = vpack.c.b16 %v5661, %v5659
    %v5768 = vpack.c.b16 %v5664, %v5662
    %v5769 = vpack.c.b16 %v5665, %v5663
    %v5770 = vpack.c.b16 %v5668, %v5666
    %v5771 = vpack.c.b16 %v5669, %v5667
    %v5772 = vpack.c.b16 %v5672, %v5670
    %v5773 = vpack.c.b16 %v5673, %v5671
    %v5774 = vpack.c.b16 %v5676, %v5674
    %v5775 = vpack.c.b16 %v5677, %v5675
    %v5776 = vpack.c.b16 %v5680, %v5678
    %v5777 = vpack.c.b16 %v5681, %v5679
    %v5778 = vpack.c.b16 %v5684, %v5682
    %v5779 = vpack.c.b16 %v5685, %v5683
    %v5780 = vpack.c.b16 %v5688, %v5686
    %v5781 = vpack.c.b16 %v5689, %v5687
    %v5782 = vpack.c.b16 %v5692, %v5690
    %v5783 = vpack.c.b16 %v5693, %v5691
    %v5784 = vpack.c.b16 %v5696, %v5694
    %v5785 = vpack.c.b16 %v5697, %v5695
    %v5786 = vpack.c.b16 %v5700, %v5698
    %v5787 = vpack.c.b16 %v5701, %v5699
    %v5788 = vpack.c.b16 %v5704, %v5702
    %v5789 = vpack.c.b16 %v5705, %v5703
    %v5790 = vpack.c.b16 %v5708, %v5706
    %v5791 = vpack.c.b16 %v5709, %v5707
    %v5792 = vpack.c.b16 %v5712, %v5710
    %v5793 = vpack.c.b16 %v5713, %v5711
    %v5794 = vpack.c.b16 %v5716, %v5714
    %v5795 = vpack.c.b16 %v5717, %v5715
    %v5796 = vpack.c.b16 %v5720, %v5718
    %v5797 = vpack.c.b16 %v5721, %v5719
    %v5798 = vpack.c.b16 %v5724, %v5722
    %v5799 = vpack.c.b16 %v5725, %v5723
    %v5800 = vpack.c.b16 %v5728, %v5726
    %v5801 = vpack.c.b16 %v5729, %v5727
    %v5802 = vpack.c.b16 %v5732, %v5730
    %v5803 = vpack.c.b16 %v5733, %v5731
    %v5804 = vpack.c.b16 %v5736, %v5734
    %v5805 = vpack.c.b16 %v5737, %v5735
    %v5806 = vpack.c.b16 %v5740, %v5738
    %v5807 = vpack.c.b16 %v5741, %v5739
    %v5808 = vpack.c.b16 %v5744, %v5742
    %v5809 = vpack.c.b16 %v5745, %v5743
    %5874 = vmatprep.subr.bf16.mxu0 %v5761
    %5875 = vmatpush1.bf16.msra.mxu0 %v5760
    %5876 = vmatprep.subr.bf16.mxu0 %v5759
    %5877 = vmatpush1.bf16.msra.mxu0 %v5758
    %5878 = vmatprep.subr.bf16.mxu0 %v5757
    %5879 = vmatpush1.bf16.msra.mxu0 %v5756
    %5880 = vmatprep.subr.bf16.mxu0 %v5755
    %5881 = vmatpush1.bf16.msra.mxu0 %v5754
    %5882 = vmatprep.subr.bf16.mxu0 %v5753
    %5883 = vmatpush1.bf16.msra.mxu0 %v5752
    %5884 = vmatprep.subr.bf16.mxu0 %v5751
    %5885 = vmatpush1.bf16.msra.mxu0 %v5750
    %5886 = vmatprep.subr.bf16.mxu0 %v5749
    %5887 = vmatpush1.bf16.msra.mxu0 %v5748
    %5888 = vmatprep.subr.bf16.mxu0 %v5747
    %5889 = vmatpush1.bf16.msra.mxu0 %v5746
    %5890 = vmatprep.subr.bf16.mxu0 %v5777
    %5891 = vmatpush2.bf16.msra.mxu0 %v5776
    %5892 = vmatprep.subr.bf16.mxu0 %v5775
    %5893 = vmatpush2.bf16.msra.mxu0 %v5774
    %5894 = vmatprep.subr.bf16.mxu0 %v5773
    %5895 = vmatpush2.bf16.msra.mxu0 %v5772
    %5896 = vmatprep.subr.bf16.mxu0 %v5771
    %5897 = vmatpush2.bf16.msra.mxu0 %v5770
    %5898 = vmatprep.subr.bf16.mxu0 %v5769
    %5899 = vmatpush2.bf16.msra.mxu0 %v5768
    %5900 = vmatprep.subr.bf16.mxu0 %v5767
    %5901 = vmatpush2.bf16.msra.mxu0 %v5766
    %5902 = vmatprep.subr.bf16.mxu0 %v5765
    %5903 = vmatpush2.bf16.msra.mxu0 %v5764
    %5904 = vmatprep.subr.bf16.mxu0 %v5763
    %5905 = vmatpush2.bf16.msra.mxu0 %v5762
    %5906 = vmatprep.mubr.bf16.mxu0 %v5475
    %5907 = vmatmul.mubr.bf16.gmra.mxu0 %v5474
    %v5908 = vpop.f32.mrf.mxu0
    %v5909 = vadd.f32 %v5547, %v5908
    %v5910 = vpop.f32.mrf.mxu0
    %v5911 = vadd.f32 %v5551, %v5910
    %v5912 = vpop.f32.mrf.mxu0
    %v5913 = vpop.f32.mrf.mxu0
    %5914 = vdwg.mxu0
    %5915 = vmatprep.subr.bf16.mxu0 %v5793
    %5916 = vmatpush1.bf16.msra.mxu0 %v5792
    %5917 = vmatprep.subr.bf16.mxu0 %v5791
    %5918 = vmatpush1.bf16.msra.mxu0 %v5790
    %5919 = vmatprep.subr.bf16.mxu0 %v5789
    %5920 = vmatpush1.bf16.msra.mxu0 %v5788
    %5921 = vmatprep.subr.bf16.mxu0 %v5787
    %5922 = vmatpush1.bf16.msra.mxu0 %v5786
    %5923 = vmatprep.subr.bf16.mxu0 %v5785
    %5924 = vmatpush1.bf16.msra.mxu0 %v5784
    %5925 = vmatprep.subr.bf16.mxu0 %v5783
    %5926 = vmatpush1.bf16.msra.mxu0 %v5782
    %5927 = vmatprep.subr.bf16.mxu0 %v5781
    %5928 = vmatpush1.bf16.msra.mxu0 %v5780
    %5929 = vmatprep.subr.bf16.mxu0 %v5779
    %5930 = vmatpush1.bf16.msra.mxu0 %v5778
    %5931 = vmatprep.subr.bf16.mxu0 %v5809
    %5932 = vmatpush2.bf16.msra.mxu0 %v5808
    %5933 = vmatprep.subr.bf16.mxu0 %v5807
    %5934 = vmatpush2.bf16.msra.mxu0 %v5806
    %5935 = vmatprep.subr.bf16.mxu0 %v5805
    %5936 = vmatpush2.bf16.msra.mxu0 %v5804
    %5937 = vmatprep.subr.bf16.mxu0 %v5803
    %5938 = vmatpush2.bf16.msra.mxu0 %v5802
    %5939 = vmatprep.subr.bf16.mxu0 %v5801
    %5940 = vmatpush2.bf16.msra.mxu0 %v5800
    %5941 = vmatprep.subr.bf16.mxu0 %v5799
    %5942 = vmatpush2.bf16.msra.mxu0 %v5798
    %5943 = vmatprep.subr.bf16.mxu0 %v5797
    %5944 = vmatpush2.bf16.msra.mxu0 %v5796
    %5945 = vmatprep.subr.bf16.mxu0 %v5795
    %5946 = vmatpush2.bf16.msra.mxu0 %v5794
    %5947 = vmatprep.mubr.bf16.mxu0 %v5477
    %5948 = vmatmul.mubr.bf16.gmra.mxu0 %v5476
    %v5949 = vpop.f32.mrf.mxu0
    %v5950 = vadd.f32 %v5909, %v5949
    %v5951 = vpop.f32.mrf.mxu0
    %v5952 = vadd.f32 %v5911, %v5951
    %v5953 = vpop.f32.mrf.mxu0
    %v5954 = vpop.f32.mrf.mxu0
    %5955 = vdwg.mxu0
    %5956 = vst [vmem:[#allocation12] sm:$0xff] %v5950
    %5957 = vst [vmem:[#allocation12 + $0x8] sm:$0xff] %v5952
    // Predicated region
    $region86: #{tpu_custom_call.1} parent=1 // pred_check
      _
    $region87: #{tpu_custom_call.1} parent=1 // pred_check_branch
      %5959 = sbr.rel (0) target = $region89
    $region88: #{tpu_custom_call.1} parent=1 // pred_region
      %s5961 = ssub.s32 256, 256
      %5962 = vsyncadd [#allocation5], %s5961
      %s5964 = sshll.u32 [#allocation12], 4
      %s5965 = int_to_ptr.vmem [resolvable:$true] %s5964
      %5967 = dma.vmem_to_hbm [thread:$0]  %s5965, 256, %s16, [#allocation5]
    $region89: #{tpu_custom_call.1} parent=1 // pred_fallthru
      _
    // Predicated region
    $region90: #{tpu_custom_call.1} parent=1 // pred_check
      _
    $region91: #{tpu_custom_call.1} parent=1 // pred_check_branch
      %5969 = sbr.rel (0) target = $region93
    $region92: #{tpu_custom_call.1} parent=1 // pred_region
      %5970 = dma.done [#allocation5], 256
    $region93: #{tpu_custom_call.1} parent=1 // pred_fallthru
      _
    %5971 = vsyncpa [#allocation4], 1
    %5972 = vsyncpa [#allocation7], 1
    %5973 = vsyncpa [#allocation10], 1
    %5974 = vsyncpa [#allocation5], 1

</llo_original>
